<compile_context>
chip_gen: v5e
topology: v5e:2x2
jax: 0.10.0
libtpu: 0.0.40
codegen_flags: <defaults>
</compile_context>

<pallas_src>
import functools
import math

import numpy as np
import jax
import jax.numpy as jnp
from jax import lax
from jax.experimental import pallas as pl
from jax.experimental.pallas import tpu as pltpu


NEG_INF = -1e30
_VMEM_LIMIT = 32 * 1024 * 1024     # safe scoped budget on v5e/v6e/v7x


def _round_up(x, m):
    return ((x + m - 1) // m) * m


def _pad_rows(x, n_pad):
    n = x.shape[0]
    if n_pad == n:
        return x
    return jnp.pad(x, ((0, n_pad - n),) + ((0, 0),) * (x.ndim - 1))


def _detect_bf16_eup():
    """bf16 exp on the EUP only on v6e / v7x (v5e and older have no bf16 EUP)."""
    try:
        kind = jax.devices()[0].device_kind.lower()
    except Exception:
        return False
    return ("v6" in kind) or ("v7" in kind)


_BF16_EXP = _detect_bf16_eup()


# ---------------------------------------------------------------------------
# Pallas kernels
# ---------------------------------------------------------------------------
def _cross_resident_kernel(act_ref, sid_ref,                    # scalar prefetch
                           q_ref, kv_ref, mask_ref, memb_ref,   # inputs
                           o_ref, *, m_valid, need_col_mask, exp_bf16):
    """Cross attention with the whole (padded) image-token KV resident in
    VMEM: single kv step, no online softmax.  Fused proposal-mask scatter:
    out = mask>0 ? softmax(q kv^T) kv : mask_embed[scale]."""
    qi = pl.program_id(0)
    memb = memb_ref[0].astype(jnp.float32)                      # (1, C)

    @pl.when(act_ref[qi] > 0)
    def _():
        q = q_ref[...]                                          # (tq, C) bf16, pre-scaled
        kv = kv_ref[...]                                        # (m_pad, C) bf16
        s = lax.dot_general(q, kv, (((1,), (1,)), ((), ())),
                            preferred_element_type=jnp.float32)
        if need_col_mask:
            col = lax.broadcasted_iota(jnp.int32, s.shape, 1)
            s = jnp.where(col < m_valid, s, NEG_INF)
        m = jnp.max(s, axis=-1, keepdims=True)
        if exp_bf16:
            p = jnp.exp((s - m).astype(jnp.bfloat16))
        else:
            p = jnp.exp(s - m)
        l = jnp.sum(p, axis=-1, keepdims=True, dtype=jnp.float32)
        attn = jnp.dot(p.astype(jnp.bfloat16), kv,
                       preferred_element_type=jnp.float32)
        attn = attn * pl.reciprocal(l, approx=True)
        o_ref[...] = jnp.where(mask_ref[...] > 0, attn, memb).astype(o_ref.dtype)

    @pl.when(act_ref[qi] == 0)            # fully masked tile -> mask_embed only
    def _():
        o_ref[...] = jnp.broadcast_to(memb, o_ref.shape).astype(o_ref.dtype)


def _cross_flash_kernel(act_ref, sid_ref,
                        q_ref, kv_ref, mask_ref, memb_ref,
                        o_ref, m_sc, l_sc, acc_sc,
                        *, m_valid, need_col_mask, exp_bf16):
    """Flash (online-softmax) cross attention for large image-token KV."""
    qi = pl.program_id(0)
    ki = pl.program_id(1)
    tk = kv_ref.shape[0]

    @pl.when(ki == 0)
    def _():
        m_sc[...] = jnp.full_like(m_sc, NEG_INF)
        l_sc[...] = jnp.zeros_like(l_sc)
        acc_sc[...] = jnp.zeros_like(acc_sc)

    @pl.when(act_ref[qi] > 0)             # skip all compute for dead tiles
    def _():
        q = q_ref[...]                                          # (tq, C) bf16
        kv = kv_ref[...]                                        # (tk, C) bf16
        s = lax.dot_general(q, kv, (((1,), (1,)), ((), ())),
                            preferred_element_type=jnp.float32)
        if need_col_mask:
            col = ki * tk + lax.broadcasted_iota(jnp.int32, s.shape, 1)
            s = jnp.where(col < m_valid, s, NEG_INF)
        m_prev = m_sc[...]
        m_new = jnp.maximum(m_prev, jnp.max(s, axis=-1, keepdims=True))
        alpha = jnp.exp(m_prev - m_new)
        if exp_bf16:
            p = jnp.exp((s - m_new).astype(jnp.bfloat16))
        else:
            p = jnp.exp(s - m_new)
        l_sc[...] = alpha * l_sc[...] + jnp.sum(p, axis=-1, keepdims=True,
                                                dtype=jnp.float32)
        acc_sc[...] = alpha * acc_sc[...] + jnp.dot(
            p.astype(jnp.bfloat16), kv, preferred_element_type=jnp.float32)
        m_sc[...] = m_new

    @pl.when(ki == pl.num_programs(1) - 1)
    def _():
        memb = memb_ref[0].astype(jnp.float32)                  # (1, C)

        @pl.when(act_ref[qi] > 0)
        def _():
            attn = acc_sc[...] * pl.reciprocal(l_sc[...], approx=True)
            o_ref[...] = jnp.where(mask_ref[...] > 0, attn,
                                   memb).astype(o_ref.dtype)

        @pl.when(act_ref[qi] == 0)        # no reciprocal(0): write memb directly
        def _():
            o_ref[...] = jnp.broadcast_to(memb, o_ref.shape).astype(o_ref.dtype)


def _self_flash_kernel(xq_ref, kv_ref, o_ref, m_sc, l_sc, acc_sc,
                       *, n_valid, need_col_mask, exp_bf16):
    """Flash self attention among voxel features (`diffuse_vox_features`).
    xq is (x + pos) * 1/sqrt(C) pre-computed in bf16 by the wrapper."""
    ki = pl.program_id(1)
    tk = kv_ref.shape[0]

    @pl.when(ki == 0)
    def _():
        m_sc[...] = jnp.full_like(m_sc, NEG_INF)
        l_sc[...] = jnp.zeros_like(l_sc)
        acc_sc[...] = jnp.zeros_like(acc_sc)

    q = xq_ref[...]                                             # (tq, C) bf16
    kv = kv_ref[...]                                            # (tk, C) bf16
    s = lax.dot_general(q, kv, (((1,), (1,)), ((), ())),
                        preferred_element_type=jnp.float32)
    if need_col_mask:
        col = ki * tk + lax.broadcasted_iota(jnp.int32, s.shape, 1)
        s = jnp.where(col < n_valid, s, NEG_INF)
    m_prev = m_sc[...]
    m_new = jnp.maximum(m_prev, jnp.max(s, axis=-1, keepdims=True))
    alpha = jnp.exp(m_prev - m_new)
    if exp_bf16:
        p = jnp.exp((s - m_new).astype(jnp.bfloat16))
    else:
        p = jnp.exp(s - m_new)
    l_sc[...] = alpha * l_sc[...] + jnp.sum(p, axis=-1, keepdims=True,
                                            dtype=jnp.float32)
    acc_sc[...] = alpha * acc_sc[...] + jnp.dot(
        p.astype(jnp.bfloat16), kv, preferred_element_type=jnp.float32)
    m_sc[...] = m_new

    @pl.when(ki == pl.num_programs(1) - 1)
    def _():
        out = acc_sc[...] * pl.reciprocal(l_sc[...], approx=True)
        o_ref[...] = out.astype(o_ref.dtype)


def _head_kernel(x_ref, wt_ref, b_ref, o_ref):
    """Header_ms hot path, transposed: (ncls_pad8, tr) = W^T @ x_tile^T + b.
    Lane-dense along the voxel axis; classes padded only to 8 sublanes."""
    o_ref[...] = (lax.dot_general(wt_ref[...], x_ref[...],
                                  (((1,), (1,)), ((), ())),
                                  preferred_element_type=jnp.float32)
                  + b_ref[...]).astype(o_ref.dtype)
    # TODO(synk): exact Header_ms uses 3D conv blocks + BatchNorm3d and an
    # extra /8 (ssc_logit_8) branch; only the channel-mixing matmul is here.


# ---------------------------------------------------------------------------
# Pallas wrappers
# ---------------------------------------------------------------------------
def cross_attention(q_all, kv_bf16, mask_all, memb_stack, tile_sid, *,
                    tq=512, tk=1024, resident_max_rows=2048):
    """q_all: (total_pad, C) bf16, pre-scaled (q+pos)/sqrt(C), padded per scale.
       kv_bf16: (M, C) bf16 image tokens.
       mask_all: (total_pad, 1) f32 proposal mask aligned with q_all.
       memb_stack: (S, 1, C) f32 per-scale mask_embed.
       tile_sid: (num_q,) int32 per-tile scale index into memb_stack."""
    total, c = q_all.shape
    assert total % tq == 0
    num_q = total // tq
    m = kv_bf16.shape[0]

    m_pad128 = _round_up(m, 128)
    resident = m_pad128 <= resident_max_rows
    tk_eff = m_pad128 if resident else min(tk, m_pad128)
    m_pad = _round_up(m, tk_eff)
    num_k = m_pad // tk_eff
    kv_p = _pad_rows(kv_bf16, m_pad)
    need_col_mask = (m_pad != m)

    tile_active = jnp.sum((mask_all.reshape(num_q, tq) > 0).astype(jnp.int32),
                          axis=1)

    if resident:
        kern = functools.partial(_cross_resident_kernel, m_valid=m,
                                 need_col_mask=need_col_mask,
                                 exp_bf16=_BF16_EXP)
        grid = (num_q,)
        in_specs = [
            pl.BlockSpec((tq, c), lambda qi, act, sid: (qi, 0)),
            pl.BlockSpec((m_pad, c), lambda qi, act, sid: (0, 0)),   # resident
            pl.BlockSpec((tq, 1), lambda qi, act, sid: (qi, 0)),
            pl.BlockSpec((1, 1, c), lambda qi, act, sid: (sid[qi], 0, 0)),
        ]
        out_spec = pl.BlockSpec((tq, c), lambda qi, act, sid: (qi, 0))
        scratch = []
        dims = ("parallel",)
    else:
        kern = functools.partial(_cross_flash_kernel, m_valid=m,
                                 need_col_mask=need_col_mask,
                                 exp_bf16=_BF16_EXP)
        grid = (num_q, num_k)
        in_specs = [
            pl.BlockSpec((tq, c), lambda qi, ki, act, sid: (qi, 0)),
            pl.BlockSpec((tk_eff, c), lambda qi, ki, act, sid: (ki, 0)),
            pl.BlockSpec((tq, 1), lambda qi, ki, act, sid: (qi, 0)),
            pl.BlockSpec((1, 1, c), lambda qi, ki, act, sid: (sid[qi], 0, 0)),
        ]
        out_spec = pl.BlockSpec((tq, c), lambda qi, ki, act, sid: (qi, 0))
        scratch = [pltpu.VMEM((tq, 1), jnp.float32),
                   pltpu.VMEM((tq, 1), jnp.float32),
                   pltpu.VMEM((tq, c), jnp.float32)]
        dims = ("parallel", "arbitrary")

    out = pl.pallas_call(
        kern,
        out_shape=jax.ShapeDtypeStruct((total, c), jnp.bfloat16),
        grid_spec=pltpu.PrefetchScalarGridSpec(
            num_scalar_prefetch=2,
            grid=grid,
            in_specs=in_specs,
            out_specs=out_spec,
            scratch_shapes=scratch),
        compiler_params=pltpu.CompilerParams(
            dimension_semantics=dims,
            vmem_limit_bytes=_VMEM_LIMIT),
    )(tile_active, tile_sid, q_all, kv_p, mask_all, memb_stack)
    return out


def self_attention(x_bf16, pos_scaled_f32, attn_scale, *, t=512):
    """Dense self attention over the voxel features of one scale."""
    n, c = x_bf16.shape
    t_eff = min(t, _round_up(n, 128))
    n_pad = _round_up(n, t_eff)
    num_t = n_pad // t_eff
    need_col_mask = (n_pad != n)

    xq = ((x_bf16.astype(jnp.float32) * attn_scale)
          + pos_scaled_f32).astype(jnp.bfloat16)
    xq_p = _pad_rows(xq, n_pad)
    kv_p = _pad_rows(x_bf16, n_pad)

    kern = functools.partial(_self_flash_kernel, n_valid=n,
                             need_col_mask=need_col_mask, exp_bf16=_BF16_EXP)
    out = pl.pallas_call(
        kern,
        out_shape=jax.ShapeDtypeStruct((n_pad, c), jnp.bfloat16),
        grid_spec=pltpu.PrefetchScalarGridSpec(
            num_scalar_prefetch=0,
            grid=(num_t, num_t),
            in_specs=[
                pl.BlockSpec((t_eff, c), lambda qi, ki: (qi, 0)),
                pl.BlockSpec((t_eff, c), lambda qi, ki: (ki, 0)),
            ],
            out_specs=pl.BlockSpec((t_eff, c), lambda qi, ki: (qi, 0)),
            scratch_shapes=[pltpu.VMEM((t_eff, 1), jnp.float32),
                            pltpu.VMEM((t_eff, 1), jnp.float32),
                            pltpu.VMEM((t_eff, c), jnp.float32)]),
        compiler_params=pltpu.CompilerParams(
            dimension_semantics=("parallel", "arbitrary"),
            vmem_limit_bytes=_VMEM_LIMIT),
    )(xq_p, kv_p)
    return out[:n]


def head_linear_t(x_bf16, wt_bf16, b_f32, *, tr=512):
    """Transposed head: (ncls_pad8, N_pad) f32 = W^T @ X^T + b, row-tiled."""
    n, c = x_bf16.shape
    ncls_pad = wt_bf16.shape[0]
    n_pad = _round_up(n, tr)
    x_p = _pad_rows(x_bf16, n_pad)

    out = pl.pallas_call(
        _head_kernel,
        out_shape=jax.ShapeDtypeStruct((ncls_pad, n_pad), jnp.float32),
        grid_spec=pltpu.PrefetchScalarGridSpec(
            num_scalar_prefetch=0,
            grid=(n_pad // tr,),
            in_specs=[
                pl.BlockSpec((tr, c), lambda r: (r, 0)),
                pl.BlockSpec((ncls_pad, c), lambda r: (0, 0)),
                pl.BlockSpec((ncls_pad, 1), lambda r: (0, 0)),
            ],
            out_specs=pl.BlockSpec((ncls_pad, tr), lambda r: (0, r))),
        compiler_params=pltpu.CompilerParams(
            dimension_semantics=("parallel",),
            vmem_limit_bytes=_VMEM_LIMIT),
    )(x_p, wt_bf16, b_f32)
    return out                               # (ncls_pad, n_pad) f32


# ---------------------------------------------------------------------------
# MonoOccHead_ms (JAX / Pallas)
# ---------------------------------------------------------------------------
class MonoOccHeadMS:
    def __init__(self, *, bev_h, bev_w, bev_z, real_h, real_w, real_z,
                 voxel_origin, n_classes, embed_dims, key, tq_cross=512):
        self.real_h, self.real_w, self.real_z = real_h, real_w, real_z
        self.voxel_origin = voxel_origin
        self.n_classes = n_classes
        self.embed_dims = embed_dims
        self._attn_scale = 1.0 / math.sqrt(embed_dims)
        self._tq_cross = tq_cross

        self.bev_h = [bev_h // 2 ** i for i in range(3)]
        self.bev_w = [bev_w // 2 ** i for i in range(3)]
        self.bev_z = [bev_z // 2 ** i for i in range(3)]

        # Per-scale parameters.  Cross-attention queries are pre-built:
        # (bev_embed + pos_cross) * 1/sqrt(C), bf16, padded per scale to a
        # multiple of tq_cross, then concatenated coarse->fine (loop order).
        # TODO(synk): the original uses an image-plane positional_encoding fed
        # to deformable attention; approximated with learned per-voxel
        # positional embeddings for the dense-attention formulation.
        q_parts, sid_parts, memb_list = [], [], []
        self.pos_self_scaled = []
        self._scales = []                 # (padded offset, n_vox, (h, w, z))
        off = 0
        for pos, i in enumerate([2, 1, 0]):
            h, w, z = self.bev_h[i], self.bev_w[i], self.bev_z[i]
            n_vox = h * w * z
            key, k0, k1, k2, k3 = jax.random.split(key, 5)
            bev_embed = 0.02 * jax.random.normal(k0, (n_vox, embed_dims),
                                                 jnp.float32)
            mask_embed = 0.02 * jax.random.normal(k1, (1, embed_dims),
                                                  jnp.float32)
            pos_cross = 0.02 * jax.random.normal(k2, (n_vox, embed_dims),
                                                 jnp.float32)
            pos_self = 0.02 * jax.random.normal(k3, (n_vox, embed_dims),
                                                jnp.float32)

            q_i = ((bev_embed + pos_cross) * self._attn_scale
                   ).astype(jnp.bfloat16)
            n_pad_i = _round_up(n_vox, tq_cross)
            q_parts.append(_pad_rows(q_i, n_pad_i))
            sid_parts.append(jnp.full((n_pad_i // tq_cross,), pos, jnp.int32))
            memb_list.append(mask_embed)
            self.pos_self_scaled.append(pos_self * self._attn_scale)
            self._scales.append((off, n_vox, (h, w, z)))
            off += n_pad_i

        self.q_cross_all = jnp.concatenate(q_parts, axis=0)      # (tot, C) bf16
        self.tile_sid = jnp.concatenate(sid_parts, axis=0)       # (num_q,) i32
        self.memb_stack = jnp.stack(memb_list, axis=0)           # (3, 1, C) f32
        self._total_q_pad = off

        # Head weights (Header_ms hot path), stored transposed & 8-padded.
        key, kw = jax.random.split(key)
        ncls_pad = _round_up(n_classes, 8)
        head_w = 0.02 * jax.random.normal(kw, (embed_dims, n_classes),
                                          jnp.float32)
        wt = jnp.zeros((ncls_pad, embed_dims), jnp.float32
                       ).at[:n_classes].set(head_w.T)
        self.head_wt = wt.astype(jnp.bfloat16)
        self.head_b = jnp.zeros((ncls_pad, 1), jnp.float32)

        # ref_3d / vox_coords: host-side numpy, cached once.
        # TODO(synk): they feed the real deformable-attention sampling, which
        # is approximated here by dense attention (so they are unused).
        self._ref_cache = [self.get_ref_3d(self.bev_h[i], self.bev_w[i],
                                           self.bev_z[i]) for i in range(3)]

    def get_ref_3d(self, bev_h, bev_w, bev_z):
        scene_size = (self.real_h, self.real_w, self.real_z)
        vox_origin = np.array(self.voxel_origin)
        voxel_size = self.real_h / bev_h
        vol_bnds = np.zeros((3, 2))
        vol_bnds[:, 0] = vox_origin
        vol_bnds[:, 1] = vox_origin + np.array(scene_size)
        vol_dim = np.ceil((vol_bnds[:, 1] - vol_bnds[:, 0]) / voxel_size
                          ).copy(order='C').astype(int)
        idx = np.array([range(vol_dim[0] * vol_dim[1] * vol_dim[2])])
        xv, yv, zv = np.meshgrid(range(vol_dim[0]), range(vol_dim[1]),
                                 range(vol_dim[2]), indexing='ij')
        vox_coords = np.concatenate(
            [xv.reshape(1, -1), yv.reshape(1, -1), zv.reshape(1, -1), idx],
            axis=0).astype(int).T
        ref_3d = np.concatenate(
            [(xv.reshape(1, -1) + 0.5) / bev_h,
             (yv.reshape(1, -1) + 0.5) / bev_w,
             (zv.reshape(1, -1) + 0.5) / bev_z], axis=0).astype(np.float64).T
        return vox_coords, ref_3d

    def forward(self, mlvl_feats, proposals):
        """mlvl_feats: list of (B, N_cam, C, H, W) float32 arrays.
           proposals : list (per scale i=0..2) of flat occupancy proposals
                       (>0 == unmasked)."""
        feat = mlvl_feats[0]
        bs, num_cam, c, h, w = feat.shape
        # NCHW -> token matrix (num_cam*H*W, C); single bf16 cast for the MXU.
        kv = jnp.transpose(feat[0], (0, 2, 3, 1)).reshape(num_cam * h * w, c)
        kv = kv.astype(jnp.bfloat16)

        # Build the proposal mask aligned with the pre-concatenated queries.
        mask_parts = []
        for pos, i in enumerate([2, 1, 0]):
            n_vox = self.bev_h[i] * self.bev_w[i] * self.bev_z[i]
            m_i = (jnp.asarray(proposals[i]).reshape(n_vox, 1) > 0
                   ).astype(jnp.float32)
            mask_parts.append(_pad_rows(m_i, _round_up(n_vox, self._tq_cross)))
        mask_all = jnp.concatenate(mask_parts, axis=0)

        # Cross transformer (seed feats) + mask_embed scatter: all 3 scales in
        # ONE pallas_call (per-tile scale id selects the right mask_embed).
        seeds_all = cross_attention(self.q_cross_all, kv, mask_all,
                                    self.memb_stack, self.tile_sid,
                                    tq=self._tq_cross)

        scale_feats, scale_dims = [], []
        for pos, i in enumerate([2, 1, 0]):                    # coarse -> fine
            off, n_vox, dims = self._scales[pos]
            seed = seeds_all[off:off + n_vox]
            diff = self_attention(seed, self.pos_self_scaled[pos],
                                  self._attn_scale)
            scale_feats.append(diff)
            scale_dims.append(dims)

        # Header_ms hot path: all scales batched, transposed lane-dense output.
        x_all = jnp.concatenate(scale_feats, axis=0)
        logits_t = head_linear_t(x_all, self.head_wt, self.head_b)

        out = {}
        names = ['ssc_logit_4', 'ssc_logit_2', 'ssc_logit']    # coarse -> fine
        off = 0
        for name, (hh, ww, zz) in zip(names, scale_dims):
            n_i = hh * ww * zz
            logit = logits_t[:self.n_classes, off:off + n_i].reshape(
                self.n_classes, hh, ww, zz)
            out[name] = logit[None]
            off += n_i
        # TODO(synk): 'ssc_logit_8' of the ms variant needs the extra /8 branch
        # of Header_ms which is not part of this module's source.
        return out


# ---------------------------------------------------------------------------
if __name__ == "__main__":
    key = jax.random.PRNGKey(0)
    key, k_feat, k_prop, k_head, k_kv2, k_m2 = jax.random.split(key, 6)

    # small synthetic config (lane-aligned channels)
    bev_h, bev_w, bev_z = 16, 16, 8
    embed_dims = 128
    n_classes = 16
    bs, num_cam, C, H, W = 1, 2, embed_dims, 16, 16

    head = MonoOccHeadMS(
        bev_h=bev_h, bev_w=bev_w, bev_z=bev_z,
        real_h=51.2, real_w=51.2, real_z=6.4,
        voxel_origin=[0.0, -25.6, -2.0],
        n_classes=n_classes, embed_dims=embed_dims, key=k_head)

    mlvl_feats = [jax.random.normal(k_feat, (bs, num_cam, C, H, W),
                                    jnp.float32)]

    proposals = []
    pk = k_prop
    for i in range(3):
        n_vox = (bev_h // 2 ** i) * (bev_w // 2 ** i) * (bev_z // 2 ** i)
        pk, sub = jax.random.split(pk)
        proposals.append(
            (jax.random.uniform(sub, (n_vox,)) > 0.5).astype(jnp.float32))

    out = head.forward(mlvl_feats, proposals)
    jax.block_until_ready(out['ssc_logit'])
    jax.block_until_ready(out['ssc_logit_2'])
    jax.block_until_ready(out['ssc_logit_4'])

    assert out['ssc_logit'].shape == (1, n_classes, bev_h, bev_w, bev_z)
    assert out['ssc_logit_2'].shape == (1, n_classes, bev_h // 2, bev_w // 2,
                                        bev_z // 2)
    assert out['ssc_logit_4'].shape == (1, n_classes, bev_h // 4, bev_w // 4,
                                        bev_z // 4)
    assert bool(jnp.all(jnp.isfinite(out['ssc_logit'])))
    assert bool(jnp.all(jnp.isfinite(out['ssc_logit_2'])))
    assert bool(jnp.all(jnp.isfinite(out['ssc_logit_4'])))

    # Also exercise the tiled (large-KV) flash cross-attention path once,
    # including the KV column-padding mask (320 tokens with tk=256).
    kv_small = jax.random.normal(k_kv2, (320, embed_dims),
                                 jnp.float32).astype(jnp.bfloat16)
    mask2 = (jax.random.uniform(k_m2, (head.q_cross_all.shape[0], 1)) > 0.5
             ).astype(jnp.float32)
    out2 = cross_attention(head.q_cross_all, kv_small, mask2,
                           head.memb_stack, head.tile_sid,
                           tq=head._tq_cross, tk=256, resident_max_rows=0)
    jax.block_until_ready(out2)
    assert bool(jnp.all(jnp.isfinite(out2.astype(jnp.float32))))

    print("KERNEL_OK")
</pallas_src>

<mosaic_0001>
module attributes {stable_mosaic.version = 11 : i64} {
  func.func @_cross_resident_kernel(%arg0: i32, %arg1: memref<6xi32, #tpu.memory_space<smem>>, %arg2: memref<6xi32, #tpu.memory_space<smem>>, %arg3: memref<512x128xbf16, #tpu.memory_space<vmem>>, %arg4: memref<512x128xbf16, #tpu.memory_space<vmem>>, %arg5: memref<512x1xf32, #tpu.memory_space<vmem>>, %arg6: memref<1x1x128xf32, #tpu.memory_space<vmem>>, %arg7: memref<512x128xbf16, #tpu.memory_space<vmem>>) attributes {dimension_semantics = [#tpu.dimension_semantics<parallel>], iteration_bounds = array<i64: 6>, scalar_prefetch = 2 : i64, scratch_operands = 0 : i64, tpu.core_type = #tpu.core_type<tc>, window_params = [{transform_indices = @transform_0, window_bounds = array<i64: 512, 128>}, {pipeline_mode = #tpu.pipeline_mode<synchronous>, transform_indices = @transform_1, window_bounds = array<i64: 512, 128>}, {transform_indices = @transform_2, window_bounds = array<i64: 512, 1>}, {transform_indices = @transform_3, window_bounds = array<i64: 1, 1, 128>}, {transform_indices = @transform_4, window_bounds = array<i64: 512, 128>}]} {
    %c0 = arith.constant 0 : index
    %c0_0 = arith.constant 0 : index
    %c0_1 = arith.constant 0 : index
    %0 = vector.load %arg6[%c0, %c0_0, %c0_1] : memref<1x1x128xf32, #tpu.memory_space<vmem>>, vector<1x1x128xf32>
    %1 = vector.shape_cast %0 : vector<1x1x128xf32> to vector<1x128xf32>
    %2 = arith.index_cast %arg0 : i32 to index
    %3 = memref.load %arg1[%2] : memref<6xi32, #tpu.memory_space<smem>>
    %c0_i32 = arith.constant 0 : i32
    %4 = arith.cmpi sgt, %3, %c0_i32 : i32
    %5 = arith.extui %4 : i1 to i32
    %c0_i32_2 = arith.constant 0 : i32
    %6 = arith.cmpi ne, %5, %c0_i32_2 : i32
    scf.if %6 {
      %c0_5 = arith.constant 0 : index
      %c0_6 = arith.constant 0 : index
      %12 = vector.load %arg3[%c0_5, %c0_6] : memref<512x128xbf16, #tpu.memory_space<vmem>>, vector<512x128xbf16>
      %c0_7 = arith.constant 0 : index
      %c0_8 = arith.constant 0 : index
      %13 = vector.load %arg4[%c0_7, %c0_8] : memref<512x128xbf16, #tpu.memory_space<vmem>>, vector<512x128xbf16>
      %cst = arith.constant dense<0.000000e+00> : vector<512x512xf32>
      %14 = tpu.matmul %12, %13, %cst {dimension_numbers = #tpu.dot_dimension_numbers<[1], [1], [0], [0], [0, 0, 1, 0], [], []>} : vector<512x128xbf16>, vector<512x128xbf16>, vector<512x512xf32> -> vector<512x512xf32>
      %cst_9 = arith.constant dense<0xFF800000> : vector<512xf32>
      %15 = vector.multi_reduction <maximumf>, %14, %cst_9 [1] : vector<512x512xf32> to vector<512xf32>
      %16 = vector.shape_cast %15 : vector<512xf32> to vector<512x1xf32>
      %17 = vector.broadcast %16 : vector<512x1xf32> to vector<512x512xf32>
      %18 = arith.subf %14, %17 : vector<512x512xf32>
      %19 = math.exp %18 : vector<512x512xf32>
      %cst_10 = arith.constant dense<0.000000e+00> : vector<512xf32>
      %20 = vector.multi_reduction <add>, %19, %cst_10 [1] : vector<512x512xf32> to vector<512xf32>
      %21 = vector.shape_cast %20 : vector<512xf32> to vector<512x1xf32>
      %22 = arith.truncf %19 : vector<512x512xf32> to vector<512x512xbf16>
      %cst_11 = arith.constant dense<0.000000e+00> : vector<512x128xf32>
      %23 = tpu.matmul %22, %13, %cst_11 {dimension_numbers = #tpu.dot_dimension_numbers<[1], [0], [0], [1], [0, 0, 1, 1], [], []>} : vector<512x512xbf16>, vector<512x128xbf16>, vector<512x128xf32> -> vector<512x128xf32>
      %24 = tpu.reciprocal %21 {approx = true} : vector<512x1xf32> -> vector<512x1xf32>
      %25 = vector.broadcast %24 : vector<512x1xf32> to vector<512x128xf32>
      %26 = arith.mulf %23, %25 : vector<512x128xf32>
      %c0_12 = arith.constant 0 : index
      %c0_13 = arith.constant 0 : index
      %27 = vector.load %arg5[%c0_12, %c0_13] : memref<512x1xf32, #tpu.memory_space<vmem>>, vector<512x1xf32>
      %cst_14 = arith.constant 0.000000e+00 : f32
      %28 = vector.broadcast %cst_14 : f32 to vector<512x1xf32>
      %29 = arith.cmpf ogt, %27, %28 : vector<512x1xf32>
      %30 = vector.shape_cast %29 : vector<512x1xi1> to vector<512x1xi1>
      %31 = vector.broadcast %30 : vector<512x1xi1> to vector<512x128xi1>
      %32 = vector.shape_cast %1 : vector<1x128xf32> to vector<1x128xf32>
      %33 = vector.broadcast %32 : vector<1x128xf32> to vector<512x128xf32>
      %34 = arith.select %31, %26, %33 : vector<512x128xi1>, vector<512x128xf32>
      %35 = arith.truncf %34 : vector<512x128xf32> to vector<512x128xbf16>
      %c0_15 = arith.constant 0 : index
      %c0_16 = arith.constant 0 : index
      %36 = vector.load %arg7[%c0_15, %c0_16] : memref<512x128xbf16, #tpu.memory_space<vmem>>, vector<512x128xbf16>
      tpu.vector_store %arg7[%c0_15, %c0_16], %35 {strides = array<i32>} : memref<512x128xbf16, #tpu.memory_space<vmem>>, vector<512x128xbf16>,
    } else {
    }
    %7 = arith.index_cast %arg0 : i32 to index
    %8 = memref.load %arg1[%7] : memref<6xi32, #tpu.memory_space<smem>>
    %c0_i32_3 = arith.constant 0 : i32
    %9 = arith.cmpi eq, %8, %c0_i32_3 : i32
    %10 = arith.extui %9 : i1 to i32
    %c0_i32_4 = arith.constant 0 : i32
    %11 = arith.cmpi ne, %10, %c0_i32_4 : i32
    scf.if %11 {
      %12 = vector.shape_cast %1 : vector<1x128xf32> to vector<1x128xf32>
      %13 = vector.broadcast %12 : vector<1x128xf32> to vector<512x128xf32>
      %14 = arith.truncf %13 : vector<512x128xf32> to vector<512x128xbf16>
      %c0_5 = arith.constant 0 : index
      %c0_6 = arith.constant 0 : index
      %15 = vector.load %arg7[%c0_5, %c0_6] : memref<512x128xbf16, #tpu.memory_space<vmem>>, vector<512x128xbf16>
      tpu.vector_store %arg7[%c0_5, %c0_6], %14 {strides = array<i32>} : memref<512x128xbf16, #tpu.memory_space<vmem>>, vector<512x128xbf16>,
    } else {
    }
    return
  }
  func.func @transform_0(%arg0: i32, %arg1: memref<6xi32, #tpu.memory_space<smem>>, %arg2: memref<6xi32, #tpu.memory_space<smem>>) -> (i32, i32) {
    %c0_i32 = arith.constant 0 : i32
    %c0_i32_0 = arith.constant 0 : i32
    return %arg0, %c0_i32 : i32, i32
  }
  func.func @transform_1(%arg0: i32, %arg1: memref<6xi32, #tpu.memory_space<smem>>, %arg2: memref<6xi32, #tpu.memory_space<smem>>) -> (i32, i32) {
    %c0_i32 = arith.constant 0 : i32
    %c0_i32_0 = arith.constant 0 : i32
    %c0_i32_1 = arith.constant 0 : i32
    return %c0_i32, %c0_i32_0 : i32, i32
  }
  func.func @transform_2(%arg0: i32, %arg1: memref<6xi32, #tpu.memory_space<smem>>, %arg2: memref<6xi32, #tpu.memory_space<smem>>) -> (i32, i32) {
    %c0_i32 = arith.constant 0 : i32
    %c0_i32_0 = arith.constant 0 : i32
    return %arg0, %c0_i32 : i32, i32
  }
  func.func @transform_3(%arg0: i32, %arg1: memref<6xi32, #tpu.memory_space<smem>>, %arg2: memref<6xi32, #tpu.memory_space<smem>>) -> (i32, i32, i32) {
    %0 = arith.index_cast %arg0 : i32 to index
    %1 = memref.load %arg2[%0] : memref<6xi32, #tpu.memory_space<smem>>
    %c0_i32 = arith.constant 0 : i32
    %c0_i32_0 = arith.constant 0 : i32
    %c0_i32_1 = arith.constant 0 : i32
    return %1, %c0_i32, %c0_i32_0 : i32, i32, i32
  }
  func.func @transform_4(%arg0: i32, %arg1: memref<6xi32, #tpu.memory_space<smem>>, %arg2: memref<6xi32, #tpu.memory_space<smem>>) -> (i32, i32) {
    %c0_i32 = arith.constant 0 : i32
    %c0_i32_0 = arith.constant 0 : i32
    return %arg0, %c0_i32 : i32, i32
  }
}

</mosaic_0001>

<llo_original>
// kernel: tpu_custom_call.1
$region0: #{tpu_custom_call.1}
  #allocation0 [shape = 'u32[]', space=smem, size = 0x4, offset = 0x4, fixed_abs, tag = 'smem constant byte address 0x4 - core index']
  #allocation1 [shape = 'u32[72,128]{1,0:T(1,128)}', space=vmem, size = 0x9000, scoped, tag = 'internal scratch']
  #allocation2 [shape = 's32[1]{0}', space=sflag, size = 0x4, scoped, tag = 'scoped memory for tpu_custom_call.1']
  #allocation3 [shape = 'u8[512]{0}', space=smem, size = 0x200, scoped, tag = 'prefetched SMEM operand 0']
  #allocation4 [shape = 'u8[512]{0}', space=smem, size = 0x200, scoped, tag = 'prefetched SMEM operand 1']
  %s0 = inlined_call_operand.vmem [shape: s32[6], index: 0, kind: input, shape index: {}]
  %s1 = inlined_call_operand.vmem [shape: s32[6], index: 1, kind: input, shape index: {}]
  %s2 = inlined_call_operand.vmem [shape: bf16[3072,128], index: 2, kind: input, shape index: {}]
  %s3 = inlined_call_operand.vmem [shape: bf16[512,128], index: 3, kind: input, shape index: {}]
  %s4 = inlined_call_operand.vmem [shape: f32[3072,1], index: 4, kind: input, shape index: {}]
  %s5 = inlined_call_operand.vmem [shape: f32[3,1,128], index: 5, kind: input, shape index: {}]
  %s6 = inlined_call_operand.hbm [shape: bf16[3072,128], index: 6, kind: output, shape index: {}]
  %s7 = sld [smem:[#allocation0]]
  $region57: #{tpu_custom_call.1} parent=0
    _
  %s9 = ssub.s32 1, %s7
  %s10 = scalar_select 0, %s9, %s7
  %s12 = sshll.u32 %s0, 4
  %s13 = int_to_ptr.vmem [resolvable:$true] %s12
  %15 = dma.vmem_to_smem %s13, 16, [#allocation3], [#allocation2]
  %s17 = sshll.u32 %s1, 4
  %s18 = int_to_ptr.vmem [resolvable:$true] %s17
  %20 = dma.vmem_to_smem %s18, 16, [#allocation4], [#allocation2]
  %22 = dma.done [#allocation2], 32
  %23 = sfence
  $region1: #{tpu_custom_call.1} parent=0
    #allocation5 [shape = 'u8[262144]{0}', space=vmem, size = 0x40000, scoped, tag = 'output window, operand 0']
    #allocation6 [shape = 's32[2]{0}', space=sflag, size = 0x8, scoped, tag = 'scoped memory for tpu_custom_call.1']
    %24 = vsyncpa [#allocation6], 0
    %s25 = scalar_lea.sflag [#allocation6], 1
    %26 = vsyncpa %s25, 0
    loop: start=0, step=1, limit=8
    $region2: #{tpu_custom_call.1} parent=1 // loop_pre_header
      _
    $region3: #{tpu_custom_call.1} parent=1 // loop_header
      %s28 = sphi 0, %s32
      %p29 = scmp.ge.s32.totalorder %s28, 8
      %s38 = sphi 0, %s40
      %s41 = sphi 0, %s38
      %s42 = sphi 0, %s41
      %s58 = sphi 0, %s42
      %s62 = sphi 0, %s62
      %s64 = sphi 0, %s62
      %s65 = sphi 0, %s64
      %s79 = sphi 0, %s65
      %s85 = sphi 0, %s87
      %s88 = sphi 0, %s85
      %s89 = sphi 0, %s88
      %s105 = sphi 0, %s89
      %s113 = sphi 0, %s115
      %s116 = sphi 0, %s113
      %s117 = sphi 0, %s116
      %s133 = sphi 0, %s117
      %s139 = sphi 0, %s141
      %s142 = sphi 0, %s139
      %s143 = sphi 0, %s142
      %s159 = sphi 0, %s143
    $region4: #{tpu_custom_call.1} parent=1 // loop_header_branch
      %31 = sbr.rel (%p29) target = $region8
    $region5: #{tpu_custom_call.1} parent=1 // loop_body
      %s33 = ssub.s32 %s28, 1
      %s34 = ssub.s32 %s28, 2
      %s35 = sadd.s32 %s28, 1
      %s36 = ssub.s32 %s28, %s35
      %p37 = scmp.eq.s32.totalorder %s36, 0
      %s39 = sadd.s32 %s38, 1
      %s40 = scalar_select %p37, %s38, %s39
      %p43 = pneg %p37
      %p44 = scmp.eq.s32.totalorder %s28, 5
      %p45 = por %p43, %p44
      %p46 = scmp.ne.s32.totalorder %s38, %s41
      %p47 = scmp.eq.s32.totalorder %s28, 0
      %p48 = por %p46, %p47
      %p49 = scmp.ne.s32.totalorder %s38, %s41
      %p50 = scmp.eq.s32.totalorder %s33, 5
      %p51 = por %p49, %p50
      %p52 = scmp.ne.s32.totalorder %s41, %s42
      %p53 = scmp.eq.s32.totalorder %s33, 0
      %p54 = por %p52, %p53
      %p55 = scmp.ne.s32.totalorder %s41, %s42
      %p56 = scmp.eq.s32.totalorder %s34, 5
      %p57 = por %p55, %p56
      %p59 = scmp.ne.s32.totalorder %s42, %s58
      %p60 = scmp.eq.s32.totalorder %s34, 0
      %p61 = por %p59, %p60
      %s63 = sadd.s32 %s62, 1
      %p66 = scmp.eq.s32.totalorder %s28, 5
      %p67 = scmp.ne.s32.totalorder %s62, %s64
      %p68 = scmp.eq.s32.totalorder %s28, 0
      %p69 = por %p67, %p68
      %p70 = scmp.ne.s32.totalorder %s62, %s64
      %p71 = scmp.eq.s32.totalorder %s33, 5
      %p72 = por %p70, %p71
      %p73 = scmp.ne.s32.totalorder %s64, %s65
      %p74 = scmp.eq.s32.totalorder %s33, 0
      %p75 = por %p73, %p74
      %p76 = scmp.ne.s32.totalorder %s64, %s65
      %p77 = scmp.eq.s32.totalorder %s34, 5
      %p78 = por %p76, %p77
      %p80 = scmp.ne.s32.totalorder %s65, %s79
      %p81 = scmp.eq.s32.totalorder %s34, 0
      %p82 = por %p80, %p81
      %s83 = ssub.s32 %s28, %s35
      %p84 = scmp.eq.s32.totalorder %s83, 0
      %s86 = sadd.s32 %s85, 1
      %s87 = scalar_select %p84, %s85, %s86
      %p90 = pneg %p84
      %p91 = scmp.eq.s32.totalorder %s28, 5
      %p92 = por %p90, %p91
      %p93 = scmp.ne.s32.totalorder %s85, %s88
      %p94 = scmp.eq.s32.totalorder %s28, 0
      %p95 = por %p93, %p94
      %p96 = scmp.ne.s32.totalorder %s85, %s88
      %p97 = scmp.eq.s32.totalorder %s33, 5
      %p98 = por %p96, %p97
      %p99 = scmp.ne.s32.totalorder %s88, %s89
      %p100 = scmp.eq.s32.totalorder %s33, 0
      %p101 = por %p99, %p100
      %p102 = scmp.ne.s32.totalorder %s88, %s89
      %p103 = scmp.eq.s32.totalorder %s34, 5
      %p104 = por %p102, %p103
      %p106 = scmp.ne.s32.totalorder %s89, %s105
      %p107 = scmp.eq.s32.totalorder %s34, 0
      %p108 = por %p106, %p107
      %s109 = sld [smem:[#allocation4 + %s28]]
      %s110 = sld [smem:[#allocation4 + %s35]]
      %s111 = ssub.s32 %s109, %s110
      %p112 = scmp.eq.s32.totalorder %s111, 0
      %s114 = sadd.s32 %s113, 1
      %s115 = scalar_select %p112, %s113, %s114
      %p118 = pneg %p112
      %p119 = scmp.eq.s32.totalorder %s28, 5
      %p120 = por %p118, %p119
      %p121 = scmp.ne.s32.totalorder %s113, %s116
      %p122 = scmp.eq.s32.totalorder %s28, 0
      %p123 = por %p121, %p122
      %p124 = scmp.ne.s32.totalorder %s113, %s116
      %p125 = scmp.eq.s32.totalorder %s33, 5
      %p126 = por %p124, %p125
      %p127 = scmp.ne.s32.totalorder %s116, %s117
      %p128 = scmp.eq.s32.totalorder %s33, 0
      %p129 = por %p127, %p128
      %p130 = scmp.ne.s32.totalorder %s116, %s117
      %p131 = scmp.eq.s32.totalorder %s34, 5
      %p132 = por %p130, %p131
      %p134 = scmp.ne.s32.totalorder %s117, %s133
      %p135 = scmp.eq.s32.totalorder %s34, 0
      %p136 = por %p134, %p135
      %s137 = ssub.s32 %s28, %s35
      %p138 = scmp.eq.s32.totalorder %s137, 0
      %s140 = sadd.s32 %s139, 1
      %s141 = scalar_select %p138, %s139, %s140
      %p144 = pneg %p138
      %p145 = scmp.eq.s32.totalorder %s28, 5
      %p146 = por %p144, %p145
      %p147 = scmp.ne.s32.totalorder %s139, %s142
      %p148 = scmp.eq.s32.totalorder %s28, 0
      %p149 = por %p147, %p148
      %p150 = scmp.ne.s32.totalorder %s139, %s142
      %p151 = scmp.eq.s32.totalorder %s33, 5
      %p152 = por %p150, %p151
      %p153 = scmp.ne.s32.totalorder %s142, %s143
      %p154 = scmp.eq.s32.totalorder %s33, 0
      %p155 = por %p153, %p154
      %p156 = scmp.ne.s32.totalorder %s142, %s143
      %p157 = scmp.eq.s32.totalorder %s34, 5
      %p158 = por %p156, %p157
      %p160 = scmp.ne.s32.totalorder %s143, %s159
      %p161 = scmp.eq.s32.totalorder %s34, 0
      %p162 = por %p160, %p161
      %p163 = scmp.le.s32.totalorder 1, %s28
      %p164 = scmp.lt.s32.totalorder %s28, 7
      %p165 = pnand %p163, %p164
      %p166 = pneg %p165
      // Predicated region
      $region9: #{tpu_custom_call.1} parent=5 // pred_check
        _
      $region10: #{tpu_custom_call.1} parent=5 // pred_check_branch
        %168 = sbr.rel (%p165) target = $region12
      $region11: #{tpu_custom_call.1} parent=5 // pred_region
        %s169 = ssub.s32 %s28, 1
        // Predicated region
        $region13: #{tpu_custom_call.1} parent=11 // pred_check
          %p170 = pneg %p75
        $region14: #{tpu_custom_call.1} parent=11 // pred_check_branch
          %172 = sbr.rel (%p170) target = $region16
        $region15: #{tpu_custom_call.1} parent=11 // pred_region
          _
        $region16: #{tpu_custom_call.1} parent=11 // pred_fallthru
          _
      $region12: #{tpu_custom_call.1} parent=5 // pred_fallthru
        _
      %p173 = scmp.lt.s32.totalorder %s28, 6
      // Predicated region
      $region17: #{tpu_custom_call.1} parent=5 // pred_check
        %p174 = pneg %p173
      $region18: #{tpu_custom_call.1} parent=5 // pred_check_branch
        %176 = sbr.rel (%p174) target = $region20
      $region19: #{tpu_custom_call.1} parent=5 // pred_region
        // Predicated region
        $region21: #{tpu_custom_call.1} parent=19 // pred_check
          %p177 = pneg %p48
        $region22: #{tpu_custom_call.1} parent=19 // pred_check_branch
          %179 = sbr.rel (%p177) target = $region24
        $region23: #{tpu_custom_call.1} parent=19 // pred_region
          %s180 = smul.u32 64, %s28
          %p181 = scmp.lt.s32.totalorder %s180, 383
          %s182 = scalar_select %p181, %s180, 383
          %s183 = smul.addr %s182, 4
          %s184 = scalar_lea.vmem %s2, %s183
          %s185 = smul.u32 64, %s28
        $region24: #{tpu_custom_call.1} parent=19 // pred_fallthru
          _
        // Predicated region
        $region25: #{tpu_custom_call.1} parent=19 // pred_check
          %p186 = pneg %p95
        $region26: #{tpu_custom_call.1} parent=19 // pred_check_branch
          %188 = sbr.rel (%p186) target = $region28
        $region27: #{tpu_custom_call.1} parent=19 // pred_region
          %s189 = smul.u32 64, %s28
          %p190 = scmp.lt.s32.totalorder %s189, 383
          %s191 = scalar_select %p190, %s189, 383
          %s192 = smul.addr %s191, 8
          %s193 = scalar_lea.vmem %s4, %s192
          %s194 = smul.u32 64, %s28
        $region28: #{tpu_custom_call.1} parent=19 // pred_fallthru
          _
        // Predicated region
        $region29: #{tpu_custom_call.1} parent=19 // pred_check
          %p195 = pneg %p123
        $region30: #{tpu_custom_call.1} parent=19 // pred_check_branch
          %197 = sbr.rel (%p195) target = $region32
        $region31: #{tpu_custom_call.1} parent=19 // pred_region
          %s198 = sld [smem:[#allocation4 + %s28]]
          %p199 = scmp.lt.s32.totalorder %s198, 2
          %s200 = scalar_select %p199, %s198, 2
          %s201 = scalar_lea.vmem %s5, %s200
          %s202 = sld [smem:[#allocation4 + %s28]]
        $region32: #{tpu_custom_call.1} parent=19 // pred_fallthru
          _
      $region20: #{tpu_custom_call.1} parent=5 // pred_fallthru
        _
      %p203 = scmp.le.s32.totalorder 1, %s28
      %p204 = scmp.lt.s32.totalorder %s28, 7
      %p205 = pnand %p203, %p204
      %p206 = pneg %p205
      // Predicated region
      $region33: #{tpu_custom_call.1} parent=5 // pred_check
        _
      $region34: #{tpu_custom_call.1} parent=5 // pred_check_branch
        %208 = sbr.rel (%p205) target = $region36
      $region35: #{tpu_custom_call.1} parent=5 // pred_region
        %s209 = ssub.s32 %s28, 1
        %s210 = smul.u32 64, %s33
        %p211 = scmp.lt.s32.totalorder %s210, 383
        %s212 = scalar_select %p211, %s210, 383
        %s213 = smul.addr %s212, 4
        %s214 = scalar_lea.vmem %s2, %s213
        %p215 = pneg %p54
        %p216 = pneg %p51
        %p217 = pneg %p75
        %p218 = pneg %p72
        %s219 = smul.u32 64, %s33
        %p220 = scmp.lt.s32.totalorder %s219, 383
        %s221 = scalar_select %p220, %s219, 383
        %s222 = smul.addr %s221, 8
        %s223 = scalar_lea.vmem %s4, %s222
        %p224 = pneg %p101
        %p225 = pneg %p98
        %s226 = sld [smem:[#allocation4 + %s33]]
        %p227 = scmp.lt.s32.totalorder %s226, 2
        %s228 = scalar_select %p227, %s226, 2
        %s229 = scalar_lea.vmem %s5, %s228
        %p230 = pneg %p129
        %p231 = pneg %p126
        %p232 = pneg %p155
        %p233 = pneg %p152
        %s234 = sand.u32 %s142, 1
        %s235 = scalar_lea.sflag [#allocation6], %s234
        %s236 = sand.u32 %s142, 1
        %s237 = smul.addr %s236, 256
        %s238 = scalar_lea.vmem [#allocation5], %s237
        %s239 = smul.u32 64, %s33
        %p240 = scmp.lt.s32.totalorder %s239, 383
        %s241 = scalar_select %p240, %s239, 383
        %s242 = smul.addr %s241, 4
        %s243 = scalar_lea.vmem %s2, %s242
        %s244 = smul.u32 64, %s33
        %s245 = smul.u32 64, %s33
        %p246 = scmp.lt.s32.totalorder %s245, 383
        %s247 = scalar_select %p246, %s245, 383
        %s248 = smul.addr %s247, 8
        %s249 = scalar_lea.vmem %s4, %s248
        %s250 = smul.u32 64, %s33
        %s251 = sld [smem:[#allocation4 + %s33]]
        %p252 = scmp.lt.s32.totalorder %s251, 2
        %s253 = scalar_select %p252, %s251, 2
        %s254 = scalar_lea.vmem %s5, %s253
        %s255 = sld [smem:[#allocation4 + %s33]]
        %s256 = smul.u32 64, %s33
        %v257 = vld [vmem:[%s254] sm:$0x1]
        %s258 = sld [smem:[#allocation3 + %s33]]
        %p259 = scmp.gt.s32.totalorder %s258, 0
        // Predicated region
        $region37: #{tpu_custom_call.1} parent=35 // pred_check
          %p260 = pneg %p259
        $region38: #{tpu_custom_call.1} parent=35 // pred_check_branch
          %262 = sbr.rel (%p260) target = $region40
        $region39: #{tpu_custom_call.1} parent=35 // pred_region
          %v263 = vld [vmem:[%s243] sm:$0xf]
          %v264 = vld [vmem:[%s243 + $0x4] sm:$0xf]
          %v265 = vld [vmem:[%s243 + $0x8] sm:$0xf]
          %v266 = vld [vmem:[%s243 + $0xc] sm:$0xf]
          %v267 = vld [vmem:[%s243 + $0x10] sm:$0xf]
          %v268 = vld [vmem:[%s243 + $0x14] sm:$0xf]
          %v269 = vld [vmem:[%s243 + $0x18] sm:$0xf]
          %v270 = vld [vmem:[%s243 + $0x1c] sm:$0xf]
          %v271 = vld [vmem:[%s243 + $0x20] sm:$0xf]
          %v272 = vld [vmem:[%s243 + $0x24] sm:$0xf]
          %v273 = vld [vmem:[%s243 + $0x28] sm:$0xf]
          %v274 = vld [vmem:[%s243 + $0x2c] sm:$0xf]
          %v275 = vld [vmem:[%s243 + $0x30] sm:$0xf]
          %v276 = vld [vmem:[%s243 + $0x34] sm:$0xf]
          %v277 = vld [vmem:[%s243 + $0x38] sm:$0xf]
          %v278 = vld [vmem:[%s243 + $0x3c] sm:$0xf]
          %v279 = vld [vmem:[%s243 + $0x40] sm:$0xf]
          %v280 = vld [vmem:[%s243 + $0x44] sm:$0xf]
          %v281 = vld [vmem:[%s243 + $0x48] sm:$0xf]
          %v282 = vld [vmem:[%s243 + $0x4c] sm:$0xf]
          %v283 = vld [vmem:[%s243 + $0x50] sm:$0xf]
          %v284 = vld [vmem:[%s243 + $0x54] sm:$0xf]
          %v285 = vld [vmem:[%s243 + $0x58] sm:$0xf]
          %v286 = vld [vmem:[%s243 + $0x5c] sm:$0xf]
          %v287 = vld [vmem:[%s243 + $0x60] sm:$0xf]
          %v288 = vld [vmem:[%s243 + $0x64] sm:$0xf]
          %v289 = vld [vmem:[%s243 + $0x68] sm:$0xf]
          %v290 = vld [vmem:[%s243 + $0x6c] sm:$0xf]
          %v291 = vld [vmem:[%s243 + $0x70] sm:$0xf]
          %v292 = vld [vmem:[%s243 + $0x74] sm:$0xf]
          %v293 = vld [vmem:[%s243 + $0x78] sm:$0xf]
          %v294 = vld [vmem:[%s243 + $0x7c] sm:$0xf]
          %v295 = vld [vmem:[%s243 + $0x80] sm:$0xf]
          %v296 = vld [vmem:[%s243 + $0x84] sm:$0xf]
          %v297 = vld [vmem:[%s243 + $0x88] sm:$0xf]
          %v298 = vld [vmem:[%s243 + $0x8c] sm:$0xf]
          %v299 = vld [vmem:[%s243 + $0x90] sm:$0xf]
          %v300 = vld [vmem:[%s243 + $0x94] sm:$0xf]
          %v301 = vld [vmem:[%s243 + $0x98] sm:$0xf]
          %v302 = vld [vmem:[%s243 + $0x9c] sm:$0xf]
          %v303 = vld [vmem:[%s243 + $0xa0] sm:$0xf]
          %v304 = vld [vmem:[%s243 + $0xa4] sm:$0xf]
          %v305 = vld [vmem:[%s243 + $0xa8] sm:$0xf]
          %v306 = vld [vmem:[%s243 + $0xac] sm:$0xf]
          %v307 = vld [vmem:[%s243 + $0xb0] sm:$0xf]
          %v308 = vld [vmem:[%s243 + $0xb4] sm:$0xf]
          %v309 = vld [vmem:[%s243 + $0xb8] sm:$0xf]
          %v310 = vld [vmem:[%s243 + $0xbc] sm:$0xf]
          %v311 = vld [vmem:[%s243 + $0xc0] sm:$0xf]
          %v312 = vld [vmem:[%s243 + $0xc4] sm:$0xf]
          %v313 = vld [vmem:[%s243 + $0xc8] sm:$0xf]
          %v314 = vld [vmem:[%s243 + $0xcc] sm:$0xf]
          %v315 = vld [vmem:[%s243 + $0xd0] sm:$0xf]
          %v316 = vld [vmem:[%s243 + $0xd4] sm:$0xf]
          %v317 = vld [vmem:[%s243 + $0xd8] sm:$0xf]
          %v318 = vld [vmem:[%s243 + $0xdc] sm:$0xf]
          %v319 = vld [vmem:[%s243 + $0xe0] sm:$0xf]
          %v320 = vld [vmem:[%s243 + $0xe4] sm:$0xf]
          %v321 = vld [vmem:[%s243 + $0xe8] sm:$0xf]
          %v322 = vld [vmem:[%s243 + $0xec] sm:$0xf]
          %v323 = vld [vmem:[%s243 + $0xf0] sm:$0xf]
          %v324 = vld [vmem:[%s243 + $0xf4] sm:$0xf]
          %v325 = vld [vmem:[%s243 + $0xf8] sm:$0xf]
          %v326 = vld [vmem:[%s243 + $0xfc] sm:$0xf]
          %v327 = vld [vmem:[%s3] sm:$0xf]
          %v328 = vld [vmem:[%s3 + $0x4] sm:$0xf]
          %v329 = vld [vmem:[%s3 + $0x8] sm:$0xf]
          %v330 = vld [vmem:[%s3 + $0xc] sm:$0xf]
          %v331 = vld [vmem:[%s3 + $0x10] sm:$0xf]
          %v332 = vld [vmem:[%s3 + $0x14] sm:$0xf]
          %v333 = vld [vmem:[%s3 + $0x18] sm:$0xf]
          %v334 = vld [vmem:[%s3 + $0x1c] sm:$0xf]
          %v335 = vld [vmem:[%s3 + $0x20] sm:$0xf]
          %v336 = vld [vmem:[%s3 + $0x24] sm:$0xf]
          %v337 = vld [vmem:[%s3 + $0x28] sm:$0xf]
          %v338 = vld [vmem:[%s3 + $0x2c] sm:$0xf]
          %v339 = vld [vmem:[%s3 + $0x30] sm:$0xf]
          %v340 = vld [vmem:[%s3 + $0x34] sm:$0xf]
          %v341 = vld [vmem:[%s3 + $0x38] sm:$0xf]
          %v342 = vld [vmem:[%s3 + $0x3c] sm:$0xf]
          %v343 = vld [vmem:[%s3 + $0x40] sm:$0xf]
          %v344 = vld [vmem:[%s3 + $0x44] sm:$0xf]
          %v345 = vld [vmem:[%s3 + $0x48] sm:$0xf]
          %v346 = vld [vmem:[%s3 + $0x4c] sm:$0xf]
          %v347 = vld [vmem:[%s3 + $0x50] sm:$0xf]
          %v348 = vld [vmem:[%s3 + $0x54] sm:$0xf]
          %v349 = vld [vmem:[%s3 + $0x58] sm:$0xf]
          %v350 = vld [vmem:[%s3 + $0x5c] sm:$0xf]
          %v351 = vld [vmem:[%s3 + $0x60] sm:$0xf]
          %v352 = vld [vmem:[%s3 + $0x64] sm:$0xf]
          %v353 = vld [vmem:[%s3 + $0x68] sm:$0xf]
          %v354 = vld [vmem:[%s3 + $0x6c] sm:$0xf]
          %v355 = vld [vmem:[%s3 + $0x70] sm:$0xf]
          %v356 = vld [vmem:[%s3 + $0x74] sm:$0xf]
          %v357 = vld [vmem:[%s3 + $0x78] sm:$0xf]
          %v358 = vld [vmem:[%s3 + $0x7c] sm:$0xf]
          %v359 = vld [vmem:[%s3 + $0x80] sm:$0xf]
          %v360 = vld [vmem:[%s3 + $0x84] sm:$0xf]
          %v361 = vld [vmem:[%s3 + $0x88] sm:$0xf]
          %v362 = vld [vmem:[%s3 + $0x8c] sm:$0xf]
          %v363 = vld [vmem:[%s3 + $0x90] sm:$0xf]
          %v364 = vld [vmem:[%s3 + $0x94] sm:$0xf]
          %v365 = vld [vmem:[%s3 + $0x98] sm:$0xf]
          %v366 = vld [vmem:[%s3 + $0x9c] sm:$0xf]
          %v367 = vld [vmem:[%s3 + $0xa0] sm:$0xf]
          %v368 = vld [vmem:[%s3 + $0xa4] sm:$0xf]
          %v369 = vld [vmem:[%s3 + $0xa8] sm:$0xf]
          %v370 = vld [vmem:[%s3 + $0xac] sm:$0xf]
          %v371 = vld [vmem:[%s3 + $0xb0] sm:$0xf]
          %v372 = vld [vmem:[%s3 + $0xb4] sm:$0xf]
          %v373 = vld [vmem:[%s3 + $0xb8] sm:$0xf]
          %v374 = vld [vmem:[%s3 + $0xbc] sm:$0xf]
          %v375 = vld [vmem:[%s3 + $0xc0] sm:$0xf]
          %v376 = vld [vmem:[%s3 + $0xc4] sm:$0xf]
          %v377 = vld [vmem:[%s3 + $0xc8] sm:$0xf]
          %v378 = vld [vmem:[%s3 + $0xcc] sm:$0xf]
          %v379 = vld [vmem:[%s3 + $0xd0] sm:$0xf]
          %v380 = vld [vmem:[%s3 + $0xd4] sm:$0xf]
          %v381 = vld [vmem:[%s3 + $0xd8] sm:$0xf]
          %v382 = vld [vmem:[%s3 + $0xdc] sm:$0xf]
          %v383 = vld [vmem:[%s3 + $0xe0] sm:$0xf]
          %v384 = vld [vmem:[%s3 + $0xe4] sm:$0xf]
          %v385 = vld [vmem:[%s3 + $0xe8] sm:$0xf]
          %v386 = vld [vmem:[%s3 + $0xec] sm:$0xf]
          %v387 = vld [vmem:[%s3 + $0xf0] sm:$0xf]
          %v388 = vld [vmem:[%s3 + $0xf4] sm:$0xf]
          %v389 = vld [vmem:[%s3 + $0xf8] sm:$0xf]
          %v390 = vld [vmem:[%s3 + $0xfc] sm:$0xf]
          %v455 = vunpack.c.l.b16 %v263
          %v456 = vunpack.c.l.b16 %v264
          %v457 = vunpack.c.l.b16 %v265
          %v458 = vunpack.c.l.b16 %v266
          %v459 = vunpack.c.l.b16 %v267
          %v460 = vunpack.c.l.b16 %v268
          %v461 = vunpack.c.l.b16 %v269
          %v462 = vunpack.c.l.b16 %v270
          %v463 = vunpack.c.l.b16 %v271
          %v464 = vunpack.c.l.b16 %v272
          %v465 = vunpack.c.l.b16 %v273
          %v466 = vunpack.c.l.b16 %v274
          %v467 = vunpack.c.l.b16 %v275
          %v468 = vunpack.c.l.b16 %v276
          %v469 = vunpack.c.l.b16 %v277
          %v470 = vunpack.c.l.b16 %v278
          %v471 = vunpack.c.l.b16 %v279
          %v472 = vunpack.c.l.b16 %v280
          %v473 = vunpack.c.l.b16 %v281
          %v474 = vunpack.c.l.b16 %v282
          %v475 = vunpack.c.l.b16 %v283
          %v476 = vunpack.c.l.b16 %v284
          %v477 = vunpack.c.l.b16 %v285
          %v478 = vunpack.c.l.b16 %v286
          %v479 = vunpack.c.l.b16 %v287
          %v480 = vunpack.c.l.b16 %v288
          %v481 = vunpack.c.l.b16 %v289
          %v482 = vunpack.c.l.b16 %v290
          %v483 = vunpack.c.l.b16 %v291
          %v484 = vunpack.c.l.b16 %v292
          %v485 = vunpack.c.l.b16 %v293
          %v486 = vunpack.c.l.b16 %v294
          %v487 = vunpack.c.l.b16 %v295
          %v488 = vunpack.c.l.b16 %v296
          %v489 = vunpack.c.l.b16 %v297
          %v490 = vunpack.c.l.b16 %v298
          %v491 = vunpack.c.l.b16 %v299
          %v492 = vunpack.c.l.b16 %v300
          %v493 = vunpack.c.l.b16 %v301
          %v494 = vunpack.c.l.b16 %v302
          %v495 = vunpack.c.l.b16 %v303
          %v496 = vunpack.c.l.b16 %v304
          %v497 = vunpack.c.l.b16 %v305
          %v498 = vunpack.c.l.b16 %v306
          %v499 = vunpack.c.l.b16 %v307
          %v500 = vunpack.c.l.b16 %v308
          %v501 = vunpack.c.l.b16 %v309
          %v502 = vunpack.c.l.b16 %v310
          %v503 = vunpack.c.l.b16 %v311
          %v504 = vunpack.c.l.b16 %v312
          %v505 = vunpack.c.l.b16 %v313
          %v506 = vunpack.c.l.b16 %v314
          %v507 = vunpack.c.l.b16 %v315
          %v508 = vunpack.c.l.b16 %v316
          %v509 = vunpack.c.l.b16 %v317
          %v510 = vunpack.c.l.b16 %v318
          %v511 = vunpack.c.l.b16 %v319
          %v512 = vunpack.c.l.b16 %v320
          %v513 = vunpack.c.l.b16 %v321
          %v514 = vunpack.c.l.b16 %v322
          %v515 = vunpack.c.l.b16 %v323
          %v516 = vunpack.c.l.b16 %v324
          %v517 = vunpack.c.l.b16 %v325
          %v518 = vunpack.c.l.b16 %v326
          %v519 = vpack.c.b16 %v456, %v455
          %v520 = vpack.c.b16 %v458, %v457
          %v521 = vpack.c.b16 %v460, %v459
          %v522 = vpack.c.b16 %v462, %v461
          %v523 = vpack.c.b16 %v464, %v463
          %v524 = vpack.c.b16 %v466, %v465
          %v525 = vpack.c.b16 %v468, %v467
          %v526 = vpack.c.b16 %v470, %v469
          %v527 = vpack.c.b16 %v472, %v471
          %v528 = vpack.c.b16 %v474, %v473
          %v529 = vpack.c.b16 %v476, %v475
          %v530 = vpack.c.b16 %v478, %v477
          %v531 = vpack.c.b16 %v480, %v479
          %v532 = vpack.c.b16 %v482, %v481
          %v533 = vpack.c.b16 %v484, %v483
          %v534 = vpack.c.b16 %v486, %v485
          %v535 = vpack.c.b16 %v488, %v487
          %v536 = vpack.c.b16 %v490, %v489
          %v537 = vpack.c.b16 %v492, %v491
          %v538 = vpack.c.b16 %v494, %v493
          %v539 = vpack.c.b16 %v496, %v495
          %v540 = vpack.c.b16 %v498, %v497
          %v541 = vpack.c.b16 %v500, %v499
          %v542 = vpack.c.b16 %v502, %v501
          %v543 = vpack.c.b16 %v504, %v503
          %v544 = vpack.c.b16 %v506, %v505
          %v545 = vpack.c.b16 %v508, %v507
          %v546 = vpack.c.b16 %v510, %v509
          %v547 = vpack.c.b16 %v512, %v511
          %v548 = vpack.c.b16 %v514, %v513
          %v549 = vpack.c.b16 %v516, %v515
          %v550 = vpack.c.b16 %v518, %v517
          %v647 = vunpack.c.l.b16 %v327
          %v648 = vunpack.c.l.b16 %v328
          %v649 = vunpack.c.l.b16 %v329
          %v650 = vunpack.c.l.b16 %v330
          %v651 = vunpack.c.l.b16 %v331
          %v652 = vunpack.c.l.b16 %v332
          %v653 = vunpack.c.l.b16 %v333
          %v654 = vunpack.c.l.b16 %v334
          %v655 = vunpack.c.l.b16 %v335
          %v656 = vunpack.c.l.b16 %v336
          %v657 = vunpack.c.l.b16 %v337
          %v658 = vunpack.c.l.b16 %v338
          %v659 = vunpack.c.l.b16 %v339
          %v660 = vunpack.c.l.b16 %v340
          %v661 = vunpack.c.l.b16 %v341
          %v662 = vunpack.c.l.b16 %v342
          %v663 = vunpack.c.l.b16 %v343
          %v664 = vunpack.c.l.b16 %v344
          %v665 = vunpack.c.l.b16 %v345
          %v666 = vunpack.c.l.b16 %v346
          %v667 = vunpack.c.l.b16 %v347
          %v668 = vunpack.c.l.b16 %v348
          %v669 = vunpack.c.l.b16 %v349
          %v670 = vunpack.c.l.b16 %v350
          %v671 = vunpack.c.l.b16 %v351
          %v672 = vunpack.c.l.b16 %v352
          %v673 = vunpack.c.l.b16 %v353
          %v674 = vunpack.c.l.b16 %v354
          %v675 = vunpack.c.l.b16 %v355
          %v676 = vunpack.c.l.b16 %v356
          %v677 = vunpack.c.l.b16 %v357
          %v678 = vunpack.c.l.b16 %v358
          %v679 = vunpack.c.l.b16 %v359
          %v680 = vunpack.c.l.b16 %v360
          %v681 = vunpack.c.l.b16 %v361
          %v682 = vunpack.c.l.b16 %v362
          %v683 = vunpack.c.l.b16 %v363
          %v684 = vunpack.c.l.b16 %v364
          %v685 = vunpack.c.l.b16 %v365
          %v686 = vunpack.c.l.b16 %v366
          %v687 = vunpack.c.l.b16 %v367
          %v688 = vunpack.c.l.b16 %v368
          %v689 = vunpack.c.l.b16 %v369
          %v690 = vunpack.c.l.b16 %v370
          %v691 = vunpack.c.l.b16 %v371
          %v692 = vunpack.c.l.b16 %v372
          %v693 = vunpack.c.l.b16 %v373
          %v694 = vunpack.c.l.b16 %v374
          %v695 = vunpack.c.l.b16 %v375
          %v696 = vunpack.c.l.b16 %v376
          %v697 = vunpack.c.l.b16 %v377
          %v698 = vunpack.c.l.b16 %v378
          %v699 = vunpack.c.l.b16 %v379
          %v700 = vunpack.c.l.b16 %v380
          %v701 = vunpack.c.l.b16 %v381
          %v702 = vunpack.c.l.b16 %v382
          %v703 = vunpack.c.l.b16 %v383
          %v704 = vunpack.c.l.b16 %v384
          %v705 = vunpack.c.l.b16 %v385
          %v706 = vunpack.c.l.b16 %v386
          %v707 = vunpack.c.l.b16 %v387
          %v708 = vunpack.c.l.b16 %v388
          %v709 = vunpack.c.l.b16 %v389
          %v710 = vunpack.c.l.b16 %v390
          %v711 = vpack.c.b16 %v648, %v647
          %v712 = vpack.c.b16 %v650, %v649
          %v713 = vpack.c.b16 %v652, %v651
          %v714 = vpack.c.b16 %v654, %v653
          %v715 = vpack.c.b16 %v656, %v655
          %v716 = vpack.c.b16 %v658, %v657
          %v717 = vpack.c.b16 %v660, %v659
          %v718 = vpack.c.b16 %v662, %v661
          %v719 = vpack.c.b16 %v664, %v663
          %v720 = vpack.c.b16 %v666, %v665
          %v721 = vpack.c.b16 %v668, %v667
          %v722 = vpack.c.b16 %v670, %v669
          %v723 = vpack.c.b16 %v672, %v671
          %v724 = vpack.c.b16 %v674, %v673
          %v725 = vpack.c.b16 %v676, %v675
          %v726 = vpack.c.b16 %v678, %v677
          %v727 = vpack.c.b16 %v680, %v679
          %v728 = vpack.c.b16 %v682, %v681
          %v729 = vpack.c.b16 %v684, %v683
          %v730 = vpack.c.b16 %v686, %v685
          %v731 = vpack.c.b16 %v688, %v687
          %v732 = vpack.c.b16 %v690, %v689
          %v733 = vpack.c.b16 %v692, %v691
          %v734 = vpack.c.b16 %v694, %v693
          %v735 = vpack.c.b16 %v696, %v695
          %v736 = vpack.c.b16 %v698, %v697
          %v737 = vpack.c.b16 %v700, %v699
          %v738 = vpack.c.b16 %v702, %v701
          %v739 = vpack.c.b16 %v704, %v703
          %v740 = vpack.c.b16 %v706, %v705
          %v741 = vpack.c.b16 %v708, %v707
          %v742 = vpack.c.b16 %v710, %v709
          %775 = vmatpush.bf16.xpose.msra.mxu0 %v718
          %776 = vmatpush.bf16.xpose.msra.mxu0 %v717
          %777 = vmatpush.bf16.xpose.msra.mxu0 %v716
          %778 = vmatpush.bf16.xpose.msra.mxu0 %v715
          %779 = vmatpush.bf16.xpose.msra.mxu0 %v714
          %780 = vmatpush.bf16.xpose.msra.mxu0 %v713
          %781 = vmatpush.bf16.xpose.msra.mxu0 %v712
          %782 = vmatpush.bf16.xpose.msra.mxu0 %v711
          %783 = vmatmul.bf16.gmra.mxu0 %v519
          %v784 = vpop.f32.mrf.mxu0
          %v785 = vadd.f32 0.0, %v784
          %v786 = vpop.f32.mrf.mxu0
          %v787 = vadd.f32 0.0, %v786
          %788 = vmatmul.bf16.gmra.mxu0 %v520
          %v789 = vpop.f32.mrf.mxu0
          %v790 = vadd.f32 0.0, %v789
          %v791 = vpop.f32.mrf.mxu0
          %v792 = vadd.f32 0.0, %v791
          %793 = vmatmul.bf16.gmra.mxu0 %v521
          %v794 = vpop.f32.mrf.mxu0
          %v795 = vadd.f32 0.0, %v794
          %v796 = vpop.f32.mrf.mxu0
          %v797 = vadd.f32 0.0, %v796
          %798 = vmatmul.bf16.gmra.mxu0 %v522
          %v799 = vpop.f32.mrf.mxu0
          %v800 = vadd.f32 0.0, %v799
          %v801 = vpop.f32.mrf.mxu0
          %v802 = vadd.f32 0.0, %v801
          %803 = vmatmul.bf16.gmra.mxu0 %v523
          %v804 = vpop.f32.mrf.mxu0
          %v805 = vadd.f32 0.0, %v804
          %v806 = vpop.f32.mrf.mxu0
          %v807 = vadd.f32 0.0, %v806
          %808 = vmatmul.bf16.gmra.mxu0 %v524
          %v809 = vpop.f32.mrf.mxu0
          %v810 = vadd.f32 0.0, %v809
          %v811 = vpop.f32.mrf.mxu0
          %v812 = vadd.f32 0.0, %v811
          %813 = vmatmul.bf16.gmra.mxu0 %v525
          %v814 = vpop.f32.mrf.mxu0
          %v815 = vadd.f32 0.0, %v814
          %v816 = vpop.f32.mrf.mxu0
          %v817 = vadd.f32 0.0, %v816
          %818 = vmatmul.bf16.gmra.mxu0 %v526
          %v819 = vpop.f32.mrf.mxu0
          %v820 = vadd.f32 0.0, %v819
          %v821 = vpop.f32.mrf.mxu0
          %v822 = vadd.f32 0.0, %v821
          %823 = vmatmul.bf16.gmra.mxu0 %v527
          %v824 = vpop.f32.mrf.mxu0
          %v825 = vadd.f32 0.0, %v824
          %v826 = vpop.f32.mrf.mxu0
          %v827 = vadd.f32 0.0, %v826
          %828 = vmatmul.bf16.gmra.mxu0 %v528
          %v829 = vpop.f32.mrf.mxu0
          %v830 = vadd.f32 0.0, %v829
          %v831 = vpop.f32.mrf.mxu0
          %v832 = vadd.f32 0.0, %v831
          %833 = vmatmul.bf16.gmra.mxu0 %v529
          %v834 = vpop.f32.mrf.mxu0
          %v835 = vadd.f32 0.0, %v834
          %v836 = vpop.f32.mrf.mxu0
          %v837 = vadd.f32 0.0, %v836
          %838 = vmatmul.bf16.gmra.mxu0 %v530
          %v839 = vpop.f32.mrf.mxu0
          %v840 = vadd.f32 0.0, %v839
          %v841 = vpop.f32.mrf.mxu0
          %v842 = vadd.f32 0.0, %v841
          %843 = vmatmul.bf16.gmra.mxu0 %v531
          %v844 = vpop.f32.mrf.mxu0
          %v845 = vadd.f32 0.0, %v844
          %v846 = vpop.f32.mrf.mxu0
          %v847 = vadd.f32 0.0, %v846
          %848 = vmatmul.bf16.gmra.mxu0 %v532
          %v849 = vpop.f32.mrf.mxu0
          %v850 = vadd.f32 0.0, %v849
          %v851 = vpop.f32.mrf.mxu0
          %v852 = vadd.f32 0.0, %v851
          %853 = vmatmul.bf16.gmra.mxu0 %v533
          %v854 = vpop.f32.mrf.mxu0
          %v855 = vadd.f32 0.0, %v854
          %v856 = vpop.f32.mrf.mxu0
          %v857 = vadd.f32 0.0, %v856
          %858 = vmatmul.bf16.gmra.mxu0 %v534
          %v859 = vpop.f32.mrf.mxu0
          %v860 = vadd.f32 0.0, %v859
          %v861 = vpop.f32.mrf.mxu0
          %v862 = vadd.f32 0.0, %v861
          %863 = vmatmul.bf16.gmra.mxu0 %v535
          %v864 = vpop.f32.mrf.mxu0
          %v865 = vadd.f32 0.0, %v864
          %v866 = vpop.f32.mrf.mxu0
          %v867 = vadd.f32 0.0, %v866
          %868 = vmatmul.bf16.gmra.mxu0 %v536
          %v869 = vpop.f32.mrf.mxu0
          %v870 = vadd.f32 0.0, %v869
          %v871 = vpop.f32.mrf.mxu0
          %v872 = vadd.f32 0.0, %v871
          %873 = vmatmul.bf16.gmra.mxu0 %v537
          %v874 = vpop.f32.mrf.mxu0
          %v875 = vadd.f32 0.0, %v874
          %v876 = vpop.f32.mrf.mxu0
          %v877 = vadd.f32 0.0, %v876
          %878 = vmatmul.bf16.gmra.mxu0 %v538
          %v879 = vpop.f32.mrf.mxu0
          %v880 = vadd.f32 0.0, %v879
          %v881 = vpop.f32.mrf.mxu0
          %v882 = vadd.f32 0.0, %v881
          %883 = vmatmul.bf16.gmra.mxu0 %v539
          %v884 = vpop.f32.mrf.mxu0
          %v885 = vadd.f32 0.0, %v884
          %v886 = vpop.f32.mrf.mxu0
          %v887 = vadd.f32 0.0, %v886
          %888 = vmatmul.bf16.gmra.mxu0 %v540
          %v889 = vpop.f32.mrf.mxu0
          %v890 = vadd.f32 0.0, %v889
          %v891 = vpop.f32.mrf.mxu0
          %v892 = vadd.f32 0.0, %v891
          %893 = vmatmul.bf16.gmra.mxu0 %v541
          %v894 = vpop.f32.mrf.mxu0
          %v895 = vadd.f32 0.0, %v894
          %v896 = vpop.f32.mrf.mxu0
          %v897 = vadd.f32 0.0, %v896
          %898 = vmatmul.bf16.gmra.mxu0 %v542
          %v899 = vpop.f32.mrf.mxu0
          %v900 = vadd.f32 0.0, %v899
          %v901 = vpop.f32.mrf.mxu0
          %v902 = vadd.f32 0.0, %v901
          %903 = vmatmul.bf16.gmra.mxu0 %v543
          %v904 = vpop.f32.mrf.mxu0
          %v905 = vadd.f32 0.0, %v904
          %v906 = vpop.f32.mrf.mxu0
          %v907 = vadd.f32 0.0, %v906
          %908 = vmatmul.bf16.gmra.mxu0 %v544
          %v909 = vpop.f32.mrf.mxu0
          %v910 = vadd.f32 0.0, %v909
          %v911 = vpop.f32.mrf.mxu0
          %v912 = vadd.f32 0.0, %v911
          %913 = vmatmul.bf16.gmra.mxu0 %v545
          %v914 = vpop.f32.mrf.mxu0
          %v915 = vadd.f32 0.0, %v914
          %v916 = vpop.f32.mrf.mxu0
          %v917 = vadd.f32 0.0, %v916
          %918 = vmatmul.bf16.gmra.mxu0 %v546
          %v919 = vpop.f32.mrf.mxu0
          %v920 = vadd.f32 0.0, %v919
          %v921 = vpop.f32.mrf.mxu0
          %v922 = vadd.f32 0.0, %v921
          %923 = vmatmul.bf16.gmra.mxu0 %v547
          %v924 = vpop.f32.mrf.mxu0
          %v925 = vadd.f32 0.0, %v924
          %v926 = vpop.f32.mrf.mxu0
          %v927 = vadd.f32 0.0, %v926
          %928 = vmatmul.bf16.gmra.mxu0 %v548
          %v929 = vpop.f32.mrf.mxu0
          %v930 = vadd.f32 0.0, %v929
          %v931 = vpop.f32.mrf.mxu0
          %v932 = vadd.f32 0.0, %v931
          %933 = vmatmul.bf16.gmra.mxu0 %v549
          %v934 = vpop.f32.mrf.mxu0
          %v935 = vadd.f32 0.0, %v934
          %v936 = vpop.f32.mrf.mxu0
          %v937 = vadd.f32 0.0, %v936
          %938 = vmatmul.bf16.gmra.mxu0 %v550
          %v939 = vpop.f32.mrf.mxu0
          %v940 = vadd.f32 0.0, %v939
          %v941 = vpop.f32.mrf.mxu0
          %v942 = vadd.f32 0.0, %v941
          %943 = vdwg.mxu0
          %944 = vmatpush.bf16.xpose.msra.mxu0 %v726
          %945 = vmatpush.bf16.xpose.msra.mxu0 %v725
          %946 = vmatpush.bf16.xpose.msra.mxu0 %v724
          %947 = vmatpush.bf16.xpose.msra.mxu0 %v723
          %948 = vmatpush.bf16.xpose.msra.mxu0 %v722
          %949 = vmatpush.bf16.xpose.msra.mxu0 %v721
          %950 = vmatpush.bf16.xpose.msra.mxu0 %v720
          %951 = vmatpush.bf16.xpose.msra.mxu0 %v719
          %952 = vmatmul.bf16.gmra.mxu0 %v519
          %v953 = vpop.f32.mrf.mxu0
          %v954 = vadd.f32 0.0, %v953
          %v955 = vpop.f32.mrf.mxu0
          %v956 = vadd.f32 0.0, %v955
          %957 = vmatmul.bf16.gmra.mxu0 %v520
          %v958 = vpop.f32.mrf.mxu0
          %v959 = vadd.f32 0.0, %v958
          %v960 = vpop.f32.mrf.mxu0
          %v961 = vadd.f32 0.0, %v960
          %962 = vmatmul.bf16.gmra.mxu0 %v521
          %v963 = vpop.f32.mrf.mxu0
          %v964 = vadd.f32 0.0, %v963
          %v965 = vpop.f32.mrf.mxu0
          %v966 = vadd.f32 0.0, %v965
          %967 = vmatmul.bf16.gmra.mxu0 %v522
          %v968 = vpop.f32.mrf.mxu0
          %v969 = vadd.f32 0.0, %v968
          %v970 = vpop.f32.mrf.mxu0
          %v971 = vadd.f32 0.0, %v970
          %972 = vmatmul.bf16.gmra.mxu0 %v523
          %v973 = vpop.f32.mrf.mxu0
          %v974 = vadd.f32 0.0, %v973
          %v975 = vpop.f32.mrf.mxu0
          %v976 = vadd.f32 0.0, %v975
          %977 = vmatmul.bf16.gmra.mxu0 %v524
          %v978 = vpop.f32.mrf.mxu0
          %v979 = vadd.f32 0.0, %v978
          %v980 = vpop.f32.mrf.mxu0
          %v981 = vadd.f32 0.0, %v980
          %982 = vmatmul.bf16.gmra.mxu0 %v525
          %v983 = vpop.f32.mrf.mxu0
          %v984 = vadd.f32 0.0, %v983
          %v985 = vpop.f32.mrf.mxu0
          %v986 = vadd.f32 0.0, %v985
          %987 = vmatmul.bf16.gmra.mxu0 %v526
          %v988 = vpop.f32.mrf.mxu0
          %v989 = vadd.f32 0.0, %v988
          %v990 = vpop.f32.mrf.mxu0
          %v991 = vadd.f32 0.0, %v990
          %992 = vmatmul.bf16.gmra.mxu0 %v527
          %v993 = vpop.f32.mrf.mxu0
          %v994 = vadd.f32 0.0, %v993
          %v995 = vpop.f32.mrf.mxu0
          %v996 = vadd.f32 0.0, %v995
          %997 = vmatmul.bf16.gmra.mxu0 %v528
          %v998 = vpop.f32.mrf.mxu0
          %v999 = vadd.f32 0.0, %v998
          %v1000 = vpop.f32.mrf.mxu0
          %v1001 = vadd.f32 0.0, %v1000
          %1002 = vmatmul.bf16.gmra.mxu0 %v529
          %v1003 = vpop.f32.mrf.mxu0
          %v1004 = vadd.f32 0.0, %v1003
          %v1005 = vpop.f32.mrf.mxu0
          %v1006 = vadd.f32 0.0, %v1005
          %1007 = vmatmul.bf16.gmra.mxu0 %v530
          %v1008 = vpop.f32.mrf.mxu0
          %v1009 = vadd.f32 0.0, %v1008
          %v1010 = vpop.f32.mrf.mxu0
          %v1011 = vadd.f32 0.0, %v1010
          %1012 = vmatmul.bf16.gmra.mxu0 %v531
          %v1013 = vpop.f32.mrf.mxu0
          %v1014 = vadd.f32 0.0, %v1013
          %v1015 = vpop.f32.mrf.mxu0
          %v1016 = vadd.f32 0.0, %v1015
          %1017 = vmatmul.bf16.gmra.mxu0 %v532
          %v1018 = vpop.f32.mrf.mxu0
          %v1019 = vadd.f32 0.0, %v1018
          %v1020 = vpop.f32.mrf.mxu0
          %v1021 = vadd.f32 0.0, %v1020
          %1022 = vmatmul.bf16.gmra.mxu0 %v533
          %v1023 = vpop.f32.mrf.mxu0
          %v1024 = vadd.f32 0.0, %v1023
          %v1025 = vpop.f32.mrf.mxu0
          %v1026 = vadd.f32 0.0, %v1025
          %1027 = vmatmul.bf16.gmra.mxu0 %v534
          %v1028 = vpop.f32.mrf.mxu0
          %v1029 = vadd.f32 0.0, %v1028
          %v1030 = vpop.f32.mrf.mxu0
          %v1031 = vadd.f32 0.0, %v1030
          %1032 = vmatmul.bf16.gmra.mxu0 %v535
          %v1033 = vpop.f32.mrf.mxu0
          %v1034 = vadd.f32 0.0, %v1033
          %v1035 = vpop.f32.mrf.mxu0
          %v1036 = vadd.f32 0.0, %v1035
          %1037 = vmatmul.bf16.gmra.mxu0 %v536
          %v1038 = vpop.f32.mrf.mxu0
          %v1039 = vadd.f32 0.0, %v1038
          %v1040 = vpop.f32.mrf.mxu0
          %v1041 = vadd.f32 0.0, %v1040
          %1042 = vmatmul.bf16.gmra.mxu0 %v537
          %v1043 = vpop.f32.mrf.mxu0
          %v1044 = vadd.f32 0.0, %v1043
          %v1045 = vpop.f32.mrf.mxu0
          %v1046 = vadd.f32 0.0, %v1045
          %1047 = vmatmul.bf16.gmra.mxu0 %v538
          %v1048 = vpop.f32.mrf.mxu0
          %v1049 = vadd.f32 0.0, %v1048
          %v1050 = vpop.f32.mrf.mxu0
          %v1051 = vadd.f32 0.0, %v1050
          %1052 = vmatmul.bf16.gmra.mxu0 %v539
          %v1053 = vpop.f32.mrf.mxu0
          %v1054 = vadd.f32 0.0, %v1053
          %v1055 = vpop.f32.mrf.mxu0
          %v1056 = vadd.f32 0.0, %v1055
          %1057 = vmatmul.bf16.gmra.mxu0 %v540
          %v1058 = vpop.f32.mrf.mxu0
          %v1059 = vadd.f32 0.0, %v1058
          %v1060 = vpop.f32.mrf.mxu0
          %v1061 = vadd.f32 0.0, %v1060
          %1062 = vmatmul.bf16.gmra.mxu0 %v541
          %v1063 = vpop.f32.mrf.mxu0
          %v1064 = vadd.f32 0.0, %v1063
          %v1065 = vpop.f32.mrf.mxu0
          %v1066 = vadd.f32 0.0, %v1065
          %1067 = vmatmul.bf16.gmra.mxu0 %v542
          %v1068 = vpop.f32.mrf.mxu0
          %v1069 = vadd.f32 0.0, %v1068
          %v1070 = vpop.f32.mrf.mxu0
          %v1071 = vadd.f32 0.0, %v1070
          %1072 = vmatmul.bf16.gmra.mxu0 %v543
          %v1073 = vpop.f32.mrf.mxu0
          %v1074 = vadd.f32 0.0, %v1073
          %v1075 = vpop.f32.mrf.mxu0
          %v1076 = vadd.f32 0.0, %v1075
          %1077 = vmatmul.bf16.gmra.mxu0 %v544
          %v1078 = vpop.f32.mrf.mxu0
          %v1079 = vadd.f32 0.0, %v1078
          %v1080 = vpop.f32.mrf.mxu0
          %v1081 = vadd.f32 0.0, %v1080
          %1082 = vmatmul.bf16.gmra.mxu0 %v545
          %v1083 = vpop.f32.mrf.mxu0
          %v1084 = vadd.f32 0.0, %v1083
          %v1085 = vpop.f32.mrf.mxu0
          %v1086 = vadd.f32 0.0, %v1085
          %1087 = vmatmul.bf16.gmra.mxu0 %v546
          %v1088 = vpop.f32.mrf.mxu0
          %v1089 = vadd.f32 0.0, %v1088
          %v1090 = vpop.f32.mrf.mxu0
          %v1091 = vadd.f32 0.0, %v1090
          %1092 = vmatmul.bf16.gmra.mxu0 %v547
          %v1093 = vpop.f32.mrf.mxu0
          %v1094 = vadd.f32 0.0, %v1093
          %v1095 = vpop.f32.mrf.mxu0
          %v1096 = vadd.f32 0.0, %v1095
          %1097 = vmatmul.bf16.gmra.mxu0 %v548
          %v1098 = vpop.f32.mrf.mxu0
          %v1099 = vadd.f32 0.0, %v1098
          %v1100 = vpop.f32.mrf.mxu0
          %v1101 = vadd.f32 0.0, %v1100
          %1102 = vmatmul.bf16.gmra.mxu0 %v549
          %v1103 = vpop.f32.mrf.mxu0
          %v1104 = vadd.f32 0.0, %v1103
          %v1105 = vpop.f32.mrf.mxu0
          %v1106 = vadd.f32 0.0, %v1105
          %1107 = vmatmul.bf16.gmra.mxu0 %v550
          %v1108 = vpop.f32.mrf.mxu0
          %v1109 = vadd.f32 0.0, %v1108
          %v1110 = vpop.f32.mrf.mxu0
          %v1111 = vadd.f32 0.0, %v1110
          %1112 = vdwg.mxu0
          %1113 = vmatpush.bf16.xpose.msra.mxu0 %v734
          %1114 = vmatpush.bf16.xpose.msra.mxu0 %v733
          %1115 = vmatpush.bf16.xpose.msra.mxu0 %v732
          %1116 = vmatpush.bf16.xpose.msra.mxu0 %v731
          %1117 = vmatpush.bf16.xpose.msra.mxu0 %v730
          %1118 = vmatpush.bf16.xpose.msra.mxu0 %v729
          %1119 = vmatpush.bf16.xpose.msra.mxu0 %v728
          %1120 = vmatpush.bf16.xpose.msra.mxu0 %v727
          %1121 = vmatmul.bf16.gmra.mxu0 %v519
          %v1122 = vpop.f32.mrf.mxu0
          %v1123 = vadd.f32 0.0, %v1122
          %v1124 = vpop.f32.mrf.mxu0
          %v1125 = vadd.f32 0.0, %v1124
          %1126 = vmatmul.bf16.gmra.mxu0 %v520
          %v1127 = vpop.f32.mrf.mxu0
          %v1128 = vadd.f32 0.0, %v1127
          %v1129 = vpop.f32.mrf.mxu0
          %v1130 = vadd.f32 0.0, %v1129
          %1131 = vmatmul.bf16.gmra.mxu0 %v521
          %v1132 = vpop.f32.mrf.mxu0
          %v1133 = vadd.f32 0.0, %v1132
          %v1134 = vpop.f32.mrf.mxu0
          %v1135 = vadd.f32 0.0, %v1134
          %1136 = vmatmul.bf16.gmra.mxu0 %v522
          %v1137 = vpop.f32.mrf.mxu0
          %v1138 = vadd.f32 0.0, %v1137
          %v1139 = vpop.f32.mrf.mxu0
          %v1140 = vadd.f32 0.0, %v1139
          %1141 = vmatmul.bf16.gmra.mxu0 %v523
          %v1142 = vpop.f32.mrf.mxu0
          %v1143 = vadd.f32 0.0, %v1142
          %v1144 = vpop.f32.mrf.mxu0
          %v1145 = vadd.f32 0.0, %v1144
          %1146 = vmatmul.bf16.gmra.mxu0 %v524
          %v1147 = vpop.f32.mrf.mxu0
          %v1148 = vadd.f32 0.0, %v1147
          %v1149 = vpop.f32.mrf.mxu0
          %v1150 = vadd.f32 0.0, %v1149
          %1151 = vmatmul.bf16.gmra.mxu0 %v525
          %v1152 = vpop.f32.mrf.mxu0
          %v1153 = vadd.f32 0.0, %v1152
          %v1154 = vpop.f32.mrf.mxu0
          %v1155 = vadd.f32 0.0, %v1154
          %1156 = vmatmul.bf16.gmra.mxu0 %v526
          %v1157 = vpop.f32.mrf.mxu0
          %v1158 = vadd.f32 0.0, %v1157
          %v1159 = vpop.f32.mrf.mxu0
          %v1160 = vadd.f32 0.0, %v1159
          %1161 = vmatmul.bf16.gmra.mxu0 %v527
          %v1162 = vpop.f32.mrf.mxu0
          %v1163 = vadd.f32 0.0, %v1162
          %v1164 = vpop.f32.mrf.mxu0
          %v1165 = vadd.f32 0.0, %v1164
          %1166 = vmatmul.bf16.gmra.mxu0 %v528
          %v1167 = vpop.f32.mrf.mxu0
          %v1168 = vadd.f32 0.0, %v1167
          %v1169 = vpop.f32.mrf.mxu0
          %v1170 = vadd.f32 0.0, %v1169
          %1171 = vmatmul.bf16.gmra.mxu0 %v529
          %v1172 = vpop.f32.mrf.mxu0
          %v1173 = vadd.f32 0.0, %v1172
          %v1174 = vpop.f32.mrf.mxu0
          %v1175 = vadd.f32 0.0, %v1174
          %1176 = vmatmul.bf16.gmra.mxu0 %v530
          %v1177 = vpop.f32.mrf.mxu0
          %v1178 = vadd.f32 0.0, %v1177
          %v1179 = vpop.f32.mrf.mxu0
          %v1180 = vadd.f32 0.0, %v1179
          %1181 = vmatmul.bf16.gmra.mxu0 %v531
          %v1182 = vpop.f32.mrf.mxu0
          %v1183 = vadd.f32 0.0, %v1182
          %v1184 = vpop.f32.mrf.mxu0
          %v1185 = vadd.f32 0.0, %v1184
          %1186 = vmatmul.bf16.gmra.mxu0 %v532
          %v1187 = vpop.f32.mrf.mxu0
          %v1188 = vadd.f32 0.0, %v1187
          %v1189 = vpop.f32.mrf.mxu0
          %v1190 = vadd.f32 0.0, %v1189
          %1191 = vmatmul.bf16.gmra.mxu0 %v533
          %v1192 = vpop.f32.mrf.mxu0
          %v1193 = vadd.f32 0.0, %v1192
          %v1194 = vpop.f32.mrf.mxu0
          %v1195 = vadd.f32 0.0, %v1194
          %1196 = vmatmul.bf16.gmra.mxu0 %v534
          %v1197 = vpop.f32.mrf.mxu0
          %v1198 = vadd.f32 0.0, %v1197
          %v1199 = vpop.f32.mrf.mxu0
          %v1200 = vadd.f32 0.0, %v1199
          %1201 = vmatmul.bf16.gmra.mxu0 %v535
          %v1202 = vpop.f32.mrf.mxu0
          %v1203 = vadd.f32 0.0, %v1202
          %v1204 = vpop.f32.mrf.mxu0
          %v1205 = vadd.f32 0.0, %v1204
          %1206 = vmatmul.bf16.gmra.mxu0 %v536
          %v1207 = vpop.f32.mrf.mxu0
          %v1208 = vadd.f32 0.0, %v1207
          %v1209 = vpop.f32.mrf.mxu0
          %v1210 = vadd.f32 0.0, %v1209
          %1211 = vmatmul.bf16.gmra.mxu0 %v537
          %v1212 = vpop.f32.mrf.mxu0
          %v1213 = vadd.f32 0.0, %v1212
          %v1214 = vpop.f32.mrf.mxu0
          %v1215 = vadd.f32 0.0, %v1214
          %1216 = vmatmul.bf16.gmra.mxu0 %v538
          %v1217 = vpop.f32.mrf.mxu0
          %v1218 = vadd.f32 0.0, %v1217
          %v1219 = vpop.f32.mrf.mxu0
          %v1220 = vadd.f32 0.0, %v1219
          %1221 = vmatmul.bf16.gmra.mxu0 %v539
          %v1222 = vpop.f32.mrf.mxu0
          %v1223 = vadd.f32 0.0, %v1222
          %v1224 = vpop.f32.mrf.mxu0
          %v1225 = vadd.f32 0.0, %v1224
          %1226 = vmatmul.bf16.gmra.mxu0 %v540
          %v1227 = vpop.f32.mrf.mxu0
          %v1228 = vadd.f32 0.0, %v1227
          %v1229 = vpop.f32.mrf.mxu0
          %v1230 = vadd.f32 0.0, %v1229
          %1231 = vmatmul.bf16.gmra.mxu0 %v541
          %v1232 = vpop.f32.mrf.mxu0
          %v1233 = vadd.f32 0.0, %v1232
          %v1234 = vpop.f32.mrf.mxu0
          %v1235 = vadd.f32 0.0, %v1234
          %1236 = vmatmul.bf16.gmra.mxu0 %v542
          %v1237 = vpop.f32.mrf.mxu0
          %v1238 = vadd.f32 0.0, %v1237
          %v1239 = vpop.f32.mrf.mxu0
          %v1240 = vadd.f32 0.0, %v1239
          %1241 = vmatmul.bf16.gmra.mxu0 %v543
          %v1242 = vpop.f32.mrf.mxu0
          %v1243 = vadd.f32 0.0, %v1242
          %v1244 = vpop.f32.mrf.mxu0
          %v1245 = vadd.f32 0.0, %v1244
          %1246 = vmatmul.bf16.gmra.mxu0 %v544
          %v1247 = vpop.f32.mrf.mxu0
          %v1248 = vadd.f32 0.0, %v1247
          %v1249 = vpop.f32.mrf.mxu0
          %v1250 = vadd.f32 0.0, %v1249
          %1251 = vmatmul.bf16.gmra.mxu0 %v545
          %v1252 = vpop.f32.mrf.mxu0
          %v1253 = vadd.f32 0.0, %v1252
          %v1254 = vpop.f32.mrf.mxu0
          %v1255 = vadd.f32 0.0, %v1254
          %1256 = vmatmul.bf16.gmra.mxu0 %v546
          %v1257 = vpop.f32.mrf.mxu0
          %v1258 = vadd.f32 0.0, %v1257
          %v1259 = vpop.f32.mrf.mxu0
          %v1260 = vadd.f32 0.0, %v1259
          %1261 = vmatmul.bf16.gmra.mxu0 %v547
          %v1262 = vpop.f32.mrf.mxu0
          %v1263 = vadd.f32 0.0, %v1262
          %v1264 = vpop.f32.mrf.mxu0
          %v1265 = vadd.f32 0.0, %v1264
          %1266 = vmatmul.bf16.gmra.mxu0 %v548
          %v1267 = vpop.f32.mrf.mxu0
          %v1268 = vadd.f32 0.0, %v1267
          %v1269 = vpop.f32.mrf.mxu0
          %v1270 = vadd.f32 0.0, %v1269
          %1271 = vmatmul.bf16.gmra.mxu0 %v549
          %v1272 = vpop.f32.mrf.mxu0
          %v1273 = vadd.f32 0.0, %v1272
          %v1274 = vpop.f32.mrf.mxu0
          %v1275 = vadd.f32 0.0, %v1274
          %1276 = vmatmul.bf16.gmra.mxu0 %v550
          %v1277 = vpop.f32.mrf.mxu0
          %v1278 = vadd.f32 0.0, %v1277
          %v1279 = vpop.f32.mrf.mxu0
          %v1280 = vadd.f32 0.0, %v1279
          %1281 = vdwg.mxu0
          %1282 = vmatpush.bf16.xpose.msra.mxu0 %v742
          %1283 = vmatpush.bf16.xpose.msra.mxu0 %v741
          %1284 = vmatpush.bf16.xpose.msra.mxu0 %v740
          %1285 = vmatpush.bf16.xpose.msra.mxu0 %v739
          %1286 = vmatpush.bf16.xpose.msra.mxu0 %v738
          %1287 = vmatpush.bf16.xpose.msra.mxu0 %v737
          %1288 = vmatpush.bf16.xpose.msra.mxu0 %v736
          %1289 = vmatpush.bf16.xpose.msra.mxu0 %v735
          %1290 = vmatmul.bf16.gmra.mxu0 %v519
          %v1291 = vpop.f32.mrf.mxu0
          %v1292 = vadd.f32 0.0, %v1291
          %v1293 = vpop.f32.mrf.mxu0
          %v1294 = vadd.f32 0.0, %v1293
          %1295 = vmatmul.bf16.gmra.mxu0 %v520
          %v1296 = vpop.f32.mrf.mxu0
          %v1297 = vadd.f32 0.0, %v1296
          %v1298 = vpop.f32.mrf.mxu0
          %v1299 = vadd.f32 0.0, %v1298
          %1300 = vmatmul.bf16.gmra.mxu0 %v521
          %v1301 = vpop.f32.mrf.mxu0
          %v1302 = vadd.f32 0.0, %v1301
          %v1303 = vpop.f32.mrf.mxu0
          %v1304 = vadd.f32 0.0, %v1303
          %1305 = vmatmul.bf16.gmra.mxu0 %v522
          %v1306 = vpop.f32.mrf.mxu0
          %v1307 = vadd.f32 0.0, %v1306
          %v1308 = vpop.f32.mrf.mxu0
          %v1309 = vadd.f32 0.0, %v1308
          %1310 = vmatmul.bf16.gmra.mxu0 %v523
          %v1311 = vpop.f32.mrf.mxu0
          %v1312 = vadd.f32 0.0, %v1311
          %v1313 = vpop.f32.mrf.mxu0
          %v1314 = vadd.f32 0.0, %v1313
          %1315 = vmatmul.bf16.gmra.mxu0 %v524
          %v1316 = vpop.f32.mrf.mxu0
          %v1317 = vadd.f32 0.0, %v1316
          %v1318 = vpop.f32.mrf.mxu0
          %v1319 = vadd.f32 0.0, %v1318
          %1320 = vmatmul.bf16.gmra.mxu0 %v525
          %v1321 = vpop.f32.mrf.mxu0
          %v1322 = vadd.f32 0.0, %v1321
          %v1323 = vpop.f32.mrf.mxu0
          %v1324 = vadd.f32 0.0, %v1323
          %1325 = vmatmul.bf16.gmra.mxu0 %v526
          %v1326 = vpop.f32.mrf.mxu0
          %v1327 = vadd.f32 0.0, %v1326
          %v1328 = vpop.f32.mrf.mxu0
          %v1329 = vadd.f32 0.0, %v1328
          %1330 = vmatmul.bf16.gmra.mxu0 %v527
          %v1331 = vpop.f32.mrf.mxu0
          %v1332 = vadd.f32 0.0, %v1331
          %v1333 = vpop.f32.mrf.mxu0
          %v1334 = vadd.f32 0.0, %v1333
          %1335 = vmatmul.bf16.gmra.mxu0 %v528
          %v1336 = vpop.f32.mrf.mxu0
          %v1337 = vadd.f32 0.0, %v1336
          %v1338 = vpop.f32.mrf.mxu0
          %v1339 = vadd.f32 0.0, %v1338
          %1340 = vmatmul.bf16.gmra.mxu0 %v529
          %v1341 = vpop.f32.mrf.mxu0
          %v1342 = vadd.f32 0.0, %v1341
          %v1343 = vpop.f32.mrf.mxu0
          %v1344 = vadd.f32 0.0, %v1343
          %1345 = vmatmul.bf16.gmra.mxu0 %v530
          %v1346 = vpop.f32.mrf.mxu0
          %v1347 = vadd.f32 0.0, %v1346
          %v1348 = vpop.f32.mrf.mxu0
          %v1349 = vadd.f32 0.0, %v1348
          %1350 = vmatmul.bf16.gmra.mxu0 %v531
          %v1351 = vpop.f32.mrf.mxu0
          %v1352 = vadd.f32 0.0, %v1351
          %v1353 = vpop.f32.mrf.mxu0
          %v1354 = vadd.f32 0.0, %v1353
          %1355 = vmatmul.bf16.gmra.mxu0 %v532
          %v1356 = vpop.f32.mrf.mxu0
          %v1357 = vadd.f32 0.0, %v1356
          %v1358 = vpop.f32.mrf.mxu0
          %v1359 = vadd.f32 0.0, %v1358
          %1360 = vmatmul.bf16.gmra.mxu0 %v533
          %v1361 = vpop.f32.mrf.mxu0
          %v1362 = vadd.f32 0.0, %v1361
          %v1363 = vpop.f32.mrf.mxu0
          %v1364 = vadd.f32 0.0, %v1363
          %1365 = vmatmul.bf16.gmra.mxu0 %v534
          %v1366 = vpop.f32.mrf.mxu0
          %v1367 = vadd.f32 0.0, %v1366
          %v1368 = vpop.f32.mrf.mxu0
          %v1369 = vadd.f32 0.0, %v1368
          %1370 = vmatmul.bf16.gmra.mxu0 %v535
          %v1371 = vpop.f32.mrf.mxu0
          %v1372 = vadd.f32 0.0, %v1371
          %v1373 = vpop.f32.mrf.mxu0
          %v1374 = vadd.f32 0.0, %v1373
          %1375 = vmatmul.bf16.gmra.mxu0 %v536
          %v1376 = vpop.f32.mrf.mxu0
          %v1377 = vadd.f32 0.0, %v1376
          %v1378 = vpop.f32.mrf.mxu0
          %v1379 = vadd.f32 0.0, %v1378
          %1380 = vmatmul.bf16.gmra.mxu0 %v537
          %v1381 = vpop.f32.mrf.mxu0
          %v1382 = vadd.f32 0.0, %v1381
          %v1383 = vpop.f32.mrf.mxu0
          %v1384 = vadd.f32 0.0, %v1383
          %1385 = vmatmul.bf16.gmra.mxu0 %v538
          %v1386 = vpop.f32.mrf.mxu0
          %v1387 = vadd.f32 0.0, %v1386
          %v1388 = vpop.f32.mrf.mxu0
          %v1389 = vadd.f32 0.0, %v1388
          %1390 = vmatmul.bf16.gmra.mxu0 %v539
          %v1391 = vpop.f32.mrf.mxu0
          %v1392 = vadd.f32 0.0, %v1391
          %v1393 = vpop.f32.mrf.mxu0
          %v1394 = vadd.f32 0.0, %v1393
          %1395 = vmatmul.bf16.gmra.mxu0 %v540
          %v1396 = vpop.f32.mrf.mxu0
          %v1397 = vadd.f32 0.0, %v1396
          %v1398 = vpop.f32.mrf.mxu0
          %v1399 = vadd.f32 0.0, %v1398
          %1400 = vmatmul.bf16.gmra.mxu0 %v541
          %v1401 = vpop.f32.mrf.mxu0
          %v1402 = vadd.f32 0.0, %v1401
          %v1403 = vpop.f32.mrf.mxu0
          %v1404 = vadd.f32 0.0, %v1403
          %1405 = vmatmul.bf16.gmra.mxu0 %v542
          %v1406 = vpop.f32.mrf.mxu0
          %v1407 = vadd.f32 0.0, %v1406
          %v1408 = vpop.f32.mrf.mxu0
          %v1409 = vadd.f32 0.0, %v1408
          %1410 = vmatmul.bf16.gmra.mxu0 %v543
          %v1411 = vpop.f32.mrf.mxu0
          %v1412 = vadd.f32 0.0, %v1411
          %v1413 = vpop.f32.mrf.mxu0
          %v1414 = vadd.f32 0.0, %v1413
          %1415 = vmatmul.bf16.gmra.mxu0 %v544
          %v1416 = vpop.f32.mrf.mxu0
          %v1417 = vadd.f32 0.0, %v1416
          %v1418 = vpop.f32.mrf.mxu0
          %v1419 = vadd.f32 0.0, %v1418
          %1420 = vmatmul.bf16.gmra.mxu0 %v545
          %v1421 = vpop.f32.mrf.mxu0
          %v1422 = vadd.f32 0.0, %v1421
          %v1423 = vpop.f32.mrf.mxu0
          %v1424 = vadd.f32 0.0, %v1423
          %1425 = vmatmul.bf16.gmra.mxu0 %v546
          %v1426 = vpop.f32.mrf.mxu0
          %v1427 = vadd.f32 0.0, %v1426
          %v1428 = vpop.f32.mrf.mxu0
          %v1429 = vadd.f32 0.0, %v1428
          %1430 = vmatmul.bf16.gmra.mxu0 %v547
          %v1431 = vpop.f32.mrf.mxu0
          %v1432 = vadd.f32 0.0, %v1431
          %v1433 = vpop.f32.mrf.mxu0
          %v1434 = vadd.f32 0.0, %v1433
          %1435 = vmatmul.bf16.gmra.mxu0 %v548
          %v1436 = vpop.f32.mrf.mxu0
          %v1437 = vadd.f32 0.0, %v1436
          %v1438 = vpop.f32.mrf.mxu0
          %v1439 = vadd.f32 0.0, %v1438
          %1440 = vmatmul.bf16.gmra.mxu0 %v549
          %v1441 = vpop.f32.mrf.mxu0
          %v1442 = vadd.f32 0.0, %v1441
          %v1443 = vpop.f32.mrf.mxu0
          %v1444 = vadd.f32 0.0, %v1443
          %1445 = vmatmul.bf16.gmra.mxu0 %v550
          %v1446 = vpop.f32.mrf.mxu0
          %v1447 = vadd.f32 0.0, %v1446
          %v1448 = vpop.f32.mrf.mxu0
          %v1449 = vadd.f32 0.0, %v1448
          %1450 = vdwg.mxu0
          %v1451 = vmax.f32 %v785, %v954
          %v1452 = vmax.f32 %v1451, %v1123
          %v1453 = vmax.f32 %v1452, %v1292
          %1454 = vmax.xlane.f32.xlu0 %v1453
          %v1455 = vpop.xlane.xlu0 %1454
          %v1456 = vmax.f32 %v787, %v956
          %v1457 = vmax.f32 %v1456, %v1125
          %v1458 = vmax.f32 %v1457, %v1294
          %1459 = vmax.xlane.f32.xlu0 %v1458
          %v1460 = vpop.xlane.xlu0 %1459
          %v1461 = vmax.f32 %v790, %v959
          %v1462 = vmax.f32 %v1461, %v1128
          %v1463 = vmax.f32 %v1462, %v1297
          %1464 = vmax.xlane.f32.xlu0 %v1463
          %v1465 = vpop.xlane.xlu0 %1464
          %v1466 = vmax.f32 %v792, %v961
          %v1467 = vmax.f32 %v1466, %v1130
          %v1468 = vmax.f32 %v1467, %v1299
          %1469 = vmax.xlane.f32.xlu0 %v1468
          %v1470 = vpop.xlane.xlu0 %1469
          %v1471 = vmax.f32 %v795, %v964
          %v1472 = vmax.f32 %v1471, %v1133
          %v1473 = vmax.f32 %v1472, %v1302
          %1474 = vmax.xlane.f32.xlu0 %v1473
          %v1475 = vpop.xlane.xlu0 %1474
          %v1476 = vmax.f32 %v797, %v966
          %v1477 = vmax.f32 %v1476, %v1135
          %v1478 = vmax.f32 %v1477, %v1304
          %1479 = vmax.xlane.f32.xlu0 %v1478
          %v1480 = vpop.xlane.xlu0 %1479
          %v1481 = vmax.f32 %v800, %v969
          %v1482 = vmax.f32 %v1481, %v1138
          %v1483 = vmax.f32 %v1482, %v1307
          %1484 = vmax.xlane.f32.xlu0 %v1483
          %v1485 = vpop.xlane.xlu0 %1484
          %v1486 = vmax.f32 %v802, %v971
          %v1487 = vmax.f32 %v1486, %v1140
          %v1488 = vmax.f32 %v1487, %v1309
          %1489 = vmax.xlane.f32.xlu0 %v1488
          %v1490 = vpop.xlane.xlu0 %1489
          %v1491 = vmax.f32 %v805, %v974
          %v1492 = vmax.f32 %v1491, %v1143
          %v1493 = vmax.f32 %v1492, %v1312
          %1494 = vmax.xlane.f32.xlu0 %v1493
          %v1495 = vpop.xlane.xlu0 %1494
          %v1496 = vmax.f32 %v807, %v976
          %v1497 = vmax.f32 %v1496, %v1145
          %v1498 = vmax.f32 %v1497, %v1314
          %1499 = vmax.xlane.f32.xlu0 %v1498
          %v1500 = vpop.xlane.xlu0 %1499
          %v1501 = vmax.f32 %v810, %v979
          %v1502 = vmax.f32 %v1501, %v1148
          %v1503 = vmax.f32 %v1502, %v1317
          %1504 = vmax.xlane.f32.xlu0 %v1503
          %v1505 = vpop.xlane.xlu0 %1504
          %v1506 = vmax.f32 %v812, %v981
          %v1507 = vmax.f32 %v1506, %v1150
          %v1508 = vmax.f32 %v1507, %v1319
          %1509 = vmax.xlane.f32.xlu0 %v1508
          %v1510 = vpop.xlane.xlu0 %1509
          %v1511 = vmax.f32 %v815, %v984
          %v1512 = vmax.f32 %v1511, %v1153
          %v1513 = vmax.f32 %v1512, %v1322
          %1514 = vmax.xlane.f32.xlu0 %v1513
          %v1515 = vpop.xlane.xlu0 %1514
          %v1516 = vmax.f32 %v817, %v986
          %v1517 = vmax.f32 %v1516, %v1155
          %v1518 = vmax.f32 %v1517, %v1324
          %1519 = vmax.xlane.f32.xlu0 %v1518
          %v1520 = vpop.xlane.xlu0 %1519
          %v1521 = vmax.f32 %v820, %v989
          %v1522 = vmax.f32 %v1521, %v1158
          %v1523 = vmax.f32 %v1522, %v1327
          %1524 = vmax.xlane.f32.xlu0 %v1523
          %v1525 = vpop.xlane.xlu0 %1524
          %v1526 = vmax.f32 %v822, %v991
          %v1527 = vmax.f32 %v1526, %v1160
          %v1528 = vmax.f32 %v1527, %v1329
          %1529 = vmax.xlane.f32.xlu0 %v1528
          %v1530 = vpop.xlane.xlu0 %1529
          %v1531 = vmax.f32 %v825, %v994
          %v1532 = vmax.f32 %v1531, %v1163
          %v1533 = vmax.f32 %v1532, %v1332
          %1534 = vmax.xlane.f32.xlu0 %v1533
          %v1535 = vpop.xlane.xlu0 %1534
          %v1536 = vmax.f32 %v827, %v996
          %v1537 = vmax.f32 %v1536, %v1165
          %v1538 = vmax.f32 %v1537, %v1334
          %1539 = vmax.xlane.f32.xlu0 %v1538
          %v1540 = vpop.xlane.xlu0 %1539
          %v1541 = vmax.f32 %v830, %v999
          %v1542 = vmax.f32 %v1541, %v1168
          %v1543 = vmax.f32 %v1542, %v1337
          %1544 = vmax.xlane.f32.xlu0 %v1543
          %v1545 = vpop.xlane.xlu0 %1544
          %v1546 = vmax.f32 %v832, %v1001
          %v1547 = vmax.f32 %v1546, %v1170
          %v1548 = vmax.f32 %v1547, %v1339
          %1549 = vmax.xlane.f32.xlu0 %v1548
          %v1550 = vpop.xlane.xlu0 %1549
          %v1551 = vmax.f32 %v835, %v1004
          %v1552 = vmax.f32 %v1551, %v1173
          %v1553 = vmax.f32 %v1552, %v1342
          %1554 = vmax.xlane.f32.xlu0 %v1553
          %v1555 = vpop.xlane.xlu0 %1554
          %v1556 = vmax.f32 %v837, %v1006
          %v1557 = vmax.f32 %v1556, %v1175
          %v1558 = vmax.f32 %v1557, %v1344
          %1559 = vmax.xlane.f32.xlu0 %v1558
          %v1560 = vpop.xlane.xlu0 %1559
          %v1561 = vmax.f32 %v840, %v1009
          %v1562 = vmax.f32 %v1561, %v1178
          %v1563 = vmax.f32 %v1562, %v1347
          %1564 = vmax.xlane.f32.xlu0 %v1563
          %v1565 = vpop.xlane.xlu0 %1564
          %v1566 = vmax.f32 %v842, %v1011
          %v1567 = vmax.f32 %v1566, %v1180
          %v1568 = vmax.f32 %v1567, %v1349
          %1569 = vmax.xlane.f32.xlu0 %v1568
          %v1570 = vpop.xlane.xlu0 %1569
          %v1571 = vmax.f32 %v845, %v1014
          %v1572 = vmax.f32 %v1571, %v1183
          %v1573 = vmax.f32 %v1572, %v1352
          %1574 = vmax.xlane.f32.xlu0 %v1573
          %v1575 = vpop.xlane.xlu0 %1574
          %v1576 = vmax.f32 %v847, %v1016
          %v1577 = vmax.f32 %v1576, %v1185
          %v1578 = vmax.f32 %v1577, %v1354
          %1579 = vmax.xlane.f32.xlu0 %v1578
          %v1580 = vpop.xlane.xlu0 %1579
          %v1581 = vmax.f32 %v850, %v1019
          %v1582 = vmax.f32 %v1581, %v1188
          %v1583 = vmax.f32 %v1582, %v1357
          %1584 = vmax.xlane.f32.xlu0 %v1583
          %v1585 = vpop.xlane.xlu0 %1584
          %v1586 = vmax.f32 %v852, %v1021
          %v1587 = vmax.f32 %v1586, %v1190
          %v1588 = vmax.f32 %v1587, %v1359
          %1589 = vmax.xlane.f32.xlu0 %v1588
          %v1590 = vpop.xlane.xlu0 %1589
          %v1591 = vmax.f32 %v855, %v1024
          %v1592 = vmax.f32 %v1591, %v1193
          %v1593 = vmax.f32 %v1592, %v1362
          %1594 = vmax.xlane.f32.xlu0 %v1593
          %v1595 = vpop.xlane.xlu0 %1594
          %v1596 = vmax.f32 %v857, %v1026
          %v1597 = vmax.f32 %v1596, %v1195
          %v1598 = vmax.f32 %v1597, %v1364
          %1599 = vmax.xlane.f32.xlu0 %v1598
          %v1600 = vpop.xlane.xlu0 %1599
          %v1601 = vmax.f32 %v860, %v1029
          %v1602 = vmax.f32 %v1601, %v1198
          %v1603 = vmax.f32 %v1602, %v1367
          %1604 = vmax.xlane.f32.xlu0 %v1603
          %v1605 = vpop.xlane.xlu0 %1604
          %v1606 = vmax.f32 %v862, %v1031
          %v1607 = vmax.f32 %v1606, %v1200
          %v1608 = vmax.f32 %v1607, %v1369
          %1609 = vmax.xlane.f32.xlu0 %v1608
          %v1610 = vpop.xlane.xlu0 %1609
          %v1611 = vmax.f32 %v865, %v1034
          %v1612 = vmax.f32 %v1611, %v1203
          %v1613 = vmax.f32 %v1612, %v1372
          %1614 = vmax.xlane.f32.xlu0 %v1613
          %v1615 = vpop.xlane.xlu0 %1614
          %v1616 = vmax.f32 %v867, %v1036
          %v1617 = vmax.f32 %v1616, %v1205
          %v1618 = vmax.f32 %v1617, %v1374
          %1619 = vmax.xlane.f32.xlu0 %v1618
          %v1620 = vpop.xlane.xlu0 %1619
          %v1621 = vmax.f32 %v870, %v1039
          %v1622 = vmax.f32 %v1621, %v1208
          %v1623 = vmax.f32 %v1622, %v1377
          %1624 = vmax.xlane.f32.xlu0 %v1623
          %v1625 = vpop.xlane.xlu0 %1624
          %v1626 = vmax.f32 %v872, %v1041
          %v1627 = vmax.f32 %v1626, %v1210
          %v1628 = vmax.f32 %v1627, %v1379
          %1629 = vmax.xlane.f32.xlu0 %v1628
          %v1630 = vpop.xlane.xlu0 %1629
          %v1631 = vmax.f32 %v875, %v1044
          %v1632 = vmax.f32 %v1631, %v1213
          %v1633 = vmax.f32 %v1632, %v1382
          %1634 = vmax.xlane.f32.xlu0 %v1633
          %v1635 = vpop.xlane.xlu0 %1634
          %v1636 = vmax.f32 %v877, %v1046
          %v1637 = vmax.f32 %v1636, %v1215
          %v1638 = vmax.f32 %v1637, %v1384
          %1639 = vmax.xlane.f32.xlu0 %v1638
          %v1640 = vpop.xlane.xlu0 %1639
          %v1641 = vmax.f32 %v880, %v1049
          %v1642 = vmax.f32 %v1641, %v1218
          %v1643 = vmax.f32 %v1642, %v1387
          %1644 = vmax.xlane.f32.xlu0 %v1643
          %v1645 = vpop.xlane.xlu0 %1644
          %v1646 = vmax.f32 %v882, %v1051
          %v1647 = vmax.f32 %v1646, %v1220
          %v1648 = vmax.f32 %v1647, %v1389
          %1649 = vmax.xlane.f32.xlu0 %v1648
          %v1650 = vpop.xlane.xlu0 %1649
          %v1651 = vmax.f32 %v885, %v1054
          %v1652 = vmax.f32 %v1651, %v1223
          %v1653 = vmax.f32 %v1652, %v1392
          %1654 = vmax.xlane.f32.xlu0 %v1653
          %v1655 = vpop.xlane.xlu0 %1654
          %v1656 = vmax.f32 %v887, %v1056
          %v1657 = vmax.f32 %v1656, %v1225
          %v1658 = vmax.f32 %v1657, %v1394
          %1659 = vmax.xlane.f32.xlu0 %v1658
          %v1660 = vpop.xlane.xlu0 %1659
          %v1661 = vmax.f32 %v890, %v1059
          %v1662 = vmax.f32 %v1661, %v1228
          %v1663 = vmax.f32 %v1662, %v1397
          %1664 = vmax.xlane.f32.xlu0 %v1663
          %v1665 = vpop.xlane.xlu0 %1664
          %v1666 = vmax.f32 %v892, %v1061
          %v1667 = vmax.f32 %v1666, %v1230
          %v1668 = vmax.f32 %v1667, %v1399
          %1669 = vmax.xlane.f32.xlu0 %v1668
          %v1670 = vpop.xlane.xlu0 %1669
          %v1671 = vmax.f32 %v895, %v1064
          %v1672 = vmax.f32 %v1671, %v1233
          %v1673 = vmax.f32 %v1672, %v1402
          %1674 = vmax.xlane.f32.xlu0 %v1673
          %v1675 = vpop.xlane.xlu0 %1674
          %v1676 = vmax.f32 %v897, %v1066
          %v1677 = vmax.f32 %v1676, %v1235
          %v1678 = vmax.f32 %v1677, %v1404
          %1679 = vmax.xlane.f32.xlu0 %v1678
          %v1680 = vpop.xlane.xlu0 %1679
          %v1681 = vmax.f32 %v900, %v1069
          %v1682 = vmax.f32 %v1681, %v1238
          %v1683 = vmax.f32 %v1682, %v1407
          %1684 = vmax.xlane.f32.xlu0 %v1683
          %v1685 = vpop.xlane.xlu0 %1684
          %v1686 = vmax.f32 %v902, %v1071
          %v1687 = vmax.f32 %v1686, %v1240
          %v1688 = vmax.f32 %v1687, %v1409
          %1689 = vmax.xlane.f32.xlu0 %v1688
          %v1690 = vpop.xlane.xlu0 %1689
          %v1691 = vmax.f32 %v905, %v1074
          %v1692 = vmax.f32 %v1691, %v1243
          %v1693 = vmax.f32 %v1692, %v1412
          %1694 = vmax.xlane.f32.xlu0 %v1693
          %v1695 = vpop.xlane.xlu0 %1694
          %v1696 = vmax.f32 %v907, %v1076
          %v1697 = vmax.f32 %v1696, %v1245
          %v1698 = vmax.f32 %v1697, %v1414
          %1699 = vmax.xlane.f32.xlu0 %v1698
          %v1700 = vpop.xlane.xlu0 %1699
          %v1701 = vmax.f32 %v910, %v1079
          %v1702 = vmax.f32 %v1701, %v1248
          %v1703 = vmax.f32 %v1702, %v1417
          %1704 = vmax.xlane.f32.xlu0 %v1703
          %v1705 = vpop.xlane.xlu0 %1704
          %v1706 = vmax.f32 %v912, %v1081
          %v1707 = vmax.f32 %v1706, %v1250
          %v1708 = vmax.f32 %v1707, %v1419
          %1709 = vmax.xlane.f32.xlu0 %v1708
          %v1710 = vpop.xlane.xlu0 %1709
          %v1711 = vmax.f32 %v915, %v1084
          %v1712 = vmax.f32 %v1711, %v1253
          %v1713 = vmax.f32 %v1712, %v1422
          %1714 = vmax.xlane.f32.xlu0 %v1713
          %v1715 = vpop.xlane.xlu0 %1714
          %v1716 = vmax.f32 %v917, %v1086
          %v1717 = vmax.f32 %v1716, %v1255
          %v1718 = vmax.f32 %v1717, %v1424
          %1719 = vmax.xlane.f32.xlu0 %v1718
          %v1720 = vpop.xlane.xlu0 %1719
          %v1721 = vmax.f32 %v920, %v1089
          %v1722 = vmax.f32 %v1721, %v1258
          %v1723 = vmax.f32 %v1722, %v1427
          %1724 = vmax.xlane.f32.xlu0 %v1723
          %v1725 = vpop.xlane.xlu0 %1724
          %v1726 = vmax.f32 %v922, %v1091
          %v1727 = vmax.f32 %v1726, %v1260
          %v1728 = vmax.f32 %v1727, %v1429
          %1729 = vmax.xlane.f32.xlu0 %v1728
          %v1730 = vpop.xlane.xlu0 %1729
          %v1731 = vmax.f32 %v925, %v1094
          %v1732 = vmax.f32 %v1731, %v1263
          %v1733 = vmax.f32 %v1732, %v1432
          %1734 = vmax.xlane.f32.xlu0 %v1733
          %v1735 = vpop.xlane.xlu0 %1734
          %v1736 = vmax.f32 %v927, %v1096
          %v1737 = vmax.f32 %v1736, %v1265
          %v1738 = vmax.f32 %v1737, %v1434
          %1739 = vmax.xlane.f32.xlu0 %v1738
          %v1740 = vpop.xlane.xlu0 %1739
          %v1741 = vmax.f32 %v930, %v1099
          %v1742 = vmax.f32 %v1741, %v1268
          %v1743 = vmax.f32 %v1742, %v1437
          %1744 = vmax.xlane.f32.xlu0 %v1743
          %v1745 = vpop.xlane.xlu0 %1744
          %v1746 = vmax.f32 %v932, %v1101
          %v1747 = vmax.f32 %v1746, %v1270
          %v1748 = vmax.f32 %v1747, %v1439
          %1749 = vmax.xlane.f32.xlu0 %v1748
          %v1750 = vpop.xlane.xlu0 %1749
          %v1751 = vmax.f32 %v935, %v1104
          %v1752 = vmax.f32 %v1751, %v1273
          %v1753 = vmax.f32 %v1752, %v1442
          %1754 = vmax.xlane.f32.xlu0 %v1753
          %v1755 = vpop.xlane.xlu0 %1754
          %v1756 = vmax.f32 %v937, %v1106
          %v1757 = vmax.f32 %v1756, %v1275
          %v1758 = vmax.f32 %v1757, %v1444
          %1759 = vmax.xlane.f32.xlu0 %v1758
          %v1760 = vpop.xlane.xlu0 %1759
          %v1761 = vmax.f32 %v940, %v1109
          %v1762 = vmax.f32 %v1761, %v1278
          %v1763 = vmax.f32 %v1762, %v1447
          %1764 = vmax.xlane.f32.xlu0 %v1763
          %v1765 = vpop.xlane.xlu0 %1764
          %v1766 = vmax.f32 %v942, %v1111
          %v1767 = vmax.f32 %v1766, %v1280
          %v1768 = vmax.f32 %v1767, %v1449
          %1769 = vmax.xlane.f32.xlu0 %v1768
          %v1770 = vpop.xlane.xlu0 %1769
          %v1771 = vsub.f32 %v785, %v1455
          %v1772 = vsub.f32 %v954, %v1455
          %v1773 = vsub.f32 %v1123, %v1455
          %v1774 = vsub.f32 %v1292, %v1455
          %v1775 = vsub.f32 %v787, %v1460
          %v1776 = vsub.f32 %v956, %v1460
          %v1777 = vsub.f32 %v1125, %v1460
          %v1778 = vsub.f32 %v1294, %v1460
          %v1779 = vsub.f32 %v790, %v1465
          %v1780 = vsub.f32 %v959, %v1465
          %v1781 = vsub.f32 %v1128, %v1465
          %v1782 = vsub.f32 %v1297, %v1465
          %v1783 = vsub.f32 %v792, %v1470
          %v1784 = vsub.f32 %v961, %v1470
          %v1785 = vsub.f32 %v1130, %v1470
          %v1786 = vsub.f32 %v1299, %v1470
          %v1787 = vsub.f32 %v795, %v1475
          %v1788 = vsub.f32 %v964, %v1475
          %v1789 = vsub.f32 %v1133, %v1475
          %v1790 = vsub.f32 %v1302, %v1475
          %v1791 = vsub.f32 %v797, %v1480
          %v1792 = vsub.f32 %v966, %v1480
          %v1793 = vsub.f32 %v1135, %v1480
          %v1794 = vsub.f32 %v1304, %v1480
          %v1795 = vsub.f32 %v800, %v1485
          %v1796 = vsub.f32 %v969, %v1485
          %v1797 = vsub.f32 %v1138, %v1485
          %v1798 = vsub.f32 %v1307, %v1485
          %v1799 = vsub.f32 %v802, %v1490
          %v1800 = vsub.f32 %v971, %v1490
          %v1801 = vsub.f32 %v1140, %v1490
          %v1802 = vsub.f32 %v1309, %v1490
          %v1803 = vsub.f32 %v805, %v1495
          %v1804 = vsub.f32 %v974, %v1495
          %v1805 = vsub.f32 %v1143, %v1495
          %v1806 = vsub.f32 %v1312, %v1495
          %v1807 = vsub.f32 %v807, %v1500
          %v1808 = vsub.f32 %v976, %v1500
          %v1809 = vsub.f32 %v1145, %v1500
          %v1810 = vsub.f32 %v1314, %v1500
          %v1811 = vsub.f32 %v810, %v1505
          %v1812 = vsub.f32 %v979, %v1505
          %v1813 = vsub.f32 %v1148, %v1505
          %v1814 = vsub.f32 %v1317, %v1505
          %v1815 = vsub.f32 %v812, %v1510
          %v1816 = vsub.f32 %v981, %v1510
          %v1817 = vsub.f32 %v1150, %v1510
          %v1818 = vsub.f32 %v1319, %v1510
          %v1819 = vsub.f32 %v815, %v1515
          %v1820 = vsub.f32 %v984, %v1515
          %v1821 = vsub.f32 %v1153, %v1515
          %v1822 = vsub.f32 %v1322, %v1515
          %v1823 = vsub.f32 %v817, %v1520
          %v1824 = vsub.f32 %v986, %v1520
          %v1825 = vsub.f32 %v1155, %v1520
          %v1826 = vsub.f32 %v1324, %v1520
          %v1827 = vsub.f32 %v820, %v1525
          %v1828 = vsub.f32 %v989, %v1525
          %v1829 = vsub.f32 %v1158, %v1525
          %v1830 = vsub.f32 %v1327, %v1525
          %v1831 = vsub.f32 %v822, %v1530
          %v1832 = vsub.f32 %v991, %v1530
          %v1833 = vsub.f32 %v1160, %v1530
          %v1834 = vsub.f32 %v1329, %v1530
          %v1835 = vsub.f32 %v825, %v1535
          %v1836 = vsub.f32 %v994, %v1535
          %v1837 = vsub.f32 %v1163, %v1535
          %v1838 = vsub.f32 %v1332, %v1535
          %v1839 = vsub.f32 %v827, %v1540
          %v1840 = vsub.f32 %v996, %v1540
          %v1841 = vsub.f32 %v1165, %v1540
          %v1842 = vsub.f32 %v1334, %v1540
          %v1843 = vsub.f32 %v830, %v1545
          %v1844 = vsub.f32 %v999, %v1545
          %v1845 = vsub.f32 %v1168, %v1545
          %v1846 = vsub.f32 %v1337, %v1545
          %v1847 = vsub.f32 %v832, %v1550
          %v1848 = vsub.f32 %v1001, %v1550
          %v1849 = vsub.f32 %v1170, %v1550
          %v1850 = vsub.f32 %v1339, %v1550
          %v1851 = vsub.f32 %v835, %v1555
          %v1852 = vsub.f32 %v1004, %v1555
          %v1853 = vsub.f32 %v1173, %v1555
          %v1854 = vsub.f32 %v1342, %v1555
          %v1855 = vsub.f32 %v837, %v1560
          %v1856 = vsub.f32 %v1006, %v1560
          %v1857 = vsub.f32 %v1175, %v1560
          %v1858 = vsub.f32 %v1344, %v1560
          %v1859 = vsub.f32 %v840, %v1565
          %v1860 = vsub.f32 %v1009, %v1565
          %v1861 = vsub.f32 %v1178, %v1565
          %v1862 = vsub.f32 %v1347, %v1565
          %v1863 = vsub.f32 %v842, %v1570
          %v1864 = vsub.f32 %v1011, %v1570
          %v1865 = vsub.f32 %v1180, %v1570
          %v1866 = vsub.f32 %v1349, %v1570
          %v1867 = vsub.f32 %v845, %v1575
          %v1868 = vsub.f32 %v1014, %v1575
          %v1869 = vsub.f32 %v1183, %v1575
          %v1870 = vsub.f32 %v1352, %v1575
          %v1871 = vsub.f32 %v847, %v1580
          %v1872 = vsub.f32 %v1016, %v1580
          %v1873 = vsub.f32 %v1185, %v1580
          %v1874 = vsub.f32 %v1354, %v1580
          %v1875 = vsub.f32 %v850, %v1585
          %v1876 = vsub.f32 %v1019, %v1585
          %v1877 = vsub.f32 %v1188, %v1585
          %v1878 = vsub.f32 %v1357, %v1585
          %v1879 = vsub.f32 %v852, %v1590
          %v1880 = vsub.f32 %v1021, %v1590
          %v1881 = vsub.f32 %v1190, %v1590
          %v1882 = vsub.f32 %v1359, %v1590
          %v1883 = vsub.f32 %v855, %v1595
          %v1884 = vsub.f32 %v1024, %v1595
          %v1885 = vsub.f32 %v1193, %v1595
          %v1886 = vsub.f32 %v1362, %v1595
          %v1887 = vsub.f32 %v857, %v1600
          %v1888 = vsub.f32 %v1026, %v1600
          %v1889 = vsub.f32 %v1195, %v1600
          %v1890 = vsub.f32 %v1364, %v1600
          %v1891 = vsub.f32 %v860, %v1605
          %v1892 = vsub.f32 %v1029, %v1605
          %v1893 = vsub.f32 %v1198, %v1605
          %v1894 = vsub.f32 %v1367, %v1605
          %v1895 = vsub.f32 %v862, %v1610
          %v1896 = vsub.f32 %v1031, %v1610
          %v1897 = vsub.f32 %v1200, %v1610
          %v1898 = vsub.f32 %v1369, %v1610
          %v1899 = vsub.f32 %v865, %v1615
          %v1900 = vsub.f32 %v1034, %v1615
          %v1901 = vsub.f32 %v1203, %v1615
          %v1902 = vsub.f32 %v1372, %v1615
          %v1903 = vsub.f32 %v867, %v1620
          %v1904 = vsub.f32 %v1036, %v1620
          %v1905 = vsub.f32 %v1205, %v1620
          %v1906 = vsub.f32 %v1374, %v1620
          %v1907 = vsub.f32 %v870, %v1625
          %v1908 = vsub.f32 %v1039, %v1625
          %v1909 = vsub.f32 %v1208, %v1625
          %v1910 = vsub.f32 %v1377, %v1625
          %v1911 = vsub.f32 %v872, %v1630
          %v1912 = vsub.f32 %v1041, %v1630
          %v1913 = vsub.f32 %v1210, %v1630
          %v1914 = vsub.f32 %v1379, %v1630
          %v1915 = vsub.f32 %v875, %v1635
          %v1916 = vsub.f32 %v1044, %v1635
          %v1917 = vsub.f32 %v1213, %v1635
          %v1918 = vsub.f32 %v1382, %v1635
          %v1919 = vsub.f32 %v877, %v1640
          %v1920 = vsub.f32 %v1046, %v1640
          %v1921 = vsub.f32 %v1215, %v1640
          %v1922 = vsub.f32 %v1384, %v1640
          %v1923 = vsub.f32 %v880, %v1645
          %v1924 = vsub.f32 %v1049, %v1645
          %v1925 = vsub.f32 %v1218, %v1645
          %v1926 = vsub.f32 %v1387, %v1645
          %v1927 = vsub.f32 %v882, %v1650
          %v1928 = vsub.f32 %v1051, %v1650
          %v1929 = vsub.f32 %v1220, %v1650
          %v1930 = vsub.f32 %v1389, %v1650
          %v1931 = vsub.f32 %v885, %v1655
          %v1932 = vsub.f32 %v1054, %v1655
          %v1933 = vsub.f32 %v1223, %v1655
          %v1934 = vsub.f32 %v1392, %v1655
          %v1935 = vsub.f32 %v887, %v1660
          %v1936 = vsub.f32 %v1056, %v1660
          %v1937 = vsub.f32 %v1225, %v1660
          %v1938 = vsub.f32 %v1394, %v1660
          %v1939 = vsub.f32 %v890, %v1665
          %v1940 = vsub.f32 %v1059, %v1665
          %v1941 = vsub.f32 %v1228, %v1665
          %v1942 = vsub.f32 %v1397, %v1665
          %v1943 = vsub.f32 %v892, %v1670
          %v1944 = vsub.f32 %v1061, %v1670
          %v1945 = vsub.f32 %v1230, %v1670
          %v1946 = vsub.f32 %v1399, %v1670
          %v1947 = vsub.f32 %v895, %v1675
          %v1948 = vsub.f32 %v1064, %v1675
          %v1949 = vsub.f32 %v1233, %v1675
          %v1950 = vsub.f32 %v1402, %v1675
          %v1951 = vsub.f32 %v897, %v1680
          %v1952 = vsub.f32 %v1066, %v1680
          %v1953 = vsub.f32 %v1235, %v1680
          %v1954 = vsub.f32 %v1404, %v1680
          %v1955 = vsub.f32 %v900, %v1685
          %v1956 = vsub.f32 %v1069, %v1685
          %v1957 = vsub.f32 %v1238, %v1685
          %v1958 = vsub.f32 %v1407, %v1685
          %v1959 = vsub.f32 %v902, %v1690
          %v1960 = vsub.f32 %v1071, %v1690
          %v1961 = vsub.f32 %v1240, %v1690
          %v1962 = vsub.f32 %v1409, %v1690
          %v1963 = vsub.f32 %v905, %v1695
          %v1964 = vsub.f32 %v1074, %v1695
          %v1965 = vsub.f32 %v1243, %v1695
          %v1966 = vsub.f32 %v1412, %v1695
          %v1967 = vsub.f32 %v907, %v1700
          %v1968 = vsub.f32 %v1076, %v1700
          %v1969 = vsub.f32 %v1245, %v1700
          %v1970 = vsub.f32 %v1414, %v1700
          %v1971 = vsub.f32 %v910, %v1705
          %v1972 = vsub.f32 %v1079, %v1705
          %v1973 = vsub.f32 %v1248, %v1705
          %v1974 = vsub.f32 %v1417, %v1705
          %v1975 = vsub.f32 %v912, %v1710
          %v1976 = vsub.f32 %v1081, %v1710
          %v1977 = vsub.f32 %v1250, %v1710
          %v1978 = vsub.f32 %v1419, %v1710
          %v1979 = vsub.f32 %v915, %v1715
          %v1980 = vsub.f32 %v1084, %v1715
          %v1981 = vsub.f32 %v1253, %v1715
          %v1982 = vsub.f32 %v1422, %v1715
          %v1983 = vsub.f32 %v917, %v1720
          %v1984 = vsub.f32 %v1086, %v1720
          %v1985 = vsub.f32 %v1255, %v1720
          %v1986 = vsub.f32 %v1424, %v1720
          %v1987 = vsub.f32 %v920, %v1725
          %v1988 = vsub.f32 %v1089, %v1725
          %v1989 = vsub.f32 %v1258, %v1725
          %v1990 = vsub.f32 %v1427, %v1725
          %v1991 = vsub.f32 %v922, %v1730
          %v1992 = vsub.f32 %v1091, %v1730
          %v1993 = vsub.f32 %v1260, %v1730
          %v1994 = vsub.f32 %v1429, %v1730
          %v1995 = vsub.f32 %v925, %v1735
          %v1996 = vsub.f32 %v1094, %v1735
          %v1997 = vsub.f32 %v1263, %v1735
          %v1998 = vsub.f32 %v1432, %v1735
          %v1999 = vsub.f32 %v927, %v1740
          %v2000 = vsub.f32 %v1096, %v1740
          %v2001 = vsub.f32 %v1265, %v1740
          %v2002 = vsub.f32 %v1434, %v1740
          %v2003 = vsub.f32 %v930, %v1745
          %v2004 = vsub.f32 %v1099, %v1745
          %v2005 = vsub.f32 %v1268, %v1745
          %v2006 = vsub.f32 %v1437, %v1745
          %v2007 = vsub.f32 %v932, %v1750
          %v2008 = vsub.f32 %v1101, %v1750
          %v2009 = vsub.f32 %v1270, %v1750
          %v2010 = vsub.f32 %v1439, %v1750
          %v2011 = vsub.f32 %v935, %v1755
          %v2012 = vsub.f32 %v1104, %v1755
          %v2013 = vsub.f32 %v1273, %v1755
          %v2014 = vsub.f32 %v1442, %v1755
          %v2015 = vsub.f32 %v937, %v1760
          %v2016 = vsub.f32 %v1106, %v1760
          %v2017 = vsub.f32 %v1275, %v1760
          %v2018 = vsub.f32 %v1444, %v1760
          %v2019 = vsub.f32 %v940, %v1765
          %v2020 = vsub.f32 %v1109, %v1765
          %v2021 = vsub.f32 %v1278, %v1765
          %v2022 = vsub.f32 %v1447, %v1765
          %v2023 = vsub.f32 %v942, %v1770
          %v2024 = vsub.f32 %v1111, %v1770
          %v2025 = vsub.f32 %v1280, %v1770
          %v2026 = vsub.f32 %v1449, %v1770
          %v2027 = vmul.f32 %v1771, 1.442695
          %v2028 = vpow.pop %v2027
          %v2029 = vmul.f32 %v1772, 1.442695
          %v2030 = vpow.pop %v2029
          %v2031 = vmul.f32 %v1773, 1.442695
          %v2032 = vpow.pop %v2031
          %v2033 = vmul.f32 %v1774, 1.442695
          %v2034 = vpow.pop %v2033
          %v2035 = vmul.f32 %v1775, 1.442695
          %v2036 = vpow.pop %v2035
          %v2037 = vmul.f32 %v1776, 1.442695
          %v2038 = vpow.pop %v2037
          %v2039 = vmul.f32 %v1777, 1.442695
          %v2040 = vpow.pop %v2039
          %v2041 = vmul.f32 %v1778, 1.442695
          %v2042 = vpow.pop %v2041
          %v2043 = vmul.f32 %v1779, 1.442695
          %v2044 = vpow.pop %v2043
          %v2045 = vmul.f32 %v1780, 1.442695
          %v2046 = vpow.pop %v2045
          %v2047 = vmul.f32 %v1781, 1.442695
          %v2048 = vpow.pop %v2047
          %v2049 = vmul.f32 %v1782, 1.442695
          %v2050 = vpow.pop %v2049
          %v2051 = vmul.f32 %v1783, 1.442695
          %v2052 = vpow.pop %v2051
          %v2053 = vmul.f32 %v1784, 1.442695
          %v2054 = vpow.pop %v2053
          %v2055 = vmul.f32 %v1785, 1.442695
          %v2056 = vpow.pop %v2055
          %v2057 = vmul.f32 %v1786, 1.442695
          %v2058 = vpow.pop %v2057
          %v2059 = vmul.f32 %v1787, 1.442695
          %v2060 = vpow.pop %v2059
          %v2061 = vmul.f32 %v1788, 1.442695
          %v2062 = vpow.pop %v2061
          %v2063 = vmul.f32 %v1789, 1.442695
          %v2064 = vpow.pop %v2063
          %v2065 = vmul.f32 %v1790, 1.442695
          %v2066 = vpow.pop %v2065
          %v2067 = vmul.f32 %v1791, 1.442695
          %v2068 = vpow.pop %v2067
          %v2069 = vmul.f32 %v1792, 1.442695
          %v2070 = vpow.pop %v2069
          %v2071 = vmul.f32 %v1793, 1.442695
          %v2072 = vpow.pop %v2071
          %v2073 = vmul.f32 %v1794, 1.442695
          %v2074 = vpow.pop %v2073
          %v2075 = vmul.f32 %v1795, 1.442695
          %v2076 = vpow.pop %v2075
          %v2077 = vmul.f32 %v1796, 1.442695
          %v2078 = vpow.pop %v2077
          %v2079 = vmul.f32 %v1797, 1.442695
          %v2080 = vpow.pop %v2079
          %v2081 = vmul.f32 %v1798, 1.442695
          %v2082 = vpow.pop %v2081
          %v2083 = vmul.f32 %v1799, 1.442695
          %v2084 = vpow.pop %v2083
          %v2085 = vmul.f32 %v1800, 1.442695
          %v2086 = vpow.pop %v2085
          %v2087 = vmul.f32 %v1801, 1.442695
          %v2088 = vpow.pop %v2087
          %v2089 = vmul.f32 %v1802, 1.442695
          %v2090 = vpow.pop %v2089
          %v2091 = vmul.f32 %v1803, 1.442695
          %v2092 = vpow.pop %v2091
          %v2093 = vmul.f32 %v1804, 1.442695
          %v2094 = vpow.pop %v2093
          %v2095 = vmul.f32 %v1805, 1.442695
          %v2096 = vpow.pop %v2095
          %v2097 = vmul.f32 %v1806, 1.442695
          %v2098 = vpow.pop %v2097
          %v2099 = vmul.f32 %v1807, 1.442695
          %v2100 = vpow.pop %v2099
          %v2101 = vmul.f32 %v1808, 1.442695
          %v2102 = vpow.pop %v2101
          %v2103 = vmul.f32 %v1809, 1.442695
          %v2104 = vpow.pop %v2103
          %v2105 = vmul.f32 %v1810, 1.442695
          %v2106 = vpow.pop %v2105
          %v2107 = vmul.f32 %v1811, 1.442695
          %v2108 = vpow.pop %v2107
          %v2109 = vmul.f32 %v1812, 1.442695
          %v2110 = vpow.pop %v2109
          %v2111 = vmul.f32 %v1813, 1.442695
          %v2112 = vpow.pop %v2111
          %v2113 = vmul.f32 %v1814, 1.442695
          %v2114 = vpow.pop %v2113
          %v2115 = vmul.f32 %v1815, 1.442695
          %v2116 = vpow.pop %v2115
          %v2117 = vmul.f32 %v1816, 1.442695
          %v2118 = vpow.pop %v2117
          %v2119 = vmul.f32 %v1817, 1.442695
          %v2120 = vpow.pop %v2119
          %v2121 = vmul.f32 %v1818, 1.442695
          %v2122 = vpow.pop %v2121
          %v2123 = vmul.f32 %v1819, 1.442695
          %v2124 = vpow.pop %v2123
          %v2125 = vmul.f32 %v1820, 1.442695
          %v2126 = vpow.pop %v2125
          %v2127 = vmul.f32 %v1821, 1.442695
          %v2128 = vpow.pop %v2127
          %v2129 = vmul.f32 %v1822, 1.442695
          %v2130 = vpow.pop %v2129
          %v2131 = vmul.f32 %v1823, 1.442695
          %v2132 = vpow.pop %v2131
          %v2133 = vmul.f32 %v1824, 1.442695
          %v2134 = vpow.pop %v2133
          %v2135 = vmul.f32 %v1825, 1.442695
          %v2136 = vpow.pop %v2135
          %v2137 = vmul.f32 %v1826, 1.442695
          %v2138 = vpow.pop %v2137
          %v2139 = vmul.f32 %v1827, 1.442695
          %v2140 = vpow.pop %v2139
          %v2141 = vmul.f32 %v1828, 1.442695
          %v2142 = vpow.pop %v2141
          %v2143 = vmul.f32 %v1829, 1.442695
          %v2144 = vpow.pop %v2143
          %v2145 = vmul.f32 %v1830, 1.442695
          %v2146 = vpow.pop %v2145
          %v2147 = vmul.f32 %v1831, 1.442695
          %v2148 = vpow.pop %v2147
          %v2149 = vmul.f32 %v1832, 1.442695
          %v2150 = vpow.pop %v2149
          %v2151 = vmul.f32 %v1833, 1.442695
          %v2152 = vpow.pop %v2151
          %v2153 = vmul.f32 %v1834, 1.442695
          %v2154 = vpow.pop %v2153
          %v2155 = vmul.f32 %v1835, 1.442695
          %v2156 = vpow.pop %v2155
          %v2157 = vmul.f32 %v1836, 1.442695
          %v2158 = vpow.pop %v2157
          %v2159 = vmul.f32 %v1837, 1.442695
          %v2160 = vpow.pop %v2159
          %v2161 = vmul.f32 %v1838, 1.442695
          %v2162 = vpow.pop %v2161
          %v2163 = vmul.f32 %v1839, 1.442695
          %v2164 = vpow.pop %v2163
          %v2165 = vmul.f32 %v1840, 1.442695
          %v2166 = vpow.pop %v2165
          %v2167 = vmul.f32 %v1841, 1.442695
          %v2168 = vpow.pop %v2167
          %v2169 = vmul.f32 %v1842, 1.442695
          %v2170 = vpow.pop %v2169
          %v2171 = vmul.f32 %v1843, 1.442695
          %v2172 = vpow.pop %v2171
          %v2173 = vmul.f32 %v1844, 1.442695
          %v2174 = vpow.pop %v2173
          %v2175 = vmul.f32 %v1845, 1.442695
          %v2176 = vpow.pop %v2175
          %v2177 = vmul.f32 %v1846, 1.442695
          %v2178 = vpow.pop %v2177
          %v2179 = vmul.f32 %v1847, 1.442695
          %v2180 = vpow.pop %v2179
          %v2181 = vmul.f32 %v1848, 1.442695
          %v2182 = vpow.pop %v2181
          %v2183 = vmul.f32 %v1849, 1.442695
          %v2184 = vpow.pop %v2183
          %v2185 = vmul.f32 %v1850, 1.442695
          %v2186 = vpow.pop %v2185
          %v2187 = vmul.f32 %v1851, 1.442695
          %v2188 = vpow.pop %v2187
          %v2189 = vmul.f32 %v1852, 1.442695
          %v2190 = vpow.pop %v2189
          %v2191 = vmul.f32 %v1853, 1.442695
          %v2192 = vpow.pop %v2191
          %v2193 = vmul.f32 %v1854, 1.442695
          %v2194 = vpow.pop %v2193
          %v2195 = vmul.f32 %v1855, 1.442695
          %v2196 = vpow.pop %v2195
          %v2197 = vmul.f32 %v1856, 1.442695
          %v2198 = vpow.pop %v2197
          %v2199 = vmul.f32 %v1857, 1.442695
          %v2200 = vpow.pop %v2199
          %v2201 = vmul.f32 %v1858, 1.442695
          %v2202 = vpow.pop %v2201
          %v2203 = vmul.f32 %v1859, 1.442695
          %v2204 = vpow.pop %v2203
          %v2205 = vmul.f32 %v1860, 1.442695
          %v2206 = vpow.pop %v2205
          %v2207 = vmul.f32 %v1861, 1.442695
          %v2208 = vpow.pop %v2207
          %v2209 = vmul.f32 %v1862, 1.442695
          %v2210 = vpow.pop %v2209
          %v2211 = vmul.f32 %v1863, 1.442695
          %v2212 = vpow.pop %v2211
          %v2213 = vmul.f32 %v1864, 1.442695
          %v2214 = vpow.pop %v2213
          %v2215 = vmul.f32 %v1865, 1.442695
          %v2216 = vpow.pop %v2215
          %v2217 = vmul.f32 %v1866, 1.442695
          %v2218 = vpow.pop %v2217
          %v2219 = vmul.f32 %v1867, 1.442695
          %v2220 = vpow.pop %v2219
          %v2221 = vmul.f32 %v1868, 1.442695
          %v2222 = vpow.pop %v2221
          %v2223 = vmul.f32 %v1869, 1.442695
          %v2224 = vpow.pop %v2223
          %v2225 = vmul.f32 %v1870, 1.442695
          %v2226 = vpow.pop %v2225
          %v2227 = vmul.f32 %v1871, 1.442695
          %v2228 = vpow.pop %v2227
          %v2229 = vmul.f32 %v1872, 1.442695
          %v2230 = vpow.pop %v2229
          %v2231 = vmul.f32 %v1873, 1.442695
          %v2232 = vpow.pop %v2231
          %v2233 = vmul.f32 %v1874, 1.442695
          %v2234 = vpow.pop %v2233
          %v2235 = vmul.f32 %v1875, 1.442695
          %v2236 = vpow.pop %v2235
          %v2237 = vmul.f32 %v1876, 1.442695
          %v2238 = vpow.pop %v2237
          %v2239 = vmul.f32 %v1877, 1.442695
          %v2240 = vpow.pop %v2239
          %v2241 = vmul.f32 %v1878, 1.442695
          %v2242 = vpow.pop %v2241
          %v2243 = vmul.f32 %v1879, 1.442695
          %v2244 = vpow.pop %v2243
          %v2245 = vmul.f32 %v1880, 1.442695
          %v2246 = vpow.pop %v2245
          %v2247 = vmul.f32 %v1881, 1.442695
          %v2248 = vpow.pop %v2247
          %v2249 = vmul.f32 %v1882, 1.442695
          %v2250 = vpow.pop %v2249
          %v2251 = vmul.f32 %v1883, 1.442695
          %v2252 = vpow.pop %v2251
          %v2253 = vmul.f32 %v1884, 1.442695
          %v2254 = vpow.pop %v2253
          %v2255 = vmul.f32 %v1885, 1.442695
          %v2256 = vpow.pop %v2255
          %v2257 = vmul.f32 %v1886, 1.442695
          %v2258 = vpow.pop %v2257
          %v2259 = vmul.f32 %v1887, 1.442695
          %v2260 = vpow.pop %v2259
          %v2261 = vmul.f32 %v1888, 1.442695
          %v2262 = vpow.pop %v2261
          %v2263 = vmul.f32 %v1889, 1.442695
          %v2264 = vpow.pop %v2263
          %v2265 = vmul.f32 %v1890, 1.442695
          %v2266 = vpow.pop %v2265
          %v2267 = vmul.f32 %v1891, 1.442695
          %v2268 = vpow.pop %v2267
          %v2269 = vmul.f32 %v1892, 1.442695
          %v2270 = vpow.pop %v2269
          %v2271 = vmul.f32 %v1893, 1.442695
          %v2272 = vpow.pop %v2271
          %v2273 = vmul.f32 %v1894, 1.442695
          %v2274 = vpow.pop %v2273
          %v2275 = vmul.f32 %v1895, 1.442695
          %v2276 = vpow.pop %v2275
          %v2277 = vmul.f32 %v1896, 1.442695
          %v2278 = vpow.pop %v2277
          %v2279 = vmul.f32 %v1897, 1.442695
          %v2280 = vpow.pop %v2279
          %v2281 = vmul.f32 %v1898, 1.442695
          %v2282 = vpow.pop %v2281
          %v2283 = vmul.f32 %v1899, 1.442695
          %v2284 = vpow.pop %v2283
          %v2285 = vmul.f32 %v1900, 1.442695
          %v2286 = vpow.pop %v2285
          %v2287 = vmul.f32 %v1901, 1.442695
          %v2288 = vpow.pop %v2287
          %v2289 = vmul.f32 %v1902, 1.442695
          %v2290 = vpow.pop %v2289
          %v2291 = vmul.f32 %v1903, 1.442695
          %v2292 = vpow.pop %v2291
          %v2293 = vmul.f32 %v1904, 1.442695
          %v2294 = vpow.pop %v2293
          %v2295 = vmul.f32 %v1905, 1.442695
          %v2296 = vpow.pop %v2295
          %v2297 = vmul.f32 %v1906, 1.442695
          %v2298 = vpow.pop %v2297
          %v2299 = vmul.f32 %v1907, 1.442695
          %v2300 = vpow.pop %v2299
          %v2301 = vmul.f32 %v1908, 1.442695
          %v2302 = vpow.pop %v2301
          %v2303 = vmul.f32 %v1909, 1.442695
          %v2304 = vpow.pop %v2303
          %v2305 = vmul.f32 %v1910, 1.442695
          %v2306 = vpow.pop %v2305
          %v2307 = vmul.f32 %v1911, 1.442695
          %v2308 = vpow.pop %v2307
          %v2309 = vmul.f32 %v1912, 1.442695
          %v2310 = vpow.pop %v2309
          %v2311 = vmul.f32 %v1913, 1.442695
          %v2312 = vpow.pop %v2311
          %v2313 = vmul.f32 %v1914, 1.442695
          %v2314 = vpow.pop %v2313
          %v2315 = vmul.f32 %v1915, 1.442695
          %v2316 = vpow.pop %v2315
          %v2317 = vmul.f32 %v1916, 1.442695
          %v2318 = vpow.pop %v2317
          %v2319 = vmul.f32 %v1917, 1.442695
          %v2320 = vpow.pop %v2319
          %v2321 = vmul.f32 %v1918, 1.442695
          %v2322 = vpow.pop %v2321
          %v2323 = vmul.f32 %v1919, 1.442695
          %v2324 = vpow.pop %v2323
          %v2325 = vmul.f32 %v1920, 1.442695
          %v2326 = vpow.pop %v2325
          %v2327 = vmul.f32 %v1921, 1.442695
          %v2328 = vpow.pop %v2327
          %v2329 = vmul.f32 %v1922, 1.442695
          %v2330 = vpow.pop %v2329
          %v2331 = vmul.f32 %v1923, 1.442695
          %v2332 = vpow.pop %v2331
          %v2333 = vmul.f32 %v1924, 1.442695
          %v2334 = vpow.pop %v2333
          %v2335 = vmul.f32 %v1925, 1.442695
          %v2336 = vpow.pop %v2335
          %v2337 = vmul.f32 %v1926, 1.442695
          %v2338 = vpow.pop %v2337
          %v2339 = vmul.f32 %v1927, 1.442695
          %v2340 = vpow.pop %v2339
          %v2341 = vmul.f32 %v1928, 1.442695
          %v2342 = vpow.pop %v2341
          %v2343 = vmul.f32 %v1929, 1.442695
          %v2344 = vpow.pop %v2343
          %v2345 = vmul.f32 %v1930, 1.442695
          %v2346 = vpow.pop %v2345
          %v2347 = vmul.f32 %v1931, 1.442695
          %v2348 = vpow.pop %v2347
          %v2349 = vmul.f32 %v1932, 1.442695
          %v2350 = vpow.pop %v2349
          %v2351 = vmul.f32 %v1933, 1.442695
          %v2352 = vpow.pop %v2351
          %v2353 = vmul.f32 %v1934, 1.442695
          %v2354 = vpow.pop %v2353
          %v2355 = vmul.f32 %v1935, 1.442695
          %v2356 = vpow.pop %v2355
          %v2357 = vmul.f32 %v1936, 1.442695
          %v2358 = vpow.pop %v2357
          %v2359 = vmul.f32 %v1937, 1.442695
          %v2360 = vpow.pop %v2359
          %v2361 = vmul.f32 %v1938, 1.442695
          %v2362 = vpow.pop %v2361
          %v2363 = vmul.f32 %v1939, 1.442695
          %v2364 = vpow.pop %v2363
          %v2365 = vmul.f32 %v1940, 1.442695
          %v2366 = vpow.pop %v2365
          %v2367 = vmul.f32 %v1941, 1.442695
          %v2368 = vpow.pop %v2367
          %v2369 = vmul.f32 %v1942, 1.442695
          %v2370 = vpow.pop %v2369
          %v2371 = vmul.f32 %v1943, 1.442695
          %v2372 = vpow.pop %v2371
          %v2373 = vmul.f32 %v1944, 1.442695
          %v2374 = vpow.pop %v2373
          %v2375 = vmul.f32 %v1945, 1.442695
          %v2376 = vpow.pop %v2375
          %v2377 = vmul.f32 %v1946, 1.442695
          %v2378 = vpow.pop %v2377
          %v2379 = vmul.f32 %v1947, 1.442695
          %v2380 = vpow.pop %v2379
          %v2381 = vmul.f32 %v1948, 1.442695
          %v2382 = vpow.pop %v2381
          %v2383 = vmul.f32 %v1949, 1.442695
          %v2384 = vpow.pop %v2383
          %v2385 = vmul.f32 %v1950, 1.442695
          %v2386 = vpow.pop %v2385
          %v2387 = vmul.f32 %v1951, 1.442695
          %v2388 = vpow.pop %v2387
          %v2389 = vmul.f32 %v1952, 1.442695
          %v2390 = vpow.pop %v2389
          %v2391 = vmul.f32 %v1953, 1.442695
          %v2392 = vpow.pop %v2391
          %v2393 = vmul.f32 %v1954, 1.442695
          %v2394 = vpow.pop %v2393
          %v2395 = vmul.f32 %v1955, 1.442695
          %v2396 = vpow.pop %v2395
          %v2397 = vmul.f32 %v1956, 1.442695
          %v2398 = vpow.pop %v2397
          %v2399 = vmul.f32 %v1957, 1.442695
          %v2400 = vpow.pop %v2399
          %v2401 = vmul.f32 %v1958, 1.442695
          %v2402 = vpow.pop %v2401
          %v2403 = vmul.f32 %v1959, 1.442695
          %v2404 = vpow.pop %v2403
          %v2405 = vmul.f32 %v1960, 1.442695
          %v2406 = vpow.pop %v2405
          %v2407 = vmul.f32 %v1961, 1.442695
          %v2408 = vpow.pop %v2407
          %v2409 = vmul.f32 %v1962, 1.442695
          %v2410 = vpow.pop %v2409
          %v2411 = vmul.f32 %v1963, 1.442695
          %v2412 = vpow.pop %v2411
          %v2413 = vmul.f32 %v1964, 1.442695
          %v2414 = vpow.pop %v2413
          %v2415 = vmul.f32 %v1965, 1.442695
          %v2416 = vpow.pop %v2415
          %v2417 = vmul.f32 %v1966, 1.442695
          %v2418 = vpow.pop %v2417
          %v2419 = vmul.f32 %v1967, 1.442695
          %v2420 = vpow.pop %v2419
          %v2421 = vmul.f32 %v1968, 1.442695
          %v2422 = vpow.pop %v2421
          %v2423 = vmul.f32 %v1969, 1.442695
          %v2424 = vpow.pop %v2423
          %v2425 = vmul.f32 %v1970, 1.442695
          %v2426 = vpow.pop %v2425
          %v2427 = vmul.f32 %v1971, 1.442695
          %v2428 = vpow.pop %v2427
          %v2429 = vmul.f32 %v1972, 1.442695
          %v2430 = vpow.pop %v2429
          %v2431 = vmul.f32 %v1973, 1.442695
          %v2432 = vpow.pop %v2431
          %v2433 = vmul.f32 %v1974, 1.442695
          %v2434 = vpow.pop %v2433
          %v2435 = vmul.f32 %v1975, 1.442695
          %v2436 = vpow.pop %v2435
          %v2437 = vmul.f32 %v1976, 1.442695
          %v2438 = vpow.pop %v2437
          %v2439 = vmul.f32 %v1977, 1.442695
          %v2440 = vpow.pop %v2439
          %v2441 = vmul.f32 %v1978, 1.442695
          %v2442 = vpow.pop %v2441
          %v2443 = vmul.f32 %v1979, 1.442695
          %v2444 = vpow.pop %v2443
          %v2445 = vmul.f32 %v1980, 1.442695
          %v2446 = vpow.pop %v2445
          %v2447 = vmul.f32 %v1981, 1.442695
          %v2448 = vpow.pop %v2447
          %v2449 = vmul.f32 %v1982, 1.442695
          %v2450 = vpow.pop %v2449
          %v2451 = vmul.f32 %v1983, 1.442695
          %v2452 = vpow.pop %v2451
          %v2453 = vmul.f32 %v1984, 1.442695
          %v2454 = vpow.pop %v2453
          %v2455 = vmul.f32 %v1985, 1.442695
          %v2456 = vpow.pop %v2455
          %v2457 = vmul.f32 %v1986, 1.442695
          %v2458 = vpow.pop %v2457
          %v2459 = vmul.f32 %v1987, 1.442695
          %v2460 = vpow.pop %v2459
          %v2461 = vmul.f32 %v1988, 1.442695
          %v2462 = vpow.pop %v2461
          %v2463 = vmul.f32 %v1989, 1.442695
          %v2464 = vpow.pop %v2463
          %v2465 = vmul.f32 %v1990, 1.442695
          %v2466 = vpow.pop %v2465
          %v2467 = vmul.f32 %v1991, 1.442695
          %v2468 = vpow.pop %v2467
          %v2469 = vmul.f32 %v1992, 1.442695
          %v2470 = vpow.pop %v2469
          %v2471 = vmul.f32 %v1993, 1.442695
          %v2472 = vpow.pop %v2471
          %v2473 = vmul.f32 %v1994, 1.442695
          %v2474 = vpow.pop %v2473
          %v2475 = vmul.f32 %v1995, 1.442695
          %v2476 = vpow.pop %v2475
          %v2477 = vmul.f32 %v1996, 1.442695
          %v2478 = vpow.pop %v2477
          %v2479 = vmul.f32 %v1997, 1.442695
          %v2480 = vpow.pop %v2479
          %v2481 = vmul.f32 %v1998, 1.442695
          %v2482 = vpow.pop %v2481
          %v2483 = vmul.f32 %v1999, 1.442695
          %v2484 = vpow.pop %v2483
          %v2485 = vmul.f32 %v2000, 1.442695
          %v2486 = vpow.pop %v2485
          %v2487 = vmul.f32 %v2001, 1.442695
          %v2488 = vpow.pop %v2487
          %v2489 = vmul.f32 %v2002, 1.442695
          %v2490 = vpow.pop %v2489
          %v2491 = vmul.f32 %v2003, 1.442695
          %v2492 = vpow.pop %v2491
          %v2493 = vmul.f32 %v2004, 1.442695
          %v2494 = vpow.pop %v2493
          %v2495 = vmul.f32 %v2005, 1.442695
          %v2496 = vpow.pop %v2495
          %v2497 = vmul.f32 %v2006, 1.442695
          %v2498 = vpow.pop %v2497
          %v2499 = vmul.f32 %v2007, 1.442695
          %v2500 = vpow.pop %v2499
          %v2501 = vmul.f32 %v2008, 1.442695
          %v2502 = vpow.pop %v2501
          %v2503 = vmul.f32 %v2009, 1.442695
          %v2504 = vpow.pop %v2503
          %v2505 = vmul.f32 %v2010, 1.442695
          %v2506 = vpow.pop %v2505
          %v2507 = vmul.f32 %v2011, 1.442695
          %v2508 = vpow.pop %v2507
          %v2509 = vmul.f32 %v2012, 1.442695
          %v2510 = vpow.pop %v2509
          %v2511 = vmul.f32 %v2013, 1.442695
          %v2512 = vpow.pop %v2511
          %v2513 = vmul.f32 %v2014, 1.442695
          %v2514 = vpow.pop %v2513
          %v2515 = vmul.f32 %v2015, 1.442695
          %v2516 = vpow.pop %v2515
          %v2517 = vmul.f32 %v2016, 1.442695
          %v2518 = vpow.pop %v2517
          %v2519 = vmul.f32 %v2017, 1.442695
          %v2520 = vpow.pop %v2519
          %v2521 = vmul.f32 %v2018, 1.442695
          %v2522 = vpow.pop %v2521
          %v2523 = vmul.f32 %v2019, 1.442695
          %v2524 = vpow.pop %v2523
          %v2525 = vmul.f32 %v2020, 1.442695
          %v2526 = vpow.pop %v2525
          %v2527 = vmul.f32 %v2021, 1.442695
          %v2528 = vpow.pop %v2527
          %v2529 = vmul.f32 %v2022, 1.442695
          %v2530 = vpow.pop %v2529
          %v2531 = vmul.f32 %v2023, 1.442695
          %v2532 = vpow.pop %v2531
          %v2533 = vmul.f32 %v2024, 1.442695
          %v2534 = vpow.pop %v2533
          %v2535 = vmul.f32 %v2025, 1.442695
          %v2536 = vpow.pop %v2535
          %v2537 = vmul.f32 %v2026, 1.442695
          %v2538 = vpow.pop %v2537
          %v2539 = vadd.f32 %v2028, %v2030
          %v2540 = vadd.f32 %v2539, %v2032
          %v2541 = vadd.f32 %v2540, %v2034
          %2542 = vadd.xlane.f32.xlu0 %v2541
          %v2543 = vpop.xlane.xlu0 %2542
          %v2544 = vadd.f32 %v2036, %v2038
          %v2545 = vadd.f32 %v2544, %v2040
          %v2546 = vadd.f32 %v2545, %v2042
          %2547 = vadd.xlane.f32.xlu0 %v2546
          %v2548 = vpop.xlane.xlu0 %2547
          %v2549 = vadd.f32 %v2044, %v2046
          %v2550 = vadd.f32 %v2549, %v2048
          %v2551 = vadd.f32 %v2550, %v2050
          %2552 = vadd.xlane.f32.xlu0 %v2551
          %v2553 = vpop.xlane.xlu0 %2552
          %v2554 = vadd.f32 %v2052, %v2054
          %v2555 = vadd.f32 %v2554, %v2056
          %v2556 = vadd.f32 %v2555, %v2058
          %2557 = vadd.xlane.f32.xlu0 %v2556
          %v2558 = vpop.xlane.xlu0 %2557
          %v2559 = vadd.f32 %v2060, %v2062
          %v2560 = vadd.f32 %v2559, %v2064
          %v2561 = vadd.f32 %v2560, %v2066
          %2562 = vadd.xlane.f32.xlu0 %v2561
          %v2563 = vpop.xlane.xlu0 %2562
          %v2564 = vadd.f32 %v2068, %v2070
          %v2565 = vadd.f32 %v2564, %v2072
          %v2566 = vadd.f32 %v2565, %v2074
          %2567 = vadd.xlane.f32.xlu0 %v2566
          %v2568 = vpop.xlane.xlu0 %2567
          %v2569 = vadd.f32 %v2076, %v2078
          %v2570 = vadd.f32 %v2569, %v2080
          %v2571 = vadd.f32 %v2570, %v2082
          %2572 = vadd.xlane.f32.xlu0 %v2571
          %v2573 = vpop.xlane.xlu0 %2572
          %v2574 = vadd.f32 %v2084, %v2086
          %v2575 = vadd.f32 %v2574, %v2088
          %v2576 = vadd.f32 %v2575, %v2090
          %2577 = vadd.xlane.f32.xlu0 %v2576
          %v2578 = vpop.xlane.xlu0 %2577
          %v2579 = vadd.f32 %v2092, %v2094
          %v2580 = vadd.f32 %v2579, %v2096
          %v2581 = vadd.f32 %v2580, %v2098
          %2582 = vadd.xlane.f32.xlu0 %v2581
          %v2583 = vpop.xlane.xlu0 %2582
          %v2584 = vadd.f32 %v2100, %v2102
          %v2585 = vadd.f32 %v2584, %v2104
          %v2586 = vadd.f32 %v2585, %v2106
          %2587 = vadd.xlane.f32.xlu0 %v2586
          %v2588 = vpop.xlane.xlu0 %2587
          %v2589 = vadd.f32 %v2108, %v2110
          %v2590 = vadd.f32 %v2589, %v2112
          %v2591 = vadd.f32 %v2590, %v2114
          %2592 = vadd.xlane.f32.xlu0 %v2591
          %v2593 = vpop.xlane.xlu0 %2592
          %v2594 = vadd.f32 %v2116, %v2118
          %v2595 = vadd.f32 %v2594, %v2120
          %v2596 = vadd.f32 %v2595, %v2122
          %2597 = vadd.xlane.f32.xlu0 %v2596
          %v2598 = vpop.xlane.xlu0 %2597
          %v2599 = vadd.f32 %v2124, %v2126
          %v2600 = vadd.f32 %v2599, %v2128
          %v2601 = vadd.f32 %v2600, %v2130
          %2602 = vadd.xlane.f32.xlu0 %v2601
          %v2603 = vpop.xlane.xlu0 %2602
          %v2604 = vadd.f32 %v2132, %v2134
          %v2605 = vadd.f32 %v2604, %v2136
          %v2606 = vadd.f32 %v2605, %v2138
          %2607 = vadd.xlane.f32.xlu0 %v2606
          %v2608 = vpop.xlane.xlu0 %2607
          %v2609 = vadd.f32 %v2140, %v2142
          %v2610 = vadd.f32 %v2609, %v2144
          %v2611 = vadd.f32 %v2610, %v2146
          %2612 = vadd.xlane.f32.xlu0 %v2611
          %v2613 = vpop.xlane.xlu0 %2612
          %v2614 = vadd.f32 %v2148, %v2150
          %v2615 = vadd.f32 %v2614, %v2152
          %v2616 = vadd.f32 %v2615, %v2154
          %2617 = vadd.xlane.f32.xlu0 %v2616
          %v2618 = vpop.xlane.xlu0 %2617
          %v2619 = vadd.f32 %v2156, %v2158
          %v2620 = vadd.f32 %v2619, %v2160
          %v2621 = vadd.f32 %v2620, %v2162
          %2622 = vadd.xlane.f32.xlu0 %v2621
          %v2623 = vpop.xlane.xlu0 %2622
          %v2624 = vadd.f32 %v2164, %v2166
          %v2625 = vadd.f32 %v2624, %v2168
          %v2626 = vadd.f32 %v2625, %v2170
          %2627 = vadd.xlane.f32.xlu0 %v2626
          %v2628 = vpop.xlane.xlu0 %2627
          %v2629 = vadd.f32 %v2172, %v2174
          %v2630 = vadd.f32 %v2629, %v2176
          %v2631 = vadd.f32 %v2630, %v2178
          %2632 = vadd.xlane.f32.xlu0 %v2631
          %v2633 = vpop.xlane.xlu0 %2632
          %v2634 = vadd.f32 %v2180, %v2182
          %v2635 = vadd.f32 %v2634, %v2184
          %v2636 = vadd.f32 %v2635, %v2186
          %2637 = vadd.xlane.f32.xlu0 %v2636
          %v2638 = vpop.xlane.xlu0 %2637
          %v2639 = vadd.f32 %v2188, %v2190
          %v2640 = vadd.f32 %v2639, %v2192
          %v2641 = vadd.f32 %v2640, %v2194
          %2642 = vadd.xlane.f32.xlu0 %v2641
          %v2643 = vpop.xlane.xlu0 %2642
          %v2644 = vadd.f32 %v2196, %v2198
          %v2645 = vadd.f32 %v2644, %v2200
          %v2646 = vadd.f32 %v2645, %v2202
          %2647 = vadd.xlane.f32.xlu0 %v2646
          %v2648 = vpop.xlane.xlu0 %2647
          %v2649 = vadd.f32 %v2204, %v2206
          %v2650 = vadd.f32 %v2649, %v2208
          %v2651 = vadd.f32 %v2650, %v2210
          %2652 = vadd.xlane.f32.xlu0 %v2651
          %v2653 = vpop.xlane.xlu0 %2652
          %v2654 = vadd.f32 %v2212, %v2214
          %v2655 = vadd.f32 %v2654, %v2216
          %v2656 = vadd.f32 %v2655, %v2218
          %2657 = vadd.xlane.f32.xlu0 %v2656
          %v2658 = vpop.xlane.xlu0 %2657
          %v2659 = vadd.f32 %v2220, %v2222
          %v2660 = vadd.f32 %v2659, %v2224
          %v2661 = vadd.f32 %v2660, %v2226
          %2662 = vadd.xlane.f32.xlu0 %v2661
          %v2663 = vpop.xlane.xlu0 %2662
          %v2664 = vadd.f32 %v2228, %v2230
          %v2665 = vadd.f32 %v2664, %v2232
          %v2666 = vadd.f32 %v2665, %v2234
          %2667 = vadd.xlane.f32.xlu0 %v2666
          %v2668 = vpop.xlane.xlu0 %2667
          %v2669 = vadd.f32 %v2236, %v2238
          %v2670 = vadd.f32 %v2669, %v2240
          %v2671 = vadd.f32 %v2670, %v2242
          %2672 = vadd.xlane.f32.xlu0 %v2671
          %v2673 = vpop.xlane.xlu0 %2672
          %v2674 = vadd.f32 %v2244, %v2246
          %v2675 = vadd.f32 %v2674, %v2248
          %v2676 = vadd.f32 %v2675, %v2250
          %2677 = vadd.xlane.f32.xlu0 %v2676
          %v2678 = vpop.xlane.xlu0 %2677
          %v2679 = vadd.f32 %v2252, %v2254
          %v2680 = vadd.f32 %v2679, %v2256
          %v2681 = vadd.f32 %v2680, %v2258
          %2682 = vadd.xlane.f32.xlu0 %v2681
          %v2683 = vpop.xlane.xlu0 %2682
          %v2684 = vadd.f32 %v2260, %v2262
          %v2685 = vadd.f32 %v2684, %v2264
          %v2686 = vadd.f32 %v2685, %v2266
          %2687 = vadd.xlane.f32.xlu0 %v2686
          %v2688 = vpop.xlane.xlu0 %2687
          %v2689 = vadd.f32 %v2268, %v2270
          %v2690 = vadd.f32 %v2689, %v2272
          %v2691 = vadd.f32 %v2690, %v2274
          %2692 = vadd.xlane.f32.xlu0 %v2691
          %v2693 = vpop.xlane.xlu0 %2692
          %v2694 = vadd.f32 %v2276, %v2278
          %v2695 = vadd.f32 %v2694, %v2280
          %v2696 = vadd.f32 %v2695, %v2282
          %2697 = vadd.xlane.f32.xlu0 %v2696
          %v2698 = vpop.xlane.xlu0 %2697
          %v2699 = vadd.f32 %v2284, %v2286
          %v2700 = vadd.f32 %v2699, %v2288
          %v2701 = vadd.f32 %v2700, %v2290
          %2702 = vadd.xlane.f32.xlu0 %v2701
          %v2703 = vpop.xlane.xlu0 %2702
          %v2704 = vadd.f32 %v2292, %v2294
          %v2705 = vadd.f32 %v2704, %v2296
          %v2706 = vadd.f32 %v2705, %v2298
          %2707 = vadd.xlane.f32.xlu0 %v2706
          %v2708 = vpop.xlane.xlu0 %2707
          %v2709 = vadd.f32 %v2300, %v2302
          %v2710 = vadd.f32 %v2709, %v2304
          %v2711 = vadd.f32 %v2710, %v2306
          %2712 = vadd.xlane.f32.xlu0 %v2711
          %v2713 = vpop.xlane.xlu0 %2712
          %v2714 = vadd.f32 %v2308, %v2310
          %v2715 = vadd.f32 %v2714, %v2312
          %v2716 = vadd.f32 %v2715, %v2314
          %2717 = vadd.xlane.f32.xlu0 %v2716
          %v2718 = vpop.xlane.xlu0 %2717
          %v2719 = vadd.f32 %v2316, %v2318
          %v2720 = vadd.f32 %v2719, %v2320
          %v2721 = vadd.f32 %v2720, %v2322
          %2722 = vadd.xlane.f32.xlu0 %v2721
          %v2723 = vpop.xlane.xlu0 %2722
          %v2724 = vadd.f32 %v2324, %v2326
          %v2725 = vadd.f32 %v2724, %v2328
          %v2726 = vadd.f32 %v2725, %v2330
          %2727 = vadd.xlane.f32.xlu0 %v2726
          %v2728 = vpop.xlane.xlu0 %2727
          %v2729 = vadd.f32 %v2332, %v2334
          %v2730 = vadd.f32 %v2729, %v2336
          %v2731 = vadd.f32 %v2730, %v2338
          %2732 = vadd.xlane.f32.xlu0 %v2731
          %v2733 = vpop.xlane.xlu0 %2732
          %v2734 = vadd.f32 %v2340, %v2342
          %v2735 = vadd.f32 %v2734, %v2344
          %v2736 = vadd.f32 %v2735, %v2346
          %2737 = vadd.xlane.f32.xlu0 %v2736
          %v2738 = vpop.xlane.xlu0 %2737
          %v2739 = vadd.f32 %v2348, %v2350
          %v2740 = vadd.f32 %v2739, %v2352
          %v2741 = vadd.f32 %v2740, %v2354
          %2742 = vadd.xlane.f32.xlu0 %v2741
          %v2743 = vpop.xlane.xlu0 %2742
          %v2744 = vadd.f32 %v2356, %v2358
          %v2745 = vadd.f32 %v2744, %v2360
          %v2746 = vadd.f32 %v2745, %v2362
          %2747 = vadd.xlane.f32.xlu0 %v2746
          %v2748 = vpop.xlane.xlu0 %2747
          %v2749 = vadd.f32 %v2364, %v2366
          %v2750 = vadd.f32 %v2749, %v2368
          %v2751 = vadd.f32 %v2750, %v2370
          %2752 = vadd.xlane.f32.xlu0 %v2751
          %v2753 = vpop.xlane.xlu0 %2752
          %v2754 = vadd.f32 %v2372, %v2374
          %v2755 = vadd.f32 %v2754, %v2376
          %v2756 = vadd.f32 %v2755, %v2378
          %2757 = vadd.xlane.f32.xlu0 %v2756
          %v2758 = vpop.xlane.xlu0 %2757
          %v2759 = vadd.f32 %v2380, %v2382
          %v2760 = vadd.f32 %v2759, %v2384
          %v2761 = vadd.f32 %v2760, %v2386
          %2762 = vadd.xlane.f32.xlu0 %v2761
          %v2763 = vpop.xlane.xlu0 %2762
          %v2764 = vadd.f32 %v2388, %v2390
          %v2765 = vadd.f32 %v2764, %v2392
          %v2766 = vadd.f32 %v2765, %v2394
          %2767 = vadd.xlane.f32.xlu0 %v2766
          %v2768 = vpop.xlane.xlu0 %2767
          %v2769 = vadd.f32 %v2396, %v2398
          %v2770 = vadd.f32 %v2769, %v2400
          %v2771 = vadd.f32 %v2770, %v2402
          %2772 = vadd.xlane.f32.xlu0 %v2771
          %v2773 = vpop.xlane.xlu0 %2772
          %v2774 = vadd.f32 %v2404, %v2406
          %v2775 = vadd.f32 %v2774, %v2408
          %v2776 = vadd.f32 %v2775, %v2410
          %2777 = vadd.xlane.f32.xlu0 %v2776
          %v2778 = vpop.xlane.xlu0 %2777
          %v2779 = vadd.f32 %v2412, %v2414
          %v2780 = vadd.f32 %v2779, %v2416
          %v2781 = vadd.f32 %v2780, %v2418
          %2782 = vadd.xlane.f32.xlu0 %v2781
          %v2783 = vpop.xlane.xlu0 %2782
          %v2784 = vadd.f32 %v2420, %v2422
          %v2785 = vadd.f32 %v2784, %v2424
          %v2786 = vadd.f32 %v2785, %v2426
          %2787 = vadd.xlane.f32.xlu0 %v2786
          %v2788 = vpop.xlane.xlu0 %2787
          %v2789 = vadd.f32 %v2428, %v2430
          %v2790 = vadd.f32 %v2789, %v2432
          %v2791 = vadd.f32 %v2790, %v2434
          %2792 = vadd.xlane.f32.xlu0 %v2791
          %v2793 = vpop.xlane.xlu0 %2792
          %v2794 = vadd.f32 %v2436, %v2438
          %v2795 = vadd.f32 %v2794, %v2440
          %v2796 = vadd.f32 %v2795, %v2442
          %2797 = vadd.xlane.f32.xlu0 %v2796
          %v2798 = vpop.xlane.xlu0 %2797
          %v2799 = vadd.f32 %v2444, %v2446
          %v2800 = vadd.f32 %v2799, %v2448
          %v2801 = vadd.f32 %v2800, %v2450
          %2802 = vadd.xlane.f32.xlu0 %v2801
          %v2803 = vpop.xlane.xlu0 %2802
          %v2804 = vadd.f32 %v2452, %v2454
          %v2805 = vadd.f32 %v2804, %v2456
          %v2806 = vadd.f32 %v2805, %v2458
          %2807 = vadd.xlane.f32.xlu0 %v2806
          %v2808 = vpop.xlane.xlu0 %2807
          %v2809 = vadd.f32 %v2460, %v2462
          %v2810 = vadd.f32 %v2809, %v2464
          %v2811 = vadd.f32 %v2810, %v2466
          %2812 = vadd.xlane.f32.xlu0 %v2811
          %v2813 = vpop.xlane.xlu0 %2812
          %v2814 = vadd.f32 %v2468, %v2470
          %v2815 = vadd.f32 %v2814, %v2472
          %v2816 = vadd.f32 %v2815, %v2474
          %2817 = vadd.xlane.f32.xlu0 %v2816
          %v2818 = vpop.xlane.xlu0 %2817
          %v2819 = vadd.f32 %v2476, %v2478
          %v2820 = vadd.f32 %v2819, %v2480
          %v2821 = vadd.f32 %v2820, %v2482
          %2822 = vadd.xlane.f32.xlu0 %v2821
          %v2823 = vpop.xlane.xlu0 %2822
          %v2824 = vadd.f32 %v2484, %v2486
          %v2825 = vadd.f32 %v2824, %v2488
          %v2826 = vadd.f32 %v2825, %v2490
          %2827 = vadd.xlane.f32.xlu0 %v2826
          %v2828 = vpop.xlane.xlu0 %2827
          %v2829 = vadd.f32 %v2492, %v2494
          %v2830 = vadd.f32 %v2829, %v2496
          %v2831 = vadd.f32 %v2830, %v2498
          %2832 = vadd.xlane.f32.xlu0 %v2831
          %v2833 = vpop.xlane.xlu0 %2832
          %v2834 = vadd.f32 %v2500, %v2502
          %v2835 = vadd.f32 %v2834, %v2504
          %v2836 = vadd.f32 %v2835, %v2506
          %2837 = vadd.xlane.f32.xlu0 %v2836
          %v2838 = vpop.xlane.xlu0 %2837
          %v2839 = vadd.f32 %v2508, %v2510
          %v2840 = vadd.f32 %v2839, %v2512
          %v2841 = vadd.f32 %v2840, %v2514
          %2842 = vadd.xlane.f32.xlu0 %v2841
          %v2843 = vpop.xlane.xlu0 %2842
          %v2844 = vadd.f32 %v2516, %v2518
          %v2845 = vadd.f32 %v2844, %v2520
          %v2846 = vadd.f32 %v2845, %v2522
          %2847 = vadd.xlane.f32.xlu0 %v2846
          %v2848 = vpop.xlane.xlu0 %2847
          %v2849 = vadd.f32 %v2524, %v2526
          %v2850 = vadd.f32 %v2849, %v2528
          %v2851 = vadd.f32 %v2850, %v2530
          %2852 = vadd.xlane.f32.xlu0 %v2851
          %v2853 = vpop.xlane.xlu0 %2852
          %v2854 = vadd.f32 %v2532, %v2534
          %v2855 = vadd.f32 %v2854, %v2536
          %v2856 = vadd.f32 %v2855, %v2538
          %2857 = vadd.xlane.f32.xlu0 %v2856
          %v2858 = vpop.xlane.xlu0 %2857
          %v2859 = vpack.c.bf16 %v2036, %v2028
          %v2860 = vpack.c.bf16 %v2038, %v2030
          %v2861 = vpack.c.bf16 %v2040, %v2032
          %v2862 = vpack.c.bf16 %v2042, %v2034
          %v2863 = vpack.c.bf16 %v2052, %v2044
          %v2864 = vpack.c.bf16 %v2054, %v2046
          %v2865 = vpack.c.bf16 %v2056, %v2048
          %v2866 = vpack.c.bf16 %v2058, %v2050
          %v2867 = vpack.c.bf16 %v2068, %v2060
          %v2868 = vpack.c.bf16 %v2070, %v2062
          %v2869 = vpack.c.bf16 %v2072, %v2064
          %v2870 = vpack.c.bf16 %v2074, %v2066
          %v2871 = vpack.c.bf16 %v2084, %v2076
          %v2872 = vpack.c.bf16 %v2086, %v2078
          %v2873 = vpack.c.bf16 %v2088, %v2080
          %v2874 = vpack.c.bf16 %v2090, %v2082
          %v2875 = vpack.c.bf16 %v2100, %v2092
          %v2876 = vpack.c.bf16 %v2102, %v2094
          %v2877 = vpack.c.bf16 %v2104, %v2096
          %v2878 = vpack.c.bf16 %v2106, %v2098
          %v2879 = vpack.c.bf16 %v2116, %v2108
          %v2880 = vpack.c.bf16 %v2118, %v2110
          %v2881 = vpack.c.bf16 %v2120, %v2112
          %v2882 = vpack.c.bf16 %v2122, %v2114
          %v2883 = vpack.c.bf16 %v2132, %v2124
          %v2884 = vpack.c.bf16 %v2134, %v2126
          %v2885 = vpack.c.bf16 %v2136, %v2128
          %v2886 = vpack.c.bf16 %v2138, %v2130
          %v2887 = vpack.c.bf16 %v2148, %v2140
          %v2888 = vpack.c.bf16 %v2150, %v2142
          %v2889 = vpack.c.bf16 %v2152, %v2144
          %v2890 = vpack.c.bf16 %v2154, %v2146
          %v2891 = vpack.c.bf16 %v2164, %v2156
          %v2892 = vpack.c.bf16 %v2166, %v2158
          %v2893 = vpack.c.bf16 %v2168, %v2160
          %v2894 = vpack.c.bf16 %v2170, %v2162
          %v2895 = vpack.c.bf16 %v2180, %v2172
          %v2896 = vpack.c.bf16 %v2182, %v2174
          %v2897 = vpack.c.bf16 %v2184, %v2176
          %v2898 = vpack.c.bf16 %v2186, %v2178
          %v2899 = vpack.c.bf16 %v2196, %v2188
          %v2900 = vpack.c.bf16 %v2198, %v2190
          %v2901 = vpack.c.bf16 %v2200, %v2192
          %v2902 = vpack.c.bf16 %v2202, %v2194
          %v2903 = vpack.c.bf16 %v2212, %v2204
          %v2904 = vpack.c.bf16 %v2214, %v2206
          %v2905 = vpack.c.bf16 %v2216, %v2208
          %v2906 = vpack.c.bf16 %v2218, %v2210
          %v2907 = vpack.c.bf16 %v2228, %v2220
          %v2908 = vpack.c.bf16 %v2230, %v2222
          %v2909 = vpack.c.bf16 %v2232, %v2224
          %v2910 = vpack.c.bf16 %v2234, %v2226
          %v2911 = vpack.c.bf16 %v2244, %v2236
          %v2912 = vpack.c.bf16 %v2246, %v2238
          %v2913 = vpack.c.bf16 %v2248, %v2240
          %v2914 = vpack.c.bf16 %v2250, %v2242
          %v2915 = vpack.c.bf16 %v2260, %v2252
          %v2916 = vpack.c.bf16 %v2262, %v2254
          %v2917 = vpack.c.bf16 %v2264, %v2256
          %v2918 = vpack.c.bf16 %v2266, %v2258
          %v2919 = vpack.c.bf16 %v2276, %v2268
          %v2920 = vpack.c.bf16 %v2278, %v2270
          %v2921 = vpack.c.bf16 %v2280, %v2272
          %v2922 = vpack.c.bf16 %v2282, %v2274
          %v2923 = vpack.c.bf16 %v2292, %v2284
          %v2924 = vpack.c.bf16 %v2294, %v2286
          %v2925 = vpack.c.bf16 %v2296, %v2288
          %v2926 = vpack.c.bf16 %v2298, %v2290
          %v2927 = vpack.c.bf16 %v2308, %v2300
          %v2928 = vpack.c.bf16 %v2310, %v2302
          %v2929 = vpack.c.bf16 %v2312, %v2304
          %v2930 = vpack.c.bf16 %v2314, %v2306
          %v2931 = vpack.c.bf16 %v2324, %v2316
          %v2932 = vpack.c.bf16 %v2326, %v2318
          %v2933 = vpack.c.bf16 %v2328, %v2320
          %v2934 = vpack.c.bf16 %v2330, %v2322
          %v2935 = vpack.c.bf16 %v2340, %v2332
          %v2936 = vpack.c.bf16 %v2342, %v2334
          %v2937 = vpack.c.bf16 %v2344, %v2336
          %v2938 = vpack.c.bf16 %v2346, %v2338
          %v2939 = vpack.c.bf16 %v2356, %v2348
          %v2940 = vpack.c.bf16 %v2358, %v2350
          %v2941 = vpack.c.bf16 %v2360, %v2352
          %v2942 = vpack.c.bf16 %v2362, %v2354
          %v2943 = vpack.c.bf16 %v2372, %v2364
          %v2944 = vpack.c.bf16 %v2374, %v2366
          %v2945 = vpack.c.bf16 %v2376, %v2368
          %v2946 = vpack.c.bf16 %v2378, %v2370
          %v2947 = vpack.c.bf16 %v2388, %v2380
          %v2948 = vpack.c.bf16 %v2390, %v2382
          %v2949 = vpack.c.bf16 %v2392, %v2384
          %v2950 = vpack.c.bf16 %v2394, %v2386
          %v2951 = vpack.c.bf16 %v2404, %v2396
          %v2952 = vpack.c.bf16 %v2406, %v2398
          %v2953 = vpack.c.bf16 %v2408, %v2400
          %v2954 = vpack.c.bf16 %v2410, %v2402
          %v2955 = vpack.c.bf16 %v2420, %v2412
          %v2956 = vpack.c.bf16 %v2422, %v2414
          %v2957 = vpack.c.bf16 %v2424, %v2416
          %v2958 = vpack.c.bf16 %v2426, %v2418
          %v2959 = vpack.c.bf16 %v2436, %v2428
          %v2960 = vpack.c.bf16 %v2438, %v2430
          %v2961 = vpack.c.bf16 %v2440, %v2432
          %v2962 = vpack.c.bf16 %v2442, %v2434
          %v2963 = vpack.c.bf16 %v2452, %v2444
          %v2964 = vpack.c.bf16 %v2454, %v2446
          %v2965 = vpack.c.bf16 %v2456, %v2448
          %v2966 = vpack.c.bf16 %v2458, %v2450
          %v2967 = vpack.c.bf16 %v2468, %v2460
          %v2968 = vpack.c.bf16 %v2470, %v2462
          %v2969 = vpack.c.bf16 %v2472, %v2464
          %v2970 = vpack.c.bf16 %v2474, %v2466
          %v2971 = vpack.c.bf16 %v2484, %v2476
          %v2972 = vpack.c.bf16 %v2486, %v2478
          %v2973 = vpack.c.bf16 %v2488, %v2480
          %v2974 = vpack.c.bf16 %v2490, %v2482
          %v2975 = vpack.c.bf16 %v2500, %v2492
          %v2976 = vpack.c.bf16 %v2502, %v2494
          %v2977 = vpack.c.bf16 %v2504, %v2496
          %v2978 = vpack.c.bf16 %v2506, %v2498
          %v2979 = vpack.c.bf16 %v2516, %v2508
          %v2980 = vpack.c.bf16 %v2518, %v2510
          %v2981 = vpack.c.bf16 %v2520, %v2512
          %v2982 = vpack.c.bf16 %v2522, %v2514
          %v2983 = vpack.c.bf16 %v2532, %v2524
          %v2984 = vpack.c.bf16 %v2534, %v2526
          %v2985 = vpack.c.bf16 %v2536, %v2528
          %v2986 = vpack.c.bf16 %v2538, %v2530
          %2987 = vmatpush.bf16.msra.mxu0 %v718
          %2988 = vmatpush.bf16.msra.mxu0 %v717
          %2989 = vmatpush.bf16.msra.mxu0 %v716
          %2990 = vmatpush.bf16.msra.mxu0 %v715
          %2991 = vmatpush.bf16.msra.mxu0 %v714
          %2992 = vmatpush.bf16.msra.mxu0 %v713
          %2993 = vmatpush.bf16.msra.mxu0 %v712
          %2994 = vmatpush.bf16.msra.mxu0 %v711
          %2995 = vmatmul.bf16.gmra.mxu0 %v2859
          %v2996 = vpop.f32.mrf.mxu0
          %v2997 = vadd.f32 0.0, %v2996
          %v2998 = vpop.f32.mrf.mxu0
          %v2999 = vadd.f32 0.0, %v2998
          %3000 = vmatmul.bf16.gmra.mxu0 %v2863
          %v3001 = vpop.f32.mrf.mxu0
          %v3002 = vadd.f32 0.0, %v3001
          %v3003 = vpop.f32.mrf.mxu0
          %v3004 = vadd.f32 0.0, %v3003
          %3005 = vmatmul.bf16.gmra.mxu0 %v2867
          %v3006 = vpop.f32.mrf.mxu0
          %v3007 = vadd.f32 0.0, %v3006
          %v3008 = vpop.f32.mrf.mxu0
          %v3009 = vadd.f32 0.0, %v3008
          %3010 = vmatmul.bf16.gmra.mxu0 %v2871
          %v3011 = vpop.f32.mrf.mxu0
          %v3012 = vadd.f32 0.0, %v3011
          %v3013 = vpop.f32.mrf.mxu0
          %v3014 = vadd.f32 0.0, %v3013
          %3015 = vmatmul.bf16.gmra.mxu0 %v2875
          %v3016 = vpop.f32.mrf.mxu0
          %v3017 = vadd.f32 0.0, %v3016
          %v3018 = vpop.f32.mrf.mxu0
          %v3019 = vadd.f32 0.0, %v3018
          %3020 = vmatmul.bf16.gmra.mxu0 %v2879
          %v3021 = vpop.f32.mrf.mxu0
          %v3022 = vadd.f32 0.0, %v3021
          %v3023 = vpop.f32.mrf.mxu0
          %v3024 = vadd.f32 0.0, %v3023
          %3025 = vmatmul.bf16.gmra.mxu0 %v2883
          %v3026 = vpop.f32.mrf.mxu0
          %v3027 = vadd.f32 0.0, %v3026
          %v3028 = vpop.f32.mrf.mxu0
          %v3029 = vadd.f32 0.0, %v3028
          %3030 = vmatmul.bf16.gmra.mxu0 %v2887
          %v3031 = vpop.f32.mrf.mxu0
          %v3032 = vadd.f32 0.0, %v3031
          %v3033 = vpop.f32.mrf.mxu0
          %v3034 = vadd.f32 0.0, %v3033
          %3035 = vmatmul.bf16.gmra.mxu0 %v2891
          %v3036 = vpop.f32.mrf.mxu0
          %v3037 = vadd.f32 0.0, %v3036
          %v3038 = vpop.f32.mrf.mxu0
          %v3039 = vadd.f32 0.0, %v3038
          %3040 = vmatmul.bf16.gmra.mxu0 %v2895
          %v3041 = vpop.f32.mrf.mxu0
          %v3042 = vadd.f32 0.0, %v3041
          %v3043 = vpop.f32.mrf.mxu0
          %v3044 = vadd.f32 0.0, %v3043
          %3045 = vmatmul.bf16.gmra.mxu0 %v2899
          %v3046 = vpop.f32.mrf.mxu0
          %v3047 = vadd.f32 0.0, %v3046
          %v3048 = vpop.f32.mrf.mxu0
          %v3049 = vadd.f32 0.0, %v3048
          %3050 = vmatmul.bf16.gmra.mxu0 %v2903
          %v3051 = vpop.f32.mrf.mxu0
          %v3052 = vadd.f32 0.0, %v3051
          %v3053 = vpop.f32.mrf.mxu0
          %v3054 = vadd.f32 0.0, %v3053
          %3055 = vmatmul.bf16.gmra.mxu0 %v2907
          %v3056 = vpop.f32.mrf.mxu0
          %v3057 = vadd.f32 0.0, %v3056
          %v3058 = vpop.f32.mrf.mxu0
          %v3059 = vadd.f32 0.0, %v3058
          %3060 = vmatmul.bf16.gmra.mxu0 %v2911
          %v3061 = vpop.f32.mrf.mxu0
          %v3062 = vadd.f32 0.0, %v3061
          %v3063 = vpop.f32.mrf.mxu0
          %v3064 = vadd.f32 0.0, %v3063
          %3065 = vmatmul.bf16.gmra.mxu0 %v2915
          %v3066 = vpop.f32.mrf.mxu0
          %v3067 = vadd.f32 0.0, %v3066
          %v3068 = vpop.f32.mrf.mxu0
          %v3069 = vadd.f32 0.0, %v3068
          %3070 = vmatmul.bf16.gmra.mxu0 %v2919
          %v3071 = vpop.f32.mrf.mxu0
          %v3072 = vadd.f32 0.0, %v3071
          %v3073 = vpop.f32.mrf.mxu0
          %v3074 = vadd.f32 0.0, %v3073
          %3075 = vmatmul.bf16.gmra.mxu0 %v2923
          %v3076 = vpop.f32.mrf.mxu0
          %v3077 = vadd.f32 0.0, %v3076
          %v3078 = vpop.f32.mrf.mxu0
          %v3079 = vadd.f32 0.0, %v3078
          %3080 = vmatmul.bf16.gmra.mxu0 %v2927
          %v3081 = vpop.f32.mrf.mxu0
          %v3082 = vadd.f32 0.0, %v3081
          %v3083 = vpop.f32.mrf.mxu0
          %v3084 = vadd.f32 0.0, %v3083
          %3085 = vmatmul.bf16.gmra.mxu0 %v2931
          %v3086 = vpop.f32.mrf.mxu0
          %v3087 = vadd.f32 0.0, %v3086
          %v3088 = vpop.f32.mrf.mxu0
          %v3089 = vadd.f32 0.0, %v3088
          %3090 = vmatmul.bf16.gmra.mxu0 %v2935
          %v3091 = vpop.f32.mrf.mxu0
          %v3092 = vadd.f32 0.0, %v3091
          %v3093 = vpop.f32.mrf.mxu0
          %v3094 = vadd.f32 0.0, %v3093
          %3095 = vmatmul.bf16.gmra.mxu0 %v2939
          %v3096 = vpop.f32.mrf.mxu0
          %v3097 = vadd.f32 0.0, %v3096
          %v3098 = vpop.f32.mrf.mxu0
          %v3099 = vadd.f32 0.0, %v3098
          %3100 = vmatmul.bf16.gmra.mxu0 %v2943
          %v3101 = vpop.f32.mrf.mxu0
          %v3102 = vadd.f32 0.0, %v3101
          %v3103 = vpop.f32.mrf.mxu0
          %v3104 = vadd.f32 0.0, %v3103
          %3105 = vmatmul.bf16.gmra.mxu0 %v2947
          %v3106 = vpop.f32.mrf.mxu0
          %v3107 = vadd.f32 0.0, %v3106
          %v3108 = vpop.f32.mrf.mxu0
          %v3109 = vadd.f32 0.0, %v3108
          %3110 = vmatmul.bf16.gmra.mxu0 %v2951
          %v3111 = vpop.f32.mrf.mxu0
          %v3112 = vadd.f32 0.0, %v3111
          %v3113 = vpop.f32.mrf.mxu0
          %v3114 = vadd.f32 0.0, %v3113
          %3115 = vmatmul.bf16.gmra.mxu0 %v2955
          %v3116 = vpop.f32.mrf.mxu0
          %v3117 = vadd.f32 0.0, %v3116
          %v3118 = vpop.f32.mrf.mxu0
          %v3119 = vadd.f32 0.0, %v3118
          %3120 = vmatmul.bf16.gmra.mxu0 %v2959
          %v3121 = vpop.f32.mrf.mxu0
          %v3122 = vadd.f32 0.0, %v3121
          %v3123 = vpop.f32.mrf.mxu0
          %v3124 = vadd.f32 0.0, %v3123
          %3125 = vmatmul.bf16.gmra.mxu0 %v2963
          %v3126 = vpop.f32.mrf.mxu0
          %v3127 = vadd.f32 0.0, %v3126
          %v3128 = vpop.f32.mrf.mxu0
          %v3129 = vadd.f32 0.0, %v3128
          %3130 = vmatmul.bf16.gmra.mxu0 %v2967
          %v3131 = vpop.f32.mrf.mxu0
          %v3132 = vadd.f32 0.0, %v3131
          %v3133 = vpop.f32.mrf.mxu0
          %v3134 = vadd.f32 0.0, %v3133
          %3135 = vmatmul.bf16.gmra.mxu0 %v2971
          %v3136 = vpop.f32.mrf.mxu0
          %v3137 = vadd.f32 0.0, %v3136
          %v3138 = vpop.f32.mrf.mxu0
          %v3139 = vadd.f32 0.0, %v3138
          %3140 = vmatmul.bf16.gmra.mxu0 %v2975
          %v3141 = vpop.f32.mrf.mxu0
          %v3142 = vadd.f32 0.0, %v3141
          %v3143 = vpop.f32.mrf.mxu0
          %v3144 = vadd.f32 0.0, %v3143
          %3145 = vmatmul.bf16.gmra.mxu0 %v2979
          %v3146 = vpop.f32.mrf.mxu0
          %v3147 = vadd.f32 0.0, %v3146
          %v3148 = vpop.f32.mrf.mxu0
          %v3149 = vadd.f32 0.0, %v3148
          %3150 = vmatmul.bf16.gmra.mxu0 %v2983
          %v3151 = vpop.f32.mrf.mxu0
          %v3152 = vadd.f32 0.0, %v3151
          %v3153 = vpop.f32.mrf.mxu0
          %v3154 = vadd.f32 0.0, %v3153
          %3155 = vdwg.mxu0
          %3156 = vmatpush.bf16.msra.mxu0 %v726
          %3157 = vmatpush.bf16.msra.mxu0 %v725
          %3158 = vmatpush.bf16.msra.mxu0 %v724
          %3159 = vmatpush.bf16.msra.mxu0 %v723
          %3160 = vmatpush.bf16.msra.mxu0 %v722
          %3161 = vmatpush.bf16.msra.mxu0 %v721
          %3162 = vmatpush.bf16.msra.mxu0 %v720
          %3163 = vmatpush.bf16.msra.mxu0 %v719
          %3164 = vmatmul.bf16.gmra.mxu0 %v2860
          %v3165 = vpop.f32.mrf.mxu0
          %v3166 = vadd.f32 %v2997, %v3165
          %v3167 = vpop.f32.mrf.mxu0
          %v3168 = vadd.f32 %v2999, %v3167
          %3169 = vmatmul.bf16.gmra.mxu0 %v2864
          %v3170 = vpop.f32.mrf.mxu0
          %v3171 = vadd.f32 %v3002, %v3170
          %v3172 = vpop.f32.mrf.mxu0
          %v3173 = vadd.f32 %v3004, %v3172
          %3174 = vmatmul.bf16.gmra.mxu0 %v2868
          %v3175 = vpop.f32.mrf.mxu0
          %v3176 = vadd.f32 %v3007, %v3175
          %v3177 = vpop.f32.mrf.mxu0
          %v3178 = vadd.f32 %v3009, %v3177
          %3179 = vmatmul.bf16.gmra.mxu0 %v2872
          %v3180 = vpop.f32.mrf.mxu0
          %v3181 = vadd.f32 %v3012, %v3180
          %v3182 = vpop.f32.mrf.mxu0
          %v3183 = vadd.f32 %v3014, %v3182
          %3184 = vmatmul.bf16.gmra.mxu0 %v2876
          %v3185 = vpop.f32.mrf.mxu0
          %v3186 = vadd.f32 %v3017, %v3185
          %v3187 = vpop.f32.mrf.mxu0
          %v3188 = vadd.f32 %v3019, %v3187
          %3189 = vmatmul.bf16.gmra.mxu0 %v2880
          %v3190 = vpop.f32.mrf.mxu0
          %v3191 = vadd.f32 %v3022, %v3190
          %v3192 = vpop.f32.mrf.mxu0
          %v3193 = vadd.f32 %v3024, %v3192
          %3194 = vmatmul.bf16.gmra.mxu0 %v2884
          %v3195 = vpop.f32.mrf.mxu0
          %v3196 = vadd.f32 %v3027, %v3195
          %v3197 = vpop.f32.mrf.mxu0
          %v3198 = vadd.f32 %v3029, %v3197
          %3199 = vmatmul.bf16.gmra.mxu0 %v2888
          %v3200 = vpop.f32.mrf.mxu0
          %v3201 = vadd.f32 %v3032, %v3200
          %v3202 = vpop.f32.mrf.mxu0
          %v3203 = vadd.f32 %v3034, %v3202
          %3204 = vmatmul.bf16.gmra.mxu0 %v2892
          %v3205 = vpop.f32.mrf.mxu0
          %v3206 = vadd.f32 %v3037, %v3205
          %v3207 = vpop.f32.mrf.mxu0
          %v3208 = vadd.f32 %v3039, %v3207
          %3209 = vmatmul.bf16.gmra.mxu0 %v2896
          %v3210 = vpop.f32.mrf.mxu0
          %v3211 = vadd.f32 %v3042, %v3210
          %v3212 = vpop.f32.mrf.mxu0
          %v3213 = vadd.f32 %v3044, %v3212
          %3214 = vmatmul.bf16.gmra.mxu0 %v2900
          %v3215 = vpop.f32.mrf.mxu0
          %v3216 = vadd.f32 %v3047, %v3215
          %v3217 = vpop.f32.mrf.mxu0
          %v3218 = vadd.f32 %v3049, %v3217
          %3219 = vmatmul.bf16.gmra.mxu0 %v2904
          %v3220 = vpop.f32.mrf.mxu0
          %v3221 = vadd.f32 %v3052, %v3220
          %v3222 = vpop.f32.mrf.mxu0
          %v3223 = vadd.f32 %v3054, %v3222
          %3224 = vmatmul.bf16.gmra.mxu0 %v2908
          %v3225 = vpop.f32.mrf.mxu0
          %v3226 = vadd.f32 %v3057, %v3225
          %v3227 = vpop.f32.mrf.mxu0
          %v3228 = vadd.f32 %v3059, %v3227
          %3229 = vmatmul.bf16.gmra.mxu0 %v2912
          %v3230 = vpop.f32.mrf.mxu0
          %v3231 = vadd.f32 %v3062, %v3230
          %v3232 = vpop.f32.mrf.mxu0
          %v3233 = vadd.f32 %v3064, %v3232
          %3234 = vmatmul.bf16.gmra.mxu0 %v2916
          %v3235 = vpop.f32.mrf.mxu0
          %v3236 = vadd.f32 %v3067, %v3235
          %v3237 = vpop.f32.mrf.mxu0
          %v3238 = vadd.f32 %v3069, %v3237
          %3239 = vmatmul.bf16.gmra.mxu0 %v2920
          %v3240 = vpop.f32.mrf.mxu0
          %v3241 = vadd.f32 %v3072, %v3240
          %v3242 = vpop.f32.mrf.mxu0
          %v3243 = vadd.f32 %v3074, %v3242
          %3244 = vmatmul.bf16.gmra.mxu0 %v2924
          %v3245 = vpop.f32.mrf.mxu0
          %v3246 = vadd.f32 %v3077, %v3245
          %v3247 = vpop.f32.mrf.mxu0
          %v3248 = vadd.f32 %v3079, %v3247
          %3249 = vmatmul.bf16.gmra.mxu0 %v2928
          %v3250 = vpop.f32.mrf.mxu0
          %v3251 = vadd.f32 %v3082, %v3250
          %v3252 = vpop.f32.mrf.mxu0
          %v3253 = vadd.f32 %v3084, %v3252
          %3254 = vmatmul.bf16.gmra.mxu0 %v2932
          %v3255 = vpop.f32.mrf.mxu0
          %v3256 = vadd.f32 %v3087, %v3255
          %v3257 = vpop.f32.mrf.mxu0
          %v3258 = vadd.f32 %v3089, %v3257
          %3259 = vmatmul.bf16.gmra.mxu0 %v2936
          %v3260 = vpop.f32.mrf.mxu0
          %v3261 = vadd.f32 %v3092, %v3260
          %v3262 = vpop.f32.mrf.mxu0
          %v3263 = vadd.f32 %v3094, %v3262
          %3264 = vmatmul.bf16.gmra.mxu0 %v2940
          %v3265 = vpop.f32.mrf.mxu0
          %v3266 = vadd.f32 %v3097, %v3265
          %v3267 = vpop.f32.mrf.mxu0
          %v3268 = vadd.f32 %v3099, %v3267
          %3269 = vmatmul.bf16.gmra.mxu0 %v2944
          %v3270 = vpop.f32.mrf.mxu0
          %v3271 = vadd.f32 %v3102, %v3270
          %v3272 = vpop.f32.mrf.mxu0
          %v3273 = vadd.f32 %v3104, %v3272
          %3274 = vmatmul.bf16.gmra.mxu0 %v2948
          %v3275 = vpop.f32.mrf.mxu0
          %v3276 = vadd.f32 %v3107, %v3275
          %v3277 = vpop.f32.mrf.mxu0
          %v3278 = vadd.f32 %v3109, %v3277
          %3279 = vmatmul.bf16.gmra.mxu0 %v2952
          %v3280 = vpop.f32.mrf.mxu0
          %v3281 = vadd.f32 %v3112, %v3280
          %v3282 = vpop.f32.mrf.mxu0
          %v3283 = vadd.f32 %v3114, %v3282
          %3284 = vmatmul.bf16.gmra.mxu0 %v2956
          %v3285 = vpop.f32.mrf.mxu0
          %v3286 = vadd.f32 %v3117, %v3285
          %v3287 = vpop.f32.mrf.mxu0
          %v3288 = vadd.f32 %v3119, %v3287
          %3289 = vmatmul.bf16.gmra.mxu0 %v2960
          %v3290 = vpop.f32.mrf.mxu0
          %v3291 = vadd.f32 %v3122, %v3290
          %v3292 = vpop.f32.mrf.mxu0
          %v3293 = vadd.f32 %v3124, %v3292
          %3294 = vmatmul.bf16.gmra.mxu0 %v2964
          %v3295 = vpop.f32.mrf.mxu0
          %v3296 = vadd.f32 %v3127, %v3295
          %v3297 = vpop.f32.mrf.mxu0
          %v3298 = vadd.f32 %v3129, %v3297
          %3299 = vmatmul.bf16.gmra.mxu0 %v2968
          %v3300 = vpop.f32.mrf.mxu0
          %v3301 = vadd.f32 %v3132, %v3300
          %v3302 = vpop.f32.mrf.mxu0
          %v3303 = vadd.f32 %v3134, %v3302
          %3304 = vmatmul.bf16.gmra.mxu0 %v2972
          %v3305 = vpop.f32.mrf.mxu0
          %v3306 = vadd.f32 %v3137, %v3305
          %v3307 = vpop.f32.mrf.mxu0
          %v3308 = vadd.f32 %v3139, %v3307
          %3309 = vmatmul.bf16.gmra.mxu0 %v2976
          %v3310 = vpop.f32.mrf.mxu0
          %v3311 = vadd.f32 %v3142, %v3310
          %v3312 = vpop.f32.mrf.mxu0
          %v3313 = vadd.f32 %v3144, %v3312
          %3314 = vmatmul.bf16.gmra.mxu0 %v2980
          %v3315 = vpop.f32.mrf.mxu0
          %v3316 = vadd.f32 %v3147, %v3315
          %v3317 = vpop.f32.mrf.mxu0
          %v3318 = vadd.f32 %v3149, %v3317
          %3319 = vmatmul.bf16.gmra.mxu0 %v2984
          %v3320 = vpop.f32.mrf.mxu0
          %v3321 = vadd.f32 %v3152, %v3320
          %v3322 = vpop.f32.mrf.mxu0
          %v3323 = vadd.f32 %v3154, %v3322
          %3324 = vdwg.mxu0
          %3325 = vmatpush.bf16.msra.mxu0 %v734
          %3326 = vmatpush.bf16.msra.mxu0 %v733
          %3327 = vmatpush.bf16.msra.mxu0 %v732
          %3328 = vmatpush.bf16.msra.mxu0 %v731
          %3329 = vmatpush.bf16.msra.mxu0 %v730
          %3330 = vmatpush.bf16.msra.mxu0 %v729
          %3331 = vmatpush.bf16.msra.mxu0 %v728
          %3332 = vmatpush.bf16.msra.mxu0 %v727
          %3333 = vmatmul.bf16.gmra.mxu0 %v2861
          %v3334 = vpop.f32.mrf.mxu0
          %v3335 = vadd.f32 %v3166, %v3334
          %v3336 = vpop.f32.mrf.mxu0
          %v3337 = vadd.f32 %v3168, %v3336
          %3338 = vmatmul.bf16.gmra.mxu0 %v2865
          %v3339 = vpop.f32.mrf.mxu0
          %v3340 = vadd.f32 %v3171, %v3339
          %v3341 = vpop.f32.mrf.mxu0
          %v3342 = vadd.f32 %v3173, %v3341
          %3343 = vmatmul.bf16.gmra.mxu0 %v2869
          %v3344 = vpop.f32.mrf.mxu0
          %v3345 = vadd.f32 %v3176, %v3344
          %v3346 = vpop.f32.mrf.mxu0
          %v3347 = vadd.f32 %v3178, %v3346
          %3348 = vmatmul.bf16.gmra.mxu0 %v2873
          %v3349 = vpop.f32.mrf.mxu0
          %v3350 = vadd.f32 %v3181, %v3349
          %v3351 = vpop.f32.mrf.mxu0
          %v3352 = vadd.f32 %v3183, %v3351
          %3353 = vmatmul.bf16.gmra.mxu0 %v2877
          %v3354 = vpop.f32.mrf.mxu0
          %v3355 = vadd.f32 %v3186, %v3354
          %v3356 = vpop.f32.mrf.mxu0
          %v3357 = vadd.f32 %v3188, %v3356
          %3358 = vmatmul.bf16.gmra.mxu0 %v2881
          %v3359 = vpop.f32.mrf.mxu0
          %v3360 = vadd.f32 %v3191, %v3359
          %v3361 = vpop.f32.mrf.mxu0
          %v3362 = vadd.f32 %v3193, %v3361
          %3363 = vmatmul.bf16.gmra.mxu0 %v2885
          %v3364 = vpop.f32.mrf.mxu0
          %v3365 = vadd.f32 %v3196, %v3364
          %v3366 = vpop.f32.mrf.mxu0
          %v3367 = vadd.f32 %v3198, %v3366
          %3368 = vmatmul.bf16.gmra.mxu0 %v2889
          %v3369 = vpop.f32.mrf.mxu0
          %v3370 = vadd.f32 %v3201, %v3369
          %v3371 = vpop.f32.mrf.mxu0
          %v3372 = vadd.f32 %v3203, %v3371
          %3373 = vmatmul.bf16.gmra.mxu0 %v2893
          %v3374 = vpop.f32.mrf.mxu0
          %v3375 = vadd.f32 %v3206, %v3374
          %v3376 = vpop.f32.mrf.mxu0
          %v3377 = vadd.f32 %v3208, %v3376
          %3378 = vmatmul.bf16.gmra.mxu0 %v2897
          %v3379 = vpop.f32.mrf.mxu0
          %v3380 = vadd.f32 %v3211, %v3379
          %v3381 = vpop.f32.mrf.mxu0
          %v3382 = vadd.f32 %v3213, %v3381
          %3383 = vmatmul.bf16.gmra.mxu0 %v2901
          %v3384 = vpop.f32.mrf.mxu0
          %v3385 = vadd.f32 %v3216, %v3384
          %v3386 = vpop.f32.mrf.mxu0
          %v3387 = vadd.f32 %v3218, %v3386
          %3388 = vmatmul.bf16.gmra.mxu0 %v2905
          %v3389 = vpop.f32.mrf.mxu0
          %v3390 = vadd.f32 %v3221, %v3389
          %v3391 = vpop.f32.mrf.mxu0
          %v3392 = vadd.f32 %v3223, %v3391
          %3393 = vmatmul.bf16.gmra.mxu0 %v2909
          %v3394 = vpop.f32.mrf.mxu0
          %v3395 = vadd.f32 %v3226, %v3394
          %v3396 = vpop.f32.mrf.mxu0
          %v3397 = vadd.f32 %v3228, %v3396
          %3398 = vmatmul.bf16.gmra.mxu0 %v2913
          %v3399 = vpop.f32.mrf.mxu0
          %v3400 = vadd.f32 %v3231, %v3399
          %v3401 = vpop.f32.mrf.mxu0
          %v3402 = vadd.f32 %v3233, %v3401
          %3403 = vmatmul.bf16.gmra.mxu0 %v2917
          %v3404 = vpop.f32.mrf.mxu0
          %v3405 = vadd.f32 %v3236, %v3404
          %v3406 = vpop.f32.mrf.mxu0
          %v3407 = vadd.f32 %v3238, %v3406
          %3408 = vmatmul.bf16.gmra.mxu0 %v2921
          %v3409 = vpop.f32.mrf.mxu0
          %v3410 = vadd.f32 %v3241, %v3409
          %v3411 = vpop.f32.mrf.mxu0
          %v3412 = vadd.f32 %v3243, %v3411
          %3413 = vmatmul.bf16.gmra.mxu0 %v2925
          %v3414 = vpop.f32.mrf.mxu0
          %v3415 = vadd.f32 %v3246, %v3414
          %v3416 = vpop.f32.mrf.mxu0
          %v3417 = vadd.f32 %v3248, %v3416
          %3418 = vmatmul.bf16.gmra.mxu0 %v2929
          %v3419 = vpop.f32.mrf.mxu0
          %v3420 = vadd.f32 %v3251, %v3419
          %v3421 = vpop.f32.mrf.mxu0
          %v3422 = vadd.f32 %v3253, %v3421
          %3423 = vmatmul.bf16.gmra.mxu0 %v2933
          %v3424 = vpop.f32.mrf.mxu0
          %v3425 = vadd.f32 %v3256, %v3424
          %v3426 = vpop.f32.mrf.mxu0
          %v3427 = vadd.f32 %v3258, %v3426
          %3428 = vmatmul.bf16.gmra.mxu0 %v2937
          %v3429 = vpop.f32.mrf.mxu0
          %v3430 = vadd.f32 %v3261, %v3429
          %v3431 = vpop.f32.mrf.mxu0
          %v3432 = vadd.f32 %v3263, %v3431
          %3433 = vmatmul.bf16.gmra.mxu0 %v2941
          %v3434 = vpop.f32.mrf.mxu0
          %v3435 = vadd.f32 %v3266, %v3434
          %v3436 = vpop.f32.mrf.mxu0
          %v3437 = vadd.f32 %v3268, %v3436
          %3438 = vmatmul.bf16.gmra.mxu0 %v2945
          %v3439 = vpop.f32.mrf.mxu0
          %v3440 = vadd.f32 %v3271, %v3439
          %v3441 = vpop.f32.mrf.mxu0
          %v3442 = vadd.f32 %v3273, %v3441
          %3443 = vmatmul.bf16.gmra.mxu0 %v2949
          %v3444 = vpop.f32.mrf.mxu0
          %v3445 = vadd.f32 %v3276, %v3444
          %v3446 = vpop.f32.mrf.mxu0
          %v3447 = vadd.f32 %v3278, %v3446
          %3448 = vmatmul.bf16.gmra.mxu0 %v2953
          %v3449 = vpop.f32.mrf.mxu0
          %v3450 = vadd.f32 %v3281, %v3449
          %v3451 = vpop.f32.mrf.mxu0
          %v3452 = vadd.f32 %v3283, %v3451
          %3453 = vmatmul.bf16.gmra.mxu0 %v2957
          %v3454 = vpop.f32.mrf.mxu0
          %v3455 = vadd.f32 %v3286, %v3454
          %v3456 = vpop.f32.mrf.mxu0
          %v3457 = vadd.f32 %v3288, %v3456
          %3458 = vmatmul.bf16.gmra.mxu0 %v2961
          %v3459 = vpop.f32.mrf.mxu0
          %v3460 = vadd.f32 %v3291, %v3459
          %v3461 = vpop.f32.mrf.mxu0
          %v3462 = vadd.f32 %v3293, %v3461
          %3463 = vmatmul.bf16.gmra.mxu0 %v2965
          %v3464 = vpop.f32.mrf.mxu0
          %v3465 = vadd.f32 %v3296, %v3464
          %v3466 = vpop.f32.mrf.mxu0
          %v3467 = vadd.f32 %v3298, %v3466
          %3468 = vmatmul.bf16.gmra.mxu0 %v2969
          %v3469 = vpop.f32.mrf.mxu0
          %v3470 = vadd.f32 %v3301, %v3469
          %v3471 = vpop.f32.mrf.mxu0
          %v3472 = vadd.f32 %v3303, %v3471
          %3473 = vmatmul.bf16.gmra.mxu0 %v2973
          %v3474 = vpop.f32.mrf.mxu0
          %v3475 = vadd.f32 %v3306, %v3474
          %v3476 = vpop.f32.mrf.mxu0
          %v3477 = vadd.f32 %v3308, %v3476
          %3478 = vmatmul.bf16.gmra.mxu0 %v2977
          %v3479 = vpop.f32.mrf.mxu0
          %v3480 = vadd.f32 %v3311, %v3479
          %v3481 = vpop.f32.mrf.mxu0
          %v3482 = vadd.f32 %v3313, %v3481
          %3483 = vmatmul.bf16.gmra.mxu0 %v2981
          %v3484 = vpop.f32.mrf.mxu0
          %v3485 = vadd.f32 %v3316, %v3484
          %v3486 = vpop.f32.mrf.mxu0
          %v3487 = vadd.f32 %v3318, %v3486
          %3488 = vmatmul.bf16.gmra.mxu0 %v2985
          %v3489 = vpop.f32.mrf.mxu0
          %v3490 = vadd.f32 %v3321, %v3489
          %v3491 = vpop.f32.mrf.mxu0
          %v3492 = vadd.f32 %v3323, %v3491
          %3493 = vdwg.mxu0
          %3494 = vmatpush.bf16.msra.mxu0 %v742
          %3495 = vmatpush.bf16.msra.mxu0 %v741
          %3496 = vmatpush.bf16.msra.mxu0 %v740
          %3497 = vmatpush.bf16.msra.mxu0 %v739
          %3498 = vmatpush.bf16.msra.mxu0 %v738
          %3499 = vmatpush.bf16.msra.mxu0 %v737
          %3500 = vmatpush.bf16.msra.mxu0 %v736
          %3501 = vmatpush.bf16.msra.mxu0 %v735
          %3502 = vmatmul.bf16.gmra.mxu0 %v2862
          %v3503 = vpop.f32.mrf.mxu0
          %v3504 = vadd.f32 %v3335, %v3503
          %v3505 = vpop.f32.mrf.mxu0
          %v3506 = vadd.f32 %v3337, %v3505
          %3507 = vmatmul.bf16.gmra.mxu0 %v2866
          %v3508 = vpop.f32.mrf.mxu0
          %v3509 = vadd.f32 %v3340, %v3508
          %v3510 = vpop.f32.mrf.mxu0
          %v3511 = vadd.f32 %v3342, %v3510
          %3512 = vmatmul.bf16.gmra.mxu0 %v2870
          %v3513 = vpop.f32.mrf.mxu0
          %v3514 = vadd.f32 %v3345, %v3513
          %v3515 = vpop.f32.mrf.mxu0
          %v3516 = vadd.f32 %v3347, %v3515
          %3517 = vmatmul.bf16.gmra.mxu0 %v2874
          %v3518 = vpop.f32.mrf.mxu0
          %v3519 = vadd.f32 %v3350, %v3518
          %v3520 = vpop.f32.mrf.mxu0
          %v3521 = vadd.f32 %v3352, %v3520
          %3522 = vmatmul.bf16.gmra.mxu0 %v2878
          %v3523 = vpop.f32.mrf.mxu0
          %v3524 = vadd.f32 %v3355, %v3523
          %v3525 = vpop.f32.mrf.mxu0
          %v3526 = vadd.f32 %v3357, %v3525
          %3527 = vmatmul.bf16.gmra.mxu0 %v2882
          %v3528 = vpop.f32.mrf.mxu0
          %v3529 = vadd.f32 %v3360, %v3528
          %v3530 = vpop.f32.mrf.mxu0
          %v3531 = vadd.f32 %v3362, %v3530
          %3532 = vmatmul.bf16.gmra.mxu0 %v2886
          %v3533 = vpop.f32.mrf.mxu0
          %v3534 = vadd.f32 %v3365, %v3533
          %v3535 = vpop.f32.mrf.mxu0
          %v3536 = vadd.f32 %v3367, %v3535
          %3537 = vmatmul.bf16.gmra.mxu0 %v2890
          %v3538 = vpop.f32.mrf.mxu0
          %v3539 = vadd.f32 %v3370, %v3538
          %v3540 = vpop.f32.mrf.mxu0
          %v3541 = vadd.f32 %v3372, %v3540
          %3542 = vmatmul.bf16.gmra.mxu0 %v2894
          %v3543 = vpop.f32.mrf.mxu0
          %v3544 = vadd.f32 %v3375, %v3543
          %v3545 = vpop.f32.mrf.mxu0
          %v3546 = vadd.f32 %v3377, %v3545
          %3547 = vmatmul.bf16.gmra.mxu0 %v2898
          %v3548 = vpop.f32.mrf.mxu0
          %v3549 = vadd.f32 %v3380, %v3548
          %v3550 = vpop.f32.mrf.mxu0
          %v3551 = vadd.f32 %v3382, %v3550
          %3552 = vmatmul.bf16.gmra.mxu0 %v2902
          %v3553 = vpop.f32.mrf.mxu0
          %v3554 = vadd.f32 %v3385, %v3553
          %v3555 = vpop.f32.mrf.mxu0
          %v3556 = vadd.f32 %v3387, %v3555
          %3557 = vmatmul.bf16.gmra.mxu0 %v2906
          %v3558 = vpop.f32.mrf.mxu0
          %v3559 = vadd.f32 %v3390, %v3558
          %v3560 = vpop.f32.mrf.mxu0
          %v3561 = vadd.f32 %v3392, %v3560
          %3562 = vmatmul.bf16.gmra.mxu0 %v2910
          %v3563 = vpop.f32.mrf.mxu0
          %v3564 = vadd.f32 %v3395, %v3563
          %v3565 = vpop.f32.mrf.mxu0
          %v3566 = vadd.f32 %v3397, %v3565
          %3567 = vmatmul.bf16.gmra.mxu0 %v2914
          %v3568 = vpop.f32.mrf.mxu0
          %v3569 = vadd.f32 %v3400, %v3568
          %v3570 = vpop.f32.mrf.mxu0
          %v3571 = vadd.f32 %v3402, %v3570
          %3572 = vmatmul.bf16.gmra.mxu0 %v2918
          %v3573 = vpop.f32.mrf.mxu0
          %v3574 = vadd.f32 %v3405, %v3573
          %v3575 = vpop.f32.mrf.mxu0
          %v3576 = vadd.f32 %v3407, %v3575
          %3577 = vmatmul.bf16.gmra.mxu0 %v2922
          %v3578 = vpop.f32.mrf.mxu0
          %v3579 = vadd.f32 %v3410, %v3578
          %v3580 = vpop.f32.mrf.mxu0
          %v3581 = vadd.f32 %v3412, %v3580
          %3582 = vmatmul.bf16.gmra.mxu0 %v2926
          %v3583 = vpop.f32.mrf.mxu0
          %v3584 = vadd.f32 %v3415, %v3583
          %v3585 = vpop.f32.mrf.mxu0
          %v3586 = vadd.f32 %v3417, %v3585
          %3587 = vmatmul.bf16.gmra.mxu0 %v2930
          %v3588 = vpop.f32.mrf.mxu0
          %v3589 = vadd.f32 %v3420, %v3588
          %v3590 = vpop.f32.mrf.mxu0
          %v3591 = vadd.f32 %v3422, %v3590
          %3592 = vmatmul.bf16.gmra.mxu0 %v2934
          %v3593 = vpop.f32.mrf.mxu0
          %v3594 = vadd.f32 %v3425, %v3593
          %v3595 = vpop.f32.mrf.mxu0
          %v3596 = vadd.f32 %v3427, %v3595
          %3597 = vmatmul.bf16.gmra.mxu0 %v2938
          %v3598 = vpop.f32.mrf.mxu0
          %v3599 = vadd.f32 %v3430, %v3598
          %v3600 = vpop.f32.mrf.mxu0
          %v3601 = vadd.f32 %v3432, %v3600
          %3602 = vmatmul.bf16.gmra.mxu0 %v2942
          %v3603 = vpop.f32.mrf.mxu0
          %v3604 = vadd.f32 %v3435, %v3603
          %v3605 = vpop.f32.mrf.mxu0
          %v3606 = vadd.f32 %v3437, %v3605
          %3607 = vmatmul.bf16.gmra.mxu0 %v2946
          %v3608 = vpop.f32.mrf.mxu0
          %v3609 = vadd.f32 %v3440, %v3608
          %v3610 = vpop.f32.mrf.mxu0
          %v3611 = vadd.f32 %v3442, %v3610
          %3612 = vmatmul.bf16.gmra.mxu0 %v2950
          %v3613 = vpop.f32.mrf.mxu0
          %v3614 = vadd.f32 %v3445, %v3613
          %v3615 = vpop.f32.mrf.mxu0
          %v3616 = vadd.f32 %v3447, %v3615
          %3617 = vmatmul.bf16.gmra.mxu0 %v2954
          %v3618 = vpop.f32.mrf.mxu0
          %v3619 = vadd.f32 %v3450, %v3618
          %v3620 = vpop.f32.mrf.mxu0
          %v3621 = vadd.f32 %v3452, %v3620
          %3622 = vmatmul.bf16.gmra.mxu0 %v2958
          %v3623 = vpop.f32.mrf.mxu0
          %v3624 = vadd.f32 %v3455, %v3623
          %v3625 = vpop.f32.mrf.mxu0
          %v3626 = vadd.f32 %v3457, %v3625
          %3627 = vmatmul.bf16.gmra.mxu0 %v2962
          %v3628 = vpop.f32.mrf.mxu0
          %v3629 = vadd.f32 %v3460, %v3628
          %v3630 = vpop.f32.mrf.mxu0
          %v3631 = vadd.f32 %v3462, %v3630
          %3632 = vmatmul.bf16.gmra.mxu0 %v2966
          %v3633 = vpop.f32.mrf.mxu0
          %v3634 = vadd.f32 %v3465, %v3633
          %v3635 = vpop.f32.mrf.mxu0
          %v3636 = vadd.f32 %v3467, %v3635
          %3637 = vmatmul.bf16.gmra.mxu0 %v2970
          %v3638 = vpop.f32.mrf.mxu0
          %v3639 = vadd.f32 %v3470, %v3638
          %v3640 = vpop.f32.mrf.mxu0
          %v3641 = vadd.f32 %v3472, %v3640
          %3642 = vmatmul.bf16.gmra.mxu0 %v2974
          %v3643 = vpop.f32.mrf.mxu0
          %v3644 = vadd.f32 %v3475, %v3643
          %v3645 = vpop.f32.mrf.mxu0
          %v3646 = vadd.f32 %v3477, %v3645
          %3647 = vmatmul.bf16.gmra.mxu0 %v2978
          %v3648 = vpop.f32.mrf.mxu0
          %v3649 = vadd.f32 %v3480, %v3648
          %v3650 = vpop.f32.mrf.mxu0
          %v3651 = vadd.f32 %v3482, %v3650
          %3652 = vmatmul.bf16.gmra.mxu0 %v2982
          %v3653 = vpop.f32.mrf.mxu0
          %v3654 = vadd.f32 %v3485, %v3653
          %v3655 = vpop.f32.mrf.mxu0
          %v3656 = vadd.f32 %v3487, %v3655
          %3657 = vmatmul.bf16.gmra.mxu0 %v2986
          %v3658 = vpop.f32.mrf.mxu0
          %v3659 = vadd.f32 %v3490, %v3658
          %v3660 = vpop.f32.mrf.mxu0
          %v3661 = vadd.f32 %v3492, %v3660
          %3662 = vdwg.mxu0
          %v3663 = vrcp.pop %v2543
          %v3664 = vrcp.pop %v2548
          %v3665 = vrcp.pop %v2553
          %v3666 = vrcp.pop %v2558
          %v3667 = vrcp.pop %v2563
          %v3668 = vrcp.pop %v2568
          %v3669 = vrcp.pop %v2573
          %v3670 = vrcp.pop %v2578
          %v3671 = vrcp.pop %v2583
          %v3672 = vrcp.pop %v2588
          %v3673 = vrcp.pop %v2593
          %v3674 = vrcp.pop %v2598
          %v3675 = vrcp.pop %v2603
          %v3676 = vrcp.pop %v2608
          %v3677 = vrcp.pop %v2613
          %v3678 = vrcp.pop %v2618
          %v3679 = vrcp.pop %v2623
          %v3680 = vrcp.pop %v2628
          %v3681 = vrcp.pop %v2633
          %v3682 = vrcp.pop %v2638
          %v3683 = vrcp.pop %v2643
          %v3684 = vrcp.pop %v2648
          %v3685 = vrcp.pop %v2653
          %v3686 = vrcp.pop %v2658
          %v3687 = vrcp.pop %v2663
          %v3688 = vrcp.pop %v2668
          %v3689 = vrcp.pop %v2673
          %v3690 = vrcp.pop %v2678
          %v3691 = vrcp.pop %v2683
          %v3692 = vrcp.pop %v2688
          %v3693 = vrcp.pop %v2693
          %v3694 = vrcp.pop %v2698
          %v3695 = vrcp.pop %v2703
          %v3696 = vrcp.pop %v2708
          %v3697 = vrcp.pop %v2713
          %v3698 = vrcp.pop %v2718
          %v3699 = vrcp.pop %v2723
          %v3700 = vrcp.pop %v2728
          %v3701 = vrcp.pop %v2733
          %v3702 = vrcp.pop %v2738
          %v3703 = vrcp.pop %v2743
          %v3704 = vrcp.pop %v2748
          %v3705 = vrcp.pop %v2753
          %v3706 = vrcp.pop %v2758
          %v3707 = vrcp.pop %v2763
          %v3708 = vrcp.pop %v2768
          %v3709 = vrcp.pop %v2773
          %v3710 = vrcp.pop %v2778
          %v3711 = vrcp.pop %v2783
          %v3712 = vrcp.pop %v2788
          %v3713 = vrcp.pop %v2793
          %v3714 = vrcp.pop %v2798
          %v3715 = vrcp.pop %v2803
          %v3716 = vrcp.pop %v2808
          %v3717 = vrcp.pop %v2813
          %v3718 = vrcp.pop %v2818
          %v3719 = vrcp.pop %v2823
          %v3720 = vrcp.pop %v2828
          %v3721 = vrcp.pop %v2833
          %v3722 = vrcp.pop %v2838
          %v3723 = vrcp.pop %v2843
          %v3724 = vrcp.pop %v2848
          %v3725 = vrcp.pop %v2853
          %v3726 = vrcp.pop %v2858
          %v3727 = vmul.f32 %v3504, %v3663
          %v3728 = vmul.f32 %v3506, %v3664
          %v3729 = vmul.f32 %v3509, %v3665
          %v3730 = vmul.f32 %v3511, %v3666
          %v3731 = vmul.f32 %v3514, %v3667
          %v3732 = vmul.f32 %v3516, %v3668
          %v3733 = vmul.f32 %v3519, %v3669
          %v3734 = vmul.f32 %v3521, %v3670
          %v3735 = vmul.f32 %v3524, %v3671
          %v3736 = vmul.f32 %v3526, %v3672
          %v3737 = vmul.f32 %v3529, %v3673
          %v3738 = vmul.f32 %v3531, %v3674
          %v3739 = vmul.f32 %v3534, %v3675
          %v3740 = vmul.f32 %v3536, %v3676
          %v3741 = vmul.f32 %v3539, %v3677
          %v3742 = vmul.f32 %v3541, %v3678
          %v3743 = vmul.f32 %v3544, %v3679
          %v3744 = vmul.f32 %v3546, %v3680
          %v3745 = vmul.f32 %v3549, %v3681
          %v3746 = vmul.f32 %v3551, %v3682
          %v3747 = vmul.f32 %v3554, %v3683
          %v3748 = vmul.f32 %v3556, %v3684
          %v3749 = vmul.f32 %v3559, %v3685
          %v3750 = vmul.f32 %v3561, %v3686
          %v3751 = vmul.f32 %v3564, %v3687
          %v3752 = vmul.f32 %v3566, %v3688
          %v3753 = vmul.f32 %v3569, %v3689
          %v3754 = vmul.f32 %v3571, %v3690
          %v3755 = vmul.f32 %v3574, %v3691
          %v3756 = vmul.f32 %v3576, %v3692
          %v3757 = vmul.f32 %v3579, %v3693
          %v3758 = vmul.f32 %v3581, %v3694
          %v3759 = vmul.f32 %v3584, %v3695
          %v3760 = vmul.f32 %v3586, %v3696
          %v3761 = vmul.f32 %v3589, %v3697
          %v3762 = vmul.f32 %v3591, %v3698
          %v3763 = vmul.f32 %v3594, %v3699
          %v3764 = vmul.f32 %v3596, %v3700
          %v3765 = vmul.f32 %v3599, %v3701
          %v3766 = vmul.f32 %v3601, %v3702
          %v3767 = vmul.f32 %v3604, %v3703
          %v3768 = vmul.f32 %v3606, %v3704
          %v3769 = vmul.f32 %v3609, %v3705
          %v3770 = vmul.f32 %v3611, %v3706
          %v3771 = vmul.f32 %v3614, %v3707
          %v3772 = vmul.f32 %v3616, %v3708
          %v3773 = vmul.f32 %v3619, %v3709
          %v3774 = vmul.f32 %v3621, %v3710
          %v3775 = vmul.f32 %v3624, %v3711
          %v3776 = vmul.f32 %v3626, %v3712
          %v3777 = vmul.f32 %v3629, %v3713
          %v3778 = vmul.f32 %v3631, %v3714
          %v3779 = vmul.f32 %v3634, %v3715
          %v3780 = vmul.f32 %v3636, %v3716
          %v3781 = vmul.f32 %v3639, %v3717
          %v3782 = vmul.f32 %v3641, %v3718
          %v3783 = vmul.f32 %v3644, %v3719
          %v3784 = vmul.f32 %v3646, %v3720
          %v3785 = vmul.f32 %v3649, %v3721
          %v3786 = vmul.f32 %v3651, %v3722
          %v3787 = vmul.f32 %v3654, %v3723
          %v3788 = vmul.f32 %v3656, %v3724
          %v3789 = vmul.f32 %v3659, %v3725
          %v3790 = vmul.f32 %v3661, %v3726
          %v3791 = vld [vmem:[%s249] sm:$0xff]
          %v3792 = vld [vmem:[%s249 + $0x8] sm:$0xff]
          %v3793 = vld [vmem:[%s249 + $0x10] sm:$0xff]
          %v3794 = vld [vmem:[%s249 + $0x18] sm:$0xff]
          %v3795 = vld [vmem:[%s249 + $0x20] sm:$0xff]
          %v3796 = vld [vmem:[%s249 + $0x28] sm:$0xff]
          %v3797 = vld [vmem:[%s249 + $0x30] sm:$0xff]
          %v3798 = vld [vmem:[%s249 + $0x38] sm:$0xff]
          %v3799 = vld [vmem:[%s249 + $0x40] sm:$0xff]
          %v3800 = vld [vmem:[%s249 + $0x48] sm:$0xff]
          %v3801 = vld [vmem:[%s249 + $0x50] sm:$0xff]
          %v3802 = vld [vmem:[%s249 + $0x58] sm:$0xff]
          %v3803 = vld [vmem:[%s249 + $0x60] sm:$0xff]
          %v3804 = vld [vmem:[%s249 + $0x68] sm:$0xff]
          %v3805 = vld [vmem:[%s249 + $0x70] sm:$0xff]
          %v3806 = vld [vmem:[%s249 + $0x78] sm:$0xff]
          %v3807 = vld [vmem:[%s249 + $0x80] sm:$0xff]
          %v3808 = vld [vmem:[%s249 + $0x88] sm:$0xff]
          %v3809 = vld [vmem:[%s249 + $0x90] sm:$0xff]
          %v3810 = vld [vmem:[%s249 + $0x98] sm:$0xff]
          %v3811 = vld [vmem:[%s249 + $0xa0] sm:$0xff]
          %v3812 = vld [vmem:[%s249 + $0xa8] sm:$0xff]
          %v3813 = vld [vmem:[%s249 + $0xb0] sm:$0xff]
          %v3814 = vld [vmem:[%s249 + $0xb8] sm:$0xff]
          %v3815 = vld [vmem:[%s249 + $0xc0] sm:$0xff]
          %v3816 = vld [vmem:[%s249 + $0xc8] sm:$0xff]
          %v3817 = vld [vmem:[%s249 + $0xd0] sm:$0xff]
          %v3818 = vld [vmem:[%s249 + $0xd8] sm:$0xff]
          %v3819 = vld [vmem:[%s249 + $0xe0] sm:$0xff]
          %v3820 = vld [vmem:[%s249 + $0xe8] sm:$0xff]
          %v3821 = vld [vmem:[%s249 + $0xf0] sm:$0xff]
          %v3822 = vld [vmem:[%s249 + $0xf8] sm:$0xff]
          %v3823 = vld [vmem:[%s249 + $0x100] sm:$0xff]
          %v3824 = vld [vmem:[%s249 + $0x108] sm:$0xff]
          %v3825 = vld [vmem:[%s249 + $0x110] sm:$0xff]
          %v3826 = vld [vmem:[%s249 + $0x118] sm:$0xff]
          %v3827 = vld [vmem:[%s249 + $0x120] sm:$0xff]
          %v3828 = vld [vmem:[%s249 + $0x128] sm:$0xff]
          %v3829 = vld [vmem:[%s249 + $0x130] sm:$0xff]
          %v3830 = vld [vmem:[%s249 + $0x138] sm:$0xff]
          %v3831 = vld [vmem:[%s249 + $0x140] sm:$0xff]
          %v3832 = vld [vmem:[%s249 + $0x148] sm:$0xff]
          %v3833 = vld [vmem:[%s249 + $0x150] sm:$0xff]
          %v3834 = vld [vmem:[%s249 + $0x158] sm:$0xff]
          %v3835 = vld [vmem:[%s249 + $0x160] sm:$0xff]
          %v3836 = vld [vmem:[%s249 + $0x168] sm:$0xff]
          %v3837 = vld [vmem:[%s249 + $0x170] sm:$0xff]
          %v3838 = vld [vmem:[%s249 + $0x178] sm:$0xff]
          %v3839 = vld [vmem:[%s249 + $0x180] sm:$0xff]
          %v3840 = vld [vmem:[%s249 + $0x188] sm:$0xff]
          %v3841 = vld [vmem:[%s249 + $0x190] sm:$0xff]
          %v3842 = vld [vmem:[%s249 + $0x198] sm:$0xff]
          %v3843 = vld [vmem:[%s249 + $0x1a0] sm:$0xff]
          %v3844 = vld [vmem:[%s249 + $0x1a8] sm:$0xff]
          %v3845 = vld [vmem:[%s249 + $0x1b0] sm:$0xff]
          %v3846 = vld [vmem:[%s249 + $0x1b8] sm:$0xff]
          %v3847 = vld [vmem:[%s249 + $0x1c0] sm:$0xff]
          %v3848 = vld [vmem:[%s249 + $0x1c8] sm:$0xff]
          %v3849 = vld [vmem:[%s249 + $0x1d0] sm:$0xff]
          %v3850 = vld [vmem:[%s249 + $0x1d8] sm:$0xff]
          %v3851 = vld [vmem:[%s249 + $0x1e0] sm:$0xff]
          %v3852 = vld [vmem:[%s249 + $0x1e8] sm:$0xff]
          %v3853 = vld [vmem:[%s249 + $0x1f0] sm:$0xff]
          %v3854 = vld [vmem:[%s249 + $0x1f8] sm:$0xff]
          %vm3855 = vcmp.gt.f32.partialorder %v3791, 0.0
          %vm3856 = vcmp.gt.f32.partialorder %v3792, 0.0
          %vm3857 = vcmp.gt.f32.partialorder %v3793, 0.0
          %vm3858 = vcmp.gt.f32.partialorder %v3794, 0.0
          %vm3859 = vcmp.gt.f32.partialorder %v3795, 0.0
          %vm3860 = vcmp.gt.f32.partialorder %v3796, 0.0
          %vm3861 = vcmp.gt.f32.partialorder %v3797, 0.0
          %vm3862 = vcmp.gt.f32.partialorder %v3798, 0.0
          %vm3863 = vcmp.gt.f32.partialorder %v3799, 0.0
          %vm3864 = vcmp.gt.f32.partialorder %v3800, 0.0
          %vm3865 = vcmp.gt.f32.partialorder %v3801, 0.0
          %vm3866 = vcmp.gt.f32.partialorder %v3802, 0.0
          %vm3867 = vcmp.gt.f32.partialorder %v3803, 0.0
          %vm3868 = vcmp.gt.f32.partialorder %v3804, 0.0
          %vm3869 = vcmp.gt.f32.partialorder %v3805, 0.0
          %vm3870 = vcmp.gt.f32.partialorder %v3806, 0.0
          %vm3871 = vcmp.gt.f32.partialorder %v3807, 0.0
          %vm3872 = vcmp.gt.f32.partialorder %v3808, 0.0
          %vm3873 = vcmp.gt.f32.partialorder %v3809, 0.0
          %vm3874 = vcmp.gt.f32.partialorder %v3810, 0.0
          %vm3875 = vcmp.gt.f32.partialorder %v3811, 0.0
          %vm3876 = vcmp.gt.f32.partialorder %v3812, 0.0
          %vm3877 = vcmp.gt.f32.partialorder %v3813, 0.0
          %vm3878 = vcmp.gt.f32.partialorder %v3814, 0.0
          %vm3879 = vcmp.gt.f32.partialorder %v3815, 0.0
          %vm3880 = vcmp.gt.f32.partialorder %v3816, 0.0
          %vm3881 = vcmp.gt.f32.partialorder %v3817, 0.0
          %vm3882 = vcmp.gt.f32.partialorder %v3818, 0.0
          %vm3883 = vcmp.gt.f32.partialorder %v3819, 0.0
          %vm3884 = vcmp.gt.f32.partialorder %v3820, 0.0
          %vm3885 = vcmp.gt.f32.partialorder %v3821, 0.0
          %vm3886 = vcmp.gt.f32.partialorder %v3822, 0.0
          %vm3887 = vcmp.gt.f32.partialorder %v3823, 0.0
          %vm3888 = vcmp.gt.f32.partialorder %v3824, 0.0
          %vm3889 = vcmp.gt.f32.partialorder %v3825, 0.0
          %vm3890 = vcmp.gt.f32.partialorder %v3826, 0.0
          %vm3891 = vcmp.gt.f32.partialorder %v3827, 0.0
          %vm3892 = vcmp.gt.f32.partialorder %v3828, 0.0
          %vm3893 = vcmp.gt.f32.partialorder %v3829, 0.0
          %vm3894 = vcmp.gt.f32.partialorder %v3830, 0.0
          %vm3895 = vcmp.gt.f32.partialorder %v3831, 0.0
          %vm3896 = vcmp.gt.f32.partialorder %v3832, 0.0
          %vm3897 = vcmp.gt.f32.partialorder %v3833, 0.0
          %vm3898 = vcmp.gt.f32.partialorder %v3834, 0.0
          %vm3899 = vcmp.gt.f32.partialorder %v3835, 0.0
          %vm3900 = vcmp.gt.f32.partialorder %v3836, 0.0
          %vm3901 = vcmp.gt.f32.partialorder %v3837, 0.0
          %vm3902 = vcmp.gt.f32.partialorder %v3838, 0.0
          %vm3903 = vcmp.gt.f32.partialorder %v3839, 0.0
          %vm3904 = vcmp.gt.f32.partialorder %v3840, 0.0
          %vm3905 = vcmp.gt.f32.partialorder %v3841, 0.0
          %vm3906 = vcmp.gt.f32.partialorder %v3842, 0.0
          %vm3907 = vcmp.gt.f32.partialorder %v3843, 0.0
          %vm3908 = vcmp.gt.f32.partialorder %v3844, 0.0
          %vm3909 = vcmp.gt.f32.partialorder %v3845, 0.0
          %vm3910 = vcmp.gt.f32.partialorder %v3846, 0.0
          %vm3911 = vcmp.gt.f32.partialorder %v3847, 0.0
          %vm3912 = vcmp.gt.f32.partialorder %v3848, 0.0
          %vm3913 = vcmp.gt.f32.partialorder %v3849, 0.0
          %vm3914 = vcmp.gt.f32.partialorder %v3850, 0.0
          %vm3915 = vcmp.gt.f32.partialorder %v3851, 0.0
          %vm3916 = vcmp.gt.f32.partialorder %v3852, 0.0
          %vm3917 = vcmp.gt.f32.partialorder %v3853, 0.0
          %vm3918 = vcmp.gt.f32.partialorder %v3854, 0.0
          %v3919 = vsel %vm3855, 1, 0
          %v3920 = vsel %vm3856, 1, 0
          %v3921 = vsel %vm3857, 1, 0
          %v3922 = vsel %vm3858, 1, 0
          %v3923 = vsel %vm3859, 1, 0
          %v3924 = vsel %vm3860, 1, 0
          %v3925 = vsel %vm3861, 1, 0
          %v3926 = vsel %vm3862, 1, 0
          %v3927 = vsel %vm3863, 1, 0
          %v3928 = vsel %vm3864, 1, 0
          %v3929 = vsel %vm3865, 1, 0
          %v3930 = vsel %vm3866, 1, 0
          %v3931 = vsel %vm3867, 1, 0
          %v3932 = vsel %vm3868, 1, 0
          %v3933 = vsel %vm3869, 1, 0
          %v3934 = vsel %vm3870, 1, 0
          %v3935 = vsel %vm3871, 1, 0
          %v3936 = vsel %vm3872, 1, 0
          %v3937 = vsel %vm3873, 1, 0
          %v3938 = vsel %vm3874, 1, 0
          %v3939 = vsel %vm3875, 1, 0
          %v3940 = vsel %vm3876, 1, 0
          %v3941 = vsel %vm3877, 1, 0
          %v3942 = vsel %vm3878, 1, 0
          %v3943 = vsel %vm3879, 1, 0
          %v3944 = vsel %vm3880, 1, 0
          %v3945 = vsel %vm3881, 1, 0
          %v3946 = vsel %vm3882, 1, 0
          %v3947 = vsel %vm3883, 1, 0
          %v3948 = vsel %vm3884, 1, 0
          %v3949 = vsel %vm3885, 1, 0
          %v3950 = vsel %vm3886, 1, 0
          %v3951 = vsel %vm3887, 1, 0
          %v3952 = vsel %vm3888, 1, 0
          %v3953 = vsel %vm3889, 1, 0
          %v3954 = vsel %vm3890, 1, 0
          %v3955 = vsel %vm3891, 1, 0
          %v3956 = vsel %vm3892, 1, 0
          %v3957 = vsel %vm3893, 1, 0
          %v3958 = vsel %vm3894, 1, 0
          %v3959 = vsel %vm3895, 1, 0
          %v3960 = vsel %vm3896, 1, 0
          %v3961 = vsel %vm3897, 1, 0
          %v3962 = vsel %vm3898, 1, 0
          %v3963 = vsel %vm3899, 1, 0
          %v3964 = vsel %vm3900, 1, 0
          %v3965 = vsel %vm3901, 1, 0
          %v3966 = vsel %vm3902, 1, 0
          %v3967 = vsel %vm3903, 1, 0
          %v3968 = vsel %vm3904, 1, 0
          %v3969 = vsel %vm3905, 1, 0
          %v3970 = vsel %vm3906, 1, 0
          %v3971 = vsel %vm3907, 1, 0
          %v3972 = vsel %vm3908, 1, 0
          %v3973 = vsel %vm3909, 1, 0
          %v3974 = vsel %vm3910, 1, 0
          %v3975 = vsel %vm3911, 1, 0
          %v3976 = vsel %vm3912, 1, 0
          %v3977 = vsel %vm3913, 1, 0
          %v3978 = vsel %vm3914, 1, 0
          %v3979 = vsel %vm3915, 1, 0
          %v3980 = vsel %vm3916, 1, 0
          %v3981 = vsel %vm3917, 1, 0
          %v3982 = vsel %vm3918, 1, 0
          %3983 = vset.pattern.permute.xlu0 0
          %3984 = vperm.xlu0 %3983, %v3919
          %v3985 = vpop.permute.xlu0 %3984
          %3986 = vset.pattern.permute.xlu0 0
          %3987 = vperm.xlu0 %3986, %v3920
          %v3988 = vpop.permute.xlu0 %3987
          %3989 = vset.pattern.permute.xlu0 0
          %3990 = vperm.xlu0 %3989, %v3921
          %v3991 = vpop.permute.xlu0 %3990
          %3992 = vset.pattern.permute.xlu0 0
          %3993 = vperm.xlu0 %3992, %v3922
          %v3994 = vpop.permute.xlu0 %3993
          %3995 = vset.pattern.permute.xlu0 0
          %3996 = vperm.xlu0 %3995, %v3923
          %v3997 = vpop.permute.xlu0 %3996
          %3998 = vset.pattern.permute.xlu0 0
          %3999 = vperm.xlu0 %3998, %v3924
          %v4000 = vpop.permute.xlu0 %3999
          %4001 = vset.pattern.permute.xlu0 0
          %4002 = vperm.xlu0 %4001, %v3925
          %v4003 = vpop.permute.xlu0 %4002
          %4004 = vset.pattern.permute.xlu0 0
          %4005 = vperm.xlu0 %4004, %v3926
          %v4006 = vpop.permute.xlu0 %4005
          %4007 = vset.pattern.permute.xlu0 0
          %4008 = vperm.xlu0 %4007, %v3927
          %v4009 = vpop.permute.xlu0 %4008
          %4010 = vset.pattern.permute.xlu0 0
          %4011 = vperm.xlu0 %4010, %v3928
          %v4012 = vpop.permute.xlu0 %4011
          %4013 = vset.pattern.permute.xlu0 0
          %4014 = vperm.xlu0 %4013, %v3929
          %v4015 = vpop.permute.xlu0 %4014
          %4016 = vset.pattern.permute.xlu0 0
          %4017 = vperm.xlu0 %4016, %v3930
          %v4018 = vpop.permute.xlu0 %4017
          %4019 = vset.pattern.permute.xlu0 0
          %4020 = vperm.xlu0 %4019, %v3931
          %v4021 = vpop.permute.xlu0 %4020
          %4022 = vset.pattern.permute.xlu0 0
          %4023 = vperm.xlu0 %4022, %v3932
          %v4024 = vpop.permute.xlu0 %4023
          %4025 = vset.pattern.permute.xlu0 0
          %4026 = vperm.xlu0 %4025, %v3933
          %v4027 = vpop.permute.xlu0 %4026
          %4028 = vset.pattern.permute.xlu0 0
          %4029 = vperm.xlu0 %4028, %v3934
          %v4030 = vpop.permute.xlu0 %4029
          %4031 = vset.pattern.permute.xlu0 0
          %4032 = vperm.xlu0 %4031, %v3935
          %v4033 = vpop.permute.xlu0 %4032
          %4034 = vset.pattern.permute.xlu0 0
          %4035 = vperm.xlu0 %4034, %v3936
          %v4036 = vpop.permute.xlu0 %4035
          %4037 = vset.pattern.permute.xlu0 0
          %4038 = vperm.xlu0 %4037, %v3937
          %v4039 = vpop.permute.xlu0 %4038
          %4040 = vset.pattern.permute.xlu0 0
          %4041 = vperm.xlu0 %4040, %v3938
          %v4042 = vpop.permute.xlu0 %4041
          %4043 = vset.pattern.permute.xlu0 0
          %4044 = vperm.xlu0 %4043, %v3939
          %v4045 = vpop.permute.xlu0 %4044
          %4046 = vset.pattern.permute.xlu0 0
          %4047 = vperm.xlu0 %4046, %v3940
          %v4048 = vpop.permute.xlu0 %4047
          %4049 = vset.pattern.permute.xlu0 0
          %4050 = vperm.xlu0 %4049, %v3941
          %v4051 = vpop.permute.xlu0 %4050
          %4052 = vset.pattern.permute.xlu0 0
          %4053 = vperm.xlu0 %4052, %v3942
          %v4054 = vpop.permute.xlu0 %4053
          %4055 = vset.pattern.permute.xlu0 0
          %4056 = vperm.xlu0 %4055, %v3943
          %v4057 = vpop.permute.xlu0 %4056
          %4058 = vset.pattern.permute.xlu0 0
          %4059 = vperm.xlu0 %4058, %v3944
          %v4060 = vpop.permute.xlu0 %4059
          %4061 = vset.pattern.permute.xlu0 0
          %4062 = vperm.xlu0 %4061, %v3945
          %v4063 = vpop.permute.xlu0 %4062
          %4064 = vset.pattern.permute.xlu0 0
          %4065 = vperm.xlu0 %4064, %v3946
          %v4066 = vpop.permute.xlu0 %4065
          %4067 = vset.pattern.permute.xlu0 0
          %4068 = vperm.xlu0 %4067, %v3947
          %v4069 = vpop.permute.xlu0 %4068
          %4070 = vset.pattern.permute.xlu0 0
          %4071 = vperm.xlu0 %4070, %v3948
          %v4072 = vpop.permute.xlu0 %4071
          %4073 = vset.pattern.permute.xlu0 0
          %4074 = vperm.xlu0 %4073, %v3949
          %v4075 = vpop.permute.xlu0 %4074
          %4076 = vset.pattern.permute.xlu0 0
          %4077 = vperm.xlu0 %4076, %v3950
          %v4078 = vpop.permute.xlu0 %4077
          %4079 = vset.pattern.permute.xlu0 0
          %4080 = vperm.xlu0 %4079, %v3951
          %v4081 = vpop.permute.xlu0 %4080
          %4082 = vset.pattern.permute.xlu0 0
          %4083 = vperm.xlu0 %4082, %v3952
          %v4084 = vpop.permute.xlu0 %4083
          %4085 = vset.pattern.permute.xlu0 0
          %4086 = vperm.xlu0 %4085, %v3953
          %v4087 = vpop.permute.xlu0 %4086
          %4088 = vset.pattern.permute.xlu0 0
          %4089 = vperm.xlu0 %4088, %v3954
          %v4090 = vpop.permute.xlu0 %4089
          %4091 = vset.pattern.permute.xlu0 0
          %4092 = vperm.xlu0 %4091, %v3955
          %v4093 = vpop.permute.xlu0 %4092
          %4094 = vset.pattern.permute.xlu0 0
          %4095 = vperm.xlu0 %4094, %v3956
          %v4096 = vpop.permute.xlu0 %4095
          %4097 = vset.pattern.permute.xlu0 0
          %4098 = vperm.xlu0 %4097, %v3957
          %v4099 = vpop.permute.xlu0 %4098
          %4100 = vset.pattern.permute.xlu0 0
          %4101 = vperm.xlu0 %4100, %v3958
          %v4102 = vpop.permute.xlu0 %4101
          %4103 = vset.pattern.permute.xlu0 0
          %4104 = vperm.xlu0 %4103, %v3959
          %v4105 = vpop.permute.xlu0 %4104
          %4106 = vset.pattern.permute.xlu0 0
          %4107 = vperm.xlu0 %4106, %v3960
          %v4108 = vpop.permute.xlu0 %4107
          %4109 = vset.pattern.permute.xlu0 0
          %4110 = vperm.xlu0 %4109, %v3961
          %v4111 = vpop.permute.xlu0 %4110
          %4112 = vset.pattern.permute.xlu0 0
          %4113 = vperm.xlu0 %4112, %v3962
          %v4114 = vpop.permute.xlu0 %4113
          %4115 = vset.pattern.permute.xlu0 0
          %4116 = vperm.xlu0 %4115, %v3963
          %v4117 = vpop.permute.xlu0 %4116
          %4118 = vset.pattern.permute.xlu0 0
          %4119 = vperm.xlu0 %4118, %v3964
          %v4120 = vpop.permute.xlu0 %4119
          %4121 = vset.pattern.permute.xlu0 0
          %4122 = vperm.xlu0 %4121, %v3965
          %v4123 = vpop.permute.xlu0 %4122
          %4124 = vset.pattern.permute.xlu0 0
          %4125 = vperm.xlu0 %4124, %v3966
          %v4126 = vpop.permute.xlu0 %4125
          %4127 = vset.pattern.permute.xlu0 0
          %4128 = vperm.xlu0 %4127, %v3967
          %v4129 = vpop.permute.xlu0 %4128
          %4130 = vset.pattern.permute.xlu0 0
          %4131 = vperm.xlu0 %4130, %v3968
          %v4132 = vpop.permute.xlu0 %4131
          %4133 = vset.pattern.permute.xlu0 0
          %4134 = vperm.xlu0 %4133, %v3969
          %v4135 = vpop.permute.xlu0 %4134
          %4136 = vset.pattern.permute.xlu0 0
          %4137 = vperm.xlu0 %4136, %v3970
          %v4138 = vpop.permute.xlu0 %4137
          %4139 = vset.pattern.permute.xlu0 0
          %4140 = vperm.xlu0 %4139, %v3971
          %v4141 = vpop.permute.xlu0 %4140
          %4142 = vset.pattern.permute.xlu0 0
          %4143 = vperm.xlu0 %4142, %v3972
          %v4144 = vpop.permute.xlu0 %4143
          %4145 = vset.pattern.permute.xlu0 0
          %4146 = vperm.xlu0 %4145, %v3973
          %v4147 = vpop.permute.xlu0 %4146
          %4148 = vset.pattern.permute.xlu0 0
          %4149 = vperm.xlu0 %4148, %v3974
          %v4150 = vpop.permute.xlu0 %4149
          %4151 = vset.pattern.permute.xlu0 0
          %4152 = vperm.xlu0 %4151, %v3975
          %v4153 = vpop.permute.xlu0 %4152
          %4154 = vset.pattern.permute.xlu0 0
          %4155 = vperm.xlu0 %4154, %v3976
          %v4156 = vpop.permute.xlu0 %4155
          %4157 = vset.pattern.permute.xlu0 0
          %4158 = vperm.xlu0 %4157, %v3977
          %v4159 = vpop.permute.xlu0 %4158
          %4160 = vset.pattern.permute.xlu0 0
          %4161 = vperm.xlu0 %4160, %v3978
          %v4162 = vpop.permute.xlu0 %4161
          %4163 = vset.pattern.permute.xlu0 0
          %4164 = vperm.xlu0 %4163, %v3979
          %v4165 = vpop.permute.xlu0 %4164
          %4166 = vset.pattern.permute.xlu0 0
          %4167 = vperm.xlu0 %4166, %v3980
          %v4168 = vpop.permute.xlu0 %4167
          %4169 = vset.pattern.permute.xlu0 0
          %4170 = vperm.xlu0 %4169, %v3981
          %v4171 = vpop.permute.xlu0 %4170
          %4172 = vset.pattern.permute.xlu0 0
          %4173 = vperm.xlu0 %4172, %v3982
          %v4174 = vpop.permute.xlu0 %4173
          %vm4175 = vcmp.eq.s32.totalorder %v3985, 1
          %vm4176 = vcmp.eq.s32.totalorder %v3988, 1
          %vm4177 = vcmp.eq.s32.totalorder %v3991, 1
          %vm4178 = vcmp.eq.s32.totalorder %v3994, 1
          %vm4179 = vcmp.eq.s32.totalorder %v3997, 1
          %vm4180 = vcmp.eq.s32.totalorder %v4000, 1
          %vm4181 = vcmp.eq.s32.totalorder %v4003, 1
          %vm4182 = vcmp.eq.s32.totalorder %v4006, 1
          %vm4183 = vcmp.eq.s32.totalorder %v4009, 1
          %vm4184 = vcmp.eq.s32.totalorder %v4012, 1
          %vm4185 = vcmp.eq.s32.totalorder %v4015, 1
          %vm4186 = vcmp.eq.s32.totalorder %v4018, 1
          %vm4187 = vcmp.eq.s32.totalorder %v4021, 1
          %vm4188 = vcmp.eq.s32.totalorder %v4024, 1
          %vm4189 = vcmp.eq.s32.totalorder %v4027, 1
          %vm4190 = vcmp.eq.s32.totalorder %v4030, 1
          %vm4191 = vcmp.eq.s32.totalorder %v4033, 1
          %vm4192 = vcmp.eq.s32.totalorder %v4036, 1
          %vm4193 = vcmp.eq.s32.totalorder %v4039, 1
          %vm4194 = vcmp.eq.s32.totalorder %v4042, 1
          %vm4195 = vcmp.eq.s32.totalorder %v4045, 1
          %vm4196 = vcmp.eq.s32.totalorder %v4048, 1
          %vm4197 = vcmp.eq.s32.totalorder %v4051, 1
          %vm4198 = vcmp.eq.s32.totalorder %v4054, 1
          %vm4199 = vcmp.eq.s32.totalorder %v4057, 1
          %vm4200 = vcmp.eq.s32.totalorder %v4060, 1
          %vm4201 = vcmp.eq.s32.totalorder %v4063, 1
          %vm4202 = vcmp.eq.s32.totalorder %v4066, 1
          %vm4203 = vcmp.eq.s32.totalorder %v4069, 1
          %vm4204 = vcmp.eq.s32.totalorder %v4072, 1
          %vm4205 = vcmp.eq.s32.totalorder %v4075, 1
          %vm4206 = vcmp.eq.s32.totalorder %v4078, 1
          %vm4207 = vcmp.eq.s32.totalorder %v4081, 1
          %vm4208 = vcmp.eq.s32.totalorder %v4084, 1
          %vm4209 = vcmp.eq.s32.totalorder %v4087, 1
          %vm4210 = vcmp.eq.s32.totalorder %v4090, 1
          %vm4211 = vcmp.eq.s32.totalorder %v4093, 1
          %vm4212 = vcmp.eq.s32.totalorder %v4096, 1
          %vm4213 = vcmp.eq.s32.totalorder %v4099, 1
          %vm4214 = vcmp.eq.s32.totalorder %v4102, 1
          %vm4215 = vcmp.eq.s32.totalorder %v4105, 1
          %vm4216 = vcmp.eq.s32.totalorder %v4108, 1
          %vm4217 = vcmp.eq.s32.totalorder %v4111, 1
          %vm4218 = vcmp.eq.s32.totalorder %v4114, 1
          %vm4219 = vcmp.eq.s32.totalorder %v4117, 1
          %vm4220 = vcmp.eq.s32.totalorder %v4120, 1
          %vm4221 = vcmp.eq.s32.totalorder %v4123, 1
          %vm4222 = vcmp.eq.s32.totalorder %v4126, 1
          %vm4223 = vcmp.eq.s32.totalorder %v4129, 1
          %vm4224 = vcmp.eq.s32.totalorder %v4132, 1
          %vm4225 = vcmp.eq.s32.totalorder %v4135, 1
          %vm4226 = vcmp.eq.s32.totalorder %v4138, 1
          %vm4227 = vcmp.eq.s32.totalorder %v4141, 1
          %vm4228 = vcmp.eq.s32.totalorder %v4144, 1
          %vm4229 = vcmp.eq.s32.totalorder %v4147, 1
          %vm4230 = vcmp.eq.s32.totalorder %v4150, 1
          %vm4231 = vcmp.eq.s32.totalorder %v4153, 1
          %vm4232 = vcmp.eq.s32.totalorder %v4156, 1
          %vm4233 = vcmp.eq.s32.totalorder %v4159, 1
          %vm4234 = vcmp.eq.s32.totalorder %v4162, 1
          %vm4235 = vcmp.eq.s32.totalorder %v4165, 1
          %vm4236 = vcmp.eq.s32.totalorder %v4168, 1
          %vm4237 = vcmp.eq.s32.totalorder %v4171, 1
          %vm4238 = vcmp.eq.s32.totalorder %v4174, 1
          %v4240 = vperm.slane %v257, 0
          %v4242 = vsel %vm4175, %v3727, %v4240
          %v4243 = vsel %vm4176, %v3728, %v4240
          %v4244 = vsel %vm4177, %v3729, %v4240
          %v4245 = vsel %vm4178, %v3730, %v4240
          %v4246 = vsel %vm4179, %v3731, %v4240
          %v4247 = vsel %vm4180, %v3732, %v4240
          %v4248 = vsel %vm4181, %v3733, %v4240
          %v4249 = vsel %vm4182, %v3734, %v4240
          %v4250 = vsel %vm4183, %v3735, %v4240
          %v4251 = vsel %vm4184, %v3736, %v4240
          %v4252 = vsel %vm4185, %v3737, %v4240
          %v4253 = vsel %vm4186, %v3738, %v4240
          %v4254 = vsel %vm4187, %v3739, %v4240
          %v4255 = vsel %vm4188, %v3740, %v4240
          %v4256 = vsel %vm4189, %v3741, %v4240
          %v4257 = vsel %vm4190, %v3742, %v4240
          %v4258 = vsel %vm4191, %v3743, %v4240
          %v4259 = vsel %vm4192, %v3744, %v4240
          %v4260 = vsel %vm4193, %v3745, %v4240
          %v4261 = vsel %vm4194, %v3746, %v4240
          %v4262 = vsel %vm4195, %v3747, %v4240
          %v4263 = vsel %vm4196, %v3748, %v4240
          %v4264 = vsel %vm4197, %v3749, %v4240
          %v4265 = vsel %vm4198, %v3750, %v4240
          %v4266 = vsel %vm4199, %v3751, %v4240
          %v4267 = vsel %vm4200, %v3752, %v4240
          %v4268 = vsel %vm4201, %v3753, %v4240
          %v4269 = vsel %vm4202, %v3754, %v4240
          %v4270 = vsel %vm4203, %v3755, %v4240
          %v4271 = vsel %vm4204, %v3756, %v4240
          %v4272 = vsel %vm4205, %v3757, %v4240
          %v4273 = vsel %vm4206, %v3758, %v4240
          %v4274 = vsel %vm4207, %v3759, %v4240
          %v4275 = vsel %vm4208, %v3760, %v4240
          %v4276 = vsel %vm4209, %v3761, %v4240
          %v4277 = vsel %vm4210, %v3762, %v4240
          %v4278 = vsel %vm4211, %v3763, %v4240
          %v4279 = vsel %vm4212, %v3764, %v4240
          %v4280 = vsel %vm4213, %v3765, %v4240
          %v4281 = vsel %vm4214, %v3766, %v4240
          %v4282 = vsel %vm4215, %v3767, %v4240
          %v4283 = vsel %vm4216, %v3768, %v4240
          %v4284 = vsel %vm4217, %v3769, %v4240
          %v4285 = vsel %vm4218, %v3770, %v4240
          %v4286 = vsel %vm4219, %v3771, %v4240
          %v4287 = vsel %vm4220, %v3772, %v4240
          %v4288 = vsel %vm4221, %v3773, %v4240
          %v4289 = vsel %vm4222, %v3774, %v4240
          %v4290 = vsel %vm4223, %v3775, %v4240
          %v4291 = vsel %vm4224, %v3776, %v4240
          %v4292 = vsel %vm4225, %v3777, %v4240
          %v4293 = vsel %vm4226, %v3778, %v4240
          %v4294 = vsel %vm4227, %v3779, %v4240
          %v4295 = vsel %vm4228, %v3780, %v4240
          %v4296 = vsel %vm4229, %v3781, %v4240
          %v4297 = vsel %vm4230, %v3782, %v4240
          %v4298 = vsel %vm4231, %v3783, %v4240
          %v4299 = vsel %vm4232, %v3784, %v4240
          %v4300 = vsel %vm4233, %v3785, %v4240
          %v4301 = vsel %vm4234, %v3786, %v4240
          %v4302 = vsel %vm4235, %v3787, %v4240
          %v4303 = vsel %vm4236, %v3788, %v4240
          %v4304 = vsel %vm4237, %v3789, %v4240
          %v4305 = vsel %vm4238, %v3790, %v4240
          %v4306 = vpack.c.bf16 %v4242, %v4242
          %v4307 = vpack.c.bf16 %v4243, %v4243
          %v4308 = vpack.c.bf16 %v4244, %v4244
          %v4309 = vpack.c.bf16 %v4245, %v4245
          %v4310 = vpack.c.bf16 %v4246, %v4246
          %v4311 = vpack.c.bf16 %v4247, %v4247
          %v4312 = vpack.c.bf16 %v4248, %v4248
          %v4313 = vpack.c.bf16 %v4249, %v4249
          %v4314 = vpack.c.bf16 %v4250, %v4250
          %v4315 = vpack.c.bf16 %v4251, %v4251
          %v4316 = vpack.c.bf16 %v4252, %v4252
          %v4317 = vpack.c.bf16 %v4253, %v4253
          %v4318 = vpack.c.bf16 %v4254, %v4254
          %v4319 = vpack.c.bf16 %v4255, %v4255
          %v4320 = vpack.c.bf16 %v4256, %v4256
          %v4321 = vpack.c.bf16 %v4257, %v4257
          %v4322 = vpack.c.bf16 %v4258, %v4258
          %v4323 = vpack.c.bf16 %v4259, %v4259
          %v4324 = vpack.c.bf16 %v4260, %v4260
          %v4325 = vpack.c.bf16 %v4261, %v4261
          %v4326 = vpack.c.bf16 %v4262, %v4262
          %v4327 = vpack.c.bf16 %v4263, %v4263
          %v4328 = vpack.c.bf16 %v4264, %v4264
          %v4329 = vpack.c.bf16 %v4265, %v4265
          %v4330 = vpack.c.bf16 %v4266, %v4266
          %v4331 = vpack.c.bf16 %v4267, %v4267
          %v4332 = vpack.c.bf16 %v4268, %v4268
          %v4333 = vpack.c.bf16 %v4269, %v4269
          %v4334 = vpack.c.bf16 %v4270, %v4270
          %v4335 = vpack.c.bf16 %v4271, %v4271
          %v4336 = vpack.c.bf16 %v4272, %v4272
          %v4337 = vpack.c.bf16 %v4273, %v4273
          %v4338 = vpack.c.bf16 %v4274, %v4274
          %v4339 = vpack.c.bf16 %v4275, %v4275
          %v4340 = vpack.c.bf16 %v4276, %v4276
          %v4341 = vpack.c.bf16 %v4277, %v4277
          %v4342 = vpack.c.bf16 %v4278, %v4278
          %v4343 = vpack.c.bf16 %v4279, %v4279
          %v4344 = vpack.c.bf16 %v4280, %v4280
          %v4345 = vpack.c.bf16 %v4281, %v4281
          %v4346 = vpack.c.bf16 %v4282, %v4282
          %v4347 = vpack.c.bf16 %v4283, %v4283
          %v4348 = vpack.c.bf16 %v4284, %v4284
          %v4349 = vpack.c.bf16 %v4285, %v4285
          %v4350 = vpack.c.bf16 %v4286, %v4286
          %v4351 = vpack.c.bf16 %v4287, %v4287
          %v4352 = vpack.c.bf16 %v4288, %v4288
          %v4353 = vpack.c.bf16 %v4289, %v4289
          %v4354 = vpack.c.bf16 %v4290, %v4290
          %v4355 = vpack.c.bf16 %v4291, %v4291
          %v4356 = vpack.c.bf16 %v4292, %v4292
          %v4357 = vpack.c.bf16 %v4293, %v4293
          %v4358 = vpack.c.bf16 %v4294, %v4294
          %v4359 = vpack.c.bf16 %v4295, %v4295
          %v4360 = vpack.c.bf16 %v4296, %v4296
          %v4361 = vpack.c.bf16 %v4297, %v4297
          %v4362 = vpack.c.bf16 %v4298, %v4298
          %v4363 = vpack.c.bf16 %v4299, %v4299
          %v4364 = vpack.c.bf16 %v4300, %v4300
          %v4365 = vpack.c.bf16 %v4301, %v4301
          %v4366 = vpack.c.bf16 %v4302, %v4302
          %v4367 = vpack.c.bf16 %v4303, %v4303
          %v4368 = vpack.c.bf16 %v4304, %v4304
          %v4369 = vpack.c.bf16 %v4305, %v4305
          %4370 = vst [vmem:[%s238] sm:$0xf] %v4306
          %4371 = vst [vmem:[%s238 + $0x4] sm:$0xf] %v4307
          %4372 = vst [vmem:[%s238 + $0x8] sm:$0xf] %v4308
          %4373 = vst [vmem:[%s238 + $0xc] sm:$0xf] %v4309
          %4374 = vst [vmem:[%s238 + $0x10] sm:$0xf] %v4310
          %4375 = vst [vmem:[%s238 + $0x14] sm:$0xf] %v4311
          %4376 = vst [vmem:[%s238 + $0x18] sm:$0xf] %v4312
          %4377 = vst [vmem:[%s238 + $0x1c] sm:$0xf] %v4313
          %4378 = vst [vmem:[%s238 + $0x20] sm:$0xf] %v4314
          %4379 = vst [vmem:[%s238 + $0x24] sm:$0xf] %v4315
          %4380 = vst [vmem:[%s238 + $0x28] sm:$0xf] %v4316
          %4381 = vst [vmem:[%s238 + $0x2c] sm:$0xf] %v4317
          %4382 = vst [vmem:[%s238 + $0x30] sm:$0xf] %v4318
          %4383 = vst [vmem:[%s238 + $0x34] sm:$0xf] %v4319
          %4384 = vst [vmem:[%s238 + $0x38] sm:$0xf] %v4320
          %4385 = vst [vmem:[%s238 + $0x3c] sm:$0xf] %v4321
          %4386 = vst [vmem:[%s238 + $0x40] sm:$0xf] %v4322
          %4387 = vst [vmem:[%s238 + $0x44] sm:$0xf] %v4323
          %4388 = vst [vmem:[%s238 + $0x48] sm:$0xf] %v4324
          %4389 = vst [vmem:[%s238 + $0x4c] sm:$0xf] %v4325
          %4390 = vst [vmem:[%s238 + $0x50] sm:$0xf] %v4326
          %4391 = vst [vmem:[%s238 + $0x54] sm:$0xf] %v4327
          %4392 = vst [vmem:[%s238 + $0x58] sm:$0xf] %v4328
          %4393 = vst [vmem:[%s238 + $0x5c] sm:$0xf] %v4329
          %4394 = vst [vmem:[%s238 + $0x60] sm:$0xf] %v4330
          %4395 = vst [vmem:[%s238 + $0x64] sm:$0xf] %v4331
          %4396 = vst [vmem:[%s238 + $0x68] sm:$0xf] %v4332
          %4397 = vst [vmem:[%s238 + $0x6c] sm:$0xf] %v4333
          %4398 = vst [vmem:[%s238 + $0x70] sm:$0xf] %v4334
          %4399 = vst [vmem:[%s238 + $0x74] sm:$0xf] %v4335
          %4400 = vst [vmem:[%s238 + $0x78] sm:$0xf] %v4336
          %4401 = vst [vmem:[%s238 + $0x7c] sm:$0xf] %v4337
          %4402 = vst [vmem:[%s238 + $0x80] sm:$0xf] %v4338
          %4403 = vst [vmem:[%s238 + $0x84] sm:$0xf] %v4339
          %4404 = vst [vmem:[%s238 + $0x88] sm:$0xf] %v4340
          %4405 = vst [vmem:[%s238 + $0x8c] sm:$0xf] %v4341
          %4406 = vst [vmem:[%s238 + $0x90] sm:$0xf] %v4342
          %4407 = vst [vmem:[%s238 + $0x94] sm:$0xf] %v4343
          %4408 = vst [vmem:[%s238 + $0x98] sm:$0xf] %v4344
          %4409 = vst [vmem:[%s238 + $0x9c] sm:$0xf] %v4345
          %4410 = vst [vmem:[%s238 + $0xa0] sm:$0xf] %v4346
          %4411 = vst [vmem:[%s238 + $0xa4] sm:$0xf] %v4347
          %4412 = vst [vmem:[%s238 + $0xa8] sm:$0xf] %v4348
          %4413 = vst [vmem:[%s238 + $0xac] sm:$0xf] %v4349
          %4414 = vst [vmem:[%s238 + $0xb0] sm:$0xf] %v4350
          %4415 = vst [vmem:[%s238 + $0xb4] sm:$0xf] %v4351
          %4416 = vst [vmem:[%s238 + $0xb8] sm:$0xf] %v4352
          %4417 = vst [vmem:[%s238 + $0xbc] sm:$0xf] %v4353
          %4418 = vst [vmem:[%s238 + $0xc0] sm:$0xf] %v4354
          %4419 = vst [vmem:[%s238 + $0xc4] sm:$0xf] %v4355
          %4420 = vst [vmem:[%s238 + $0xc8] sm:$0xf] %v4356
          %4421 = vst [vmem:[%s238 + $0xcc] sm:$0xf] %v4357
          %4422 = vst [vmem:[%s238 + $0xd0] sm:$0xf] %v4358
          %4423 = vst [vmem:[%s238 + $0xd4] sm:$0xf] %v4359
          %4424 = vst [vmem:[%s238 + $0xd8] sm:$0xf] %v4360
          %4425 = vst [vmem:[%s238 + $0xdc] sm:$0xf] %v4361
          %4426 = vst [vmem:[%s238 + $0xe0] sm:$0xf] %v4362
          %4427 = vst [vmem:[%s238 + $0xe4] sm:$0xf] %v4363
          %4428 = vst [vmem:[%s238 + $0xe8] sm:$0xf] %v4364
          %4429 = vst [vmem:[%s238 + $0xec] sm:$0xf] %v4365
          %4430 = vst [vmem:[%s238 + $0xf0] sm:$0xf] %v4366
          %4431 = vst [vmem:[%s238 + $0xf4] sm:$0xf] %v4367
          %4432 = vst [vmem:[%s238 + $0xf8] sm:$0xf] %v4368
          %4433 = vst [vmem:[%s238 + $0xfc] sm:$0xf] %v4369
        $region40: #{tpu_custom_call.1} parent=35 // pred_fallthru
          _
        %s4434 = sld [smem:[#allocation3 + %s33]]
        %p4435 = scmp.eq.s32.totalorder %s4434, 0
        // Predicated region
        $region41: #{tpu_custom_call.1} parent=35 // pred_check
          %p4436 = pneg %p4435
        $region42: #{tpu_custom_call.1} parent=35 // pred_check_branch
          %4438 = sbr.rel (%p4436) target = $region44
        $region43: #{tpu_custom_call.1} parent=35 // pred_region
          %v4440 = vperm.slane %v257, 0
          %v4442 = vpack.c.bf16 %v4440, %v4440
          %4443 = vst [vmem:[%s238] sm:$0xf] %v4442
          %4444 = vst [vmem:[%s238 + $0x4] sm:$0xf] %v4442
          %4445 = vst [vmem:[%s238 + $0x8] sm:$0xf] %v4442
          %4446 = vst [vmem:[%s238 + $0xc] sm:$0xf] %v4442
          %4447 = vst [vmem:[%s238 + $0x10] sm:$0xf] %v4442
          %4448 = vst [vmem:[%s238 + $0x14] sm:$0xf] %v4442
          %4449 = vst [vmem:[%s238 + $0x18] sm:$0xf] %v4442
          %4450 = vst [vmem:[%s238 + $0x1c] sm:$0xf] %v4442
          %4451 = vst [vmem:[%s238 + $0x20] sm:$0xf] %v4442
          %4452 = vst [vmem:[%s238 + $0x24] sm:$0xf] %v4442
          %4453 = vst [vmem:[%s238 + $0x28] sm:$0xf] %v4442
          %4454 = vst [vmem:[%s238 + $0x2c] sm:$0xf] %v4442
          %4455 = vst [vmem:[%s238 + $0x30] sm:$0xf] %v4442
          %4456 = vst [vmem:[%s238 + $0x34] sm:$0xf] %v4442
          %4457 = vst [vmem:[%s238 + $0x38] sm:$0xf] %v4442
          %4458 = vst [vmem:[%s238 + $0x3c] sm:$0xf] %v4442
          %4459 = vst [vmem:[%s238 + $0x40] sm:$0xf] %v4442
          %4460 = vst [vmem:[%s238 + $0x44] sm:$0xf] %v4442
          %4461 = vst [vmem:[%s238 + $0x48] sm:$0xf] %v4442
          %4462 = vst [vmem:[%s238 + $0x4c] sm:$0xf] %v4442
          %4463 = vst [vmem:[%s238 + $0x50] sm:$0xf] %v4442
          %4464 = vst [vmem:[%s238 + $0x54] sm:$0xf] %v4442
          %4465 = vst [vmem:[%s238 + $0x58] sm:$0xf] %v4442
          %4466 = vst [vmem:[%s238 + $0x5c] sm:$0xf] %v4442
          %4467 = vst [vmem:[%s238 + $0x60] sm:$0xf] %v4442
          %4468 = vst [vmem:[%s238 + $0x64] sm:$0xf] %v4442
          %4469 = vst [vmem:[%s238 + $0x68] sm:$0xf] %v4442
          %4470 = vst [vmem:[%s238 + $0x6c] sm:$0xf] %v4442
          %4471 = vst [vmem:[%s238 + $0x70] sm:$0xf] %v4442
          %4472 = vst [vmem:[%s238 + $0x74] sm:$0xf] %v4442
          %4473 = vst [vmem:[%s238 + $0x78] sm:$0xf] %v4442
          %4474 = vst [vmem:[%s238 + $0x7c] sm:$0xf] %v4442
          %4475 = vst [vmem:[%s238 + $0x80] sm:$0xf] %v4442
          %4476 = vst [vmem:[%s238 + $0x84] sm:$0xf] %v4442
          %4477 = vst [vmem:[%s238 + $0x88] sm:$0xf] %v4442
          %4478 = vst [vmem:[%s238 + $0x8c] sm:$0xf] %v4442
          %4479 = vst [vmem:[%s238 + $0x90] sm:$0xf] %v4442
          %4480 = vst [vmem:[%s238 + $0x94] sm:$0xf] %v4442
          %4481 = vst [vmem:[%s238 + $0x98] sm:$0xf] %v4442
          %4482 = vst [vmem:[%s238 + $0x9c] sm:$0xf] %v4442
          %4483 = vst [vmem:[%s238 + $0xa0] sm:$0xf] %v4442
          %4484 = vst [vmem:[%s238 + $0xa4] sm:$0xf] %v4442
          %4485 = vst [vmem:[%s238 + $0xa8] sm:$0xf] %v4442
          %4486 = vst [vmem:[%s238 + $0xac] sm:$0xf] %v4442
          %4487 = vst [vmem:[%s238 + $0xb0] sm:$0xf] %v4442
          %4488 = vst [vmem:[%s238 + $0xb4] sm:$0xf] %v4442
          %4489 = vst [vmem:[%s238 + $0xb8] sm:$0xf] %v4442
          %4490 = vst [vmem:[%s238 + $0xbc] sm:$0xf] %v4442
          %4491 = vst [vmem:[%s238 + $0xc0] sm:$0xf] %v4442
          %4492 = vst [vmem:[%s238 + $0xc4] sm:$0xf] %v4442
          %4493 = vst [vmem:[%s238 + $0xc8] sm:$0xf] %v4442
          %4494 = vst [vmem:[%s238 + $0xcc] sm:$0xf] %v4442
          %4495 = vst [vmem:[%s238 + $0xd0] sm:$0xf] %v4442
          %4496 = vst [vmem:[%s238 + $0xd4] sm:$0xf] %v4442
          %4497 = vst [vmem:[%s238 + $0xd8] sm:$0xf] %v4442
          %4498 = vst [vmem:[%s238 + $0xdc] sm:$0xf] %v4442
          %4499 = vst [vmem:[%s238 + $0xe0] sm:$0xf] %v4442
          %4500 = vst [vmem:[%s238 + $0xe4] sm:$0xf] %v4442
          %4501 = vst [vmem:[%s238 + $0xe8] sm:$0xf] %v4442
          %4502 = vst [vmem:[%s238 + $0xec] sm:$0xf] %v4442
          %4503 = vst [vmem:[%s238 + $0xf0] sm:$0xf] %v4442
          %4504 = vst [vmem:[%s238 + $0xf4] sm:$0xf] %v4442
          %4505 = vst [vmem:[%s238 + $0xf8] sm:$0xf] %v4442
          %4506 = vst [vmem:[%s238 + $0xfc] sm:$0xf] %v4442
        $region44: #{tpu_custom_call.1} parent=35 // pred_fallthru
          _
        %s4507 = sand.u32 %s142, 1
        %s4508 = scalar_lea.sflag [#allocation6], %s4507
        %s4509 = sand.u32 %s142, 1
        %s4510 = smul.addr %s4509, 256
        %s4511 = scalar_lea.vmem [#allocation5], %s4510
        // Predicated region
        $region45: #{tpu_custom_call.1} parent=35 // pred_check
          %p4512 = pneg %p152
        $region46: #{tpu_custom_call.1} parent=35 // pred_check_branch
          %4514 = sbr.rel (%p4512) target = $region48
        $region47: #{tpu_custom_call.1} parent=35 // pred_region
          %s4515 = smul.u32 64, %s33
          %4517 = vsyncadd %s4508, 0
          %s4518 = smul.addr %s4515, 4
          %s4519 = scalar_lea.hbm %s6, %s4518
          %s4520 = sshll.u32 %s4511, 4
          %s4521 = int_to_ptr.vmem [resolvable:$true] %s4520
          %s4522 = sshll.u32 %s4519, 4
          %s4523 = int_to_ptr.hbm [resolvable:$true] %s4522
          %4528 = dma.vmem_to_hbm [thread:$0]  %s4521, 4096, %s4523, %s4508, 64, 64, 4
        $region48: #{tpu_custom_call.1} parent=35 // pred_fallthru
          _
      $region36: #{tpu_custom_call.1} parent=5 // pred_fallthru
        _
      %p4529 = scmp.le.s32.totalorder 2, %s28
      // Predicated region
      $region49: #{tpu_custom_call.1} parent=5 // pred_check
        %p4530 = pneg %p4529
      $region50: #{tpu_custom_call.1} parent=5 // pred_check_branch
        %4532 = sbr.rel (%p4530) target = $region52
      $region51: #{tpu_custom_call.1} parent=5 // pred_region
        %s4533 = ssub.s32 %s28, 2
        // Predicated region
        $region53: #{tpu_custom_call.1} parent=51 // pred_check
          %p4534 = pneg %p158
        $region54: #{tpu_custom_call.1} parent=51 // pred_check_branch
          %4536 = sbr.rel (%p4534) target = $region56
        $region55: #{tpu_custom_call.1} parent=51 // pred_region
          %s4537 = sand.u32 %s143, 1
          %s4538 = scalar_lea.sflag [#allocation6], %s4537
          %s4539 = sand.u32 %s143, 1
          %s4540 = smul.addr %s4539, 256
          %s4541 = scalar_lea.vmem [#allocation5], %s4540
          %4543 = dma.done %s4538, 4096
        $region56: #{tpu_custom_call.1} parent=51 // pred_fallthru
          _
      $region52: #{tpu_custom_call.1} parent=5 // pred_fallthru
        _
    $region6: #{tpu_custom_call.1} parent=1 // loop_footer
      %s32 = sadd.s32 1, %s28
    $region7: #{tpu_custom_call.1} parent=1 // loop_footer_branch
      %27 = sbr.rel target = $region3
    $region8: #{tpu_custom_call.1} parent=1 // loop_exit
      _
    %4544 = vsyncpa [#allocation6], 1
    %s4545 = scalar_lea.sflag [#allocation6], 1
    %4546 = vsyncpa %s4545, 1

</llo_original>
